<compile_context>
chip_gen: v7x
topology: tpu7x:2x2x1
jax: 0.10.0
libtpu: 0.0.40
codegen_flags: <defaults>
</compile_context>

<pallas_src>
import functools

import jax
import jax.numpy as jnp
from jax.experimental import pallas as pl
from jax.experimental.pallas import tpu as pltpu

BN_EPS = 1e-5


def _full_spec(shape):
    """BlockSpec covering the full array, constant across the grid."""
    nd = len(shape)
    return pl.BlockSpec(tuple(shape), lambda *_args, _nd=nd: (0,) * _nd)


def _block_diag_T(adj, num_tiles, tb, dtype):
    """Block-diagonal of per-graph TRANSPOSED adjacency, per batch tile.

    adj: (num_tiles*tb, N, N)  ->  (num_tiles*tb*N, tb*N); block (g, g) of
    tile t holds adj[t*tb + g].T.  Built with the pad-and-reshape block-diag
    trick (pure data movement, no dense TBxTB broadcast-multiply).
    Note: dtype=int8 assumes 0/1 adjacency entries; pass bfloat16/float32 for
    weighted adjacency.
    """
    _, n, _ = adj.shape
    w = tb * n
    blocks = jnp.swapaxes(adj, 1, 2).astype(dtype)            # per-graph A^T
    blocks = blocks.reshape(num_tiles, tb, n, n)
    blocks = jnp.pad(blocks, ((0, 0), (0, 0), (0, 0), (0, w - n)))
    blocks = blocks.reshape(num_tiles, tb, n * w)
    blocks = jnp.pad(blocks, ((0, 0), (0, 0), (0, n)))
    flat = blocks.reshape(num_tiles, tb * (n * w + n))[:, : tb * n * w]
    return flat.reshape(num_tiles * tb * n, w)


@functools.partial(jax.jit,
                   static_argnames=("use_bn", "batch_tile", "adj_storage_dtype"))
def gcn_net_forward(x1, x2, r1, r2, adj1, adj2, mf1, mf2, params, *,
                    use_bn=True, batch_tile=16, adj_storage_dtype=jnp.int8):
    f32, bf16 = jnp.float32, jnp.bfloat16
    B, N, Din = x1.shape
    Fc = params["w_emb"].shape[0]
    Fr = params["w_ro"].shape[0]
    Fm = params["w_mlp0"].shape[0]
    n_mf = mf1.shape[1]
    n_conv = params["w_gcn"].shape[0]
    n_rest = params["w_mlp"].shape[0]                       # n_MLP - 1

    # batch tile: TB graphs per grid step -> TB*N lanes per activation.
    TB = max(1, min(batch_tile, B))
    num_tiles = pl.cdiv(B, TB)
    B_pad = num_tiles * TB
    TBN = TB * N
    assert TBN % 128 == 0 or num_tiles == 1, (
        "choose batch_tile so batch_tile * n_atom is a multiple of 128, or "
        "covers the whole (padded) batch in one tile")

    pad = B_pad - B
    if pad:
        x1 = jnp.pad(x1, ((0, pad), (0, 0), (0, 0)))
        x2 = jnp.pad(x2, ((0, pad), (0, 0), (0, 0)))
        adj1 = jnp.pad(adj1, ((0, pad), (0, 0), (0, 0)))
        adj2 = jnp.pad(adj2, ((0, pad), (0, 0), (0, 0)))
        r1 = jnp.pad(r1, (0, pad))
        r2 = jnp.pad(r2, (0, pad))
        mf1 = jnp.pad(mf1, ((0, pad), (0, 0)))
        mf2 = jnp.pad(mf2, ((0, pad), (0, 0)))

    # Feature-major activations: features on sublanes, (graph, atom) on lanes.
    x1_t = x1.reshape(B_pad * N, Din).T.astype(bf16)        # (Din, B_pad*N)
    x2_t = x2.reshape(B_pad * N, Din).T.astype(bf16)

    # Block-diagonal transposed adjacency, int8 storage (halved DMA bytes).
    adj1_b = _block_diag_T(adj1, num_tiles, TB, adj_storage_dtype)
    adj2_b = _block_diag_T(adj2, num_tiles, TB, adj_storage_dtype)

    # Per-tile molecular features / mixing ratios, graphs on lanes.
    mf1_t = mf1.reshape(num_tiles, TB, n_mf).transpose(0, 2, 1).astype(f32)
    mf2_t = mf2.reshape(num_tiles, TB, n_mf).transpose(0, 2, 1).astype(f32)
    r_t = jnp.stack([r1, r2], 0).astype(f32).reshape(2, num_tiles, TB)
    r_t = r_t.transpose(1, 0, 2)                            # (tiles, 2, TB)

    # Fold inference BatchNorm into per-atom scale/shift lane vectors.
    if use_bn:
        scale = params["gamma"].astype(f32) * jax.lax.rsqrt(
            params["running_var"].astype(f32) + BN_EPS)     # (n_conv, N)
        shift = (params["beta"].astype(f32)
                 - params["running_mean"].astype(f32) * scale)
    else:
        scale = jnp.ones((n_conv, N), f32)
        shift = jnp.zeros((n_conv, N), f32)
    bn = jnp.stack([jnp.tile(scale, (1, TB)),
                    jnp.tile(shift, (1, TB))], axis=1)      # (n_conv, 2, TBN)

    # Weights: PyTorch (out, in) layout is exactly what the feature-major
    # kernel needs (h_out = W @ h_in).  bf16 for the MXU, f32 column biases.
    w_emb = params["w_emb"].astype(bf16)
    b_emb = params["b_emb"].reshape(Fc, 1).astype(f32)
    w_gcn = params["w_gcn"].astype(bf16)
    b_gcn = params["b_gcn"].reshape(n_conv, Fc, 1).astype(f32)
    w_ro = params["w_ro"].astype(bf16)
    b_ro = params["b_ro"].reshape(Fr, 1).astype(f32)
    # Readout's atom-sum as one small matmul: pool[k, g] = (k // N == g).
    pool = jnp.repeat(jnp.eye(TB, dtype=f32), N, axis=0).astype(bf16)
    # First MLP weight split so [readout | mf] never needs an in-kernel concat.
    w0g = params["w_mlp0"][:, :Fr].astype(bf16)
    w0mf = params["w_mlp0"][:, Fr:].astype(bf16)
    b0 = params["b_mlp0"].reshape(Fm, 1).astype(f32)
    if n_rest:
        w_mlp = params["w_mlp"].astype(bf16)
        b_mlp = params["b_mlp"].reshape(n_rest, Fm, 1).astype(f32)
    else:   # dummy (never read) so the operand list stays non-empty
        w_mlp = jnp.zeros((1, Fm, Fm), bf16)
        b_mlp = jnp.zeros((1, Fm, 1), f32)
    w_fc = params["w_fc"].astype(bf16)                      # (1, Fm)
    b_fc = params["b_fc"].reshape(1, 1).astype(f32)

    def kernel(x1_ref, x2_ref, adj1_ref, adj2_ref, mf1_ref, mf2_ref, r_ref,
               w_emb_ref, b_emb_ref, w_gcn_ref, b_gcn_ref, bn_ref,
               w_ro_ref, b_ro_ref, pool_ref, w0g_ref, w0mf_ref, b0_ref,
               w_mlp_ref, b_mlp_ref, w_fc_ref, b_fc_ref, o_ref):
        # int8 (or float) adjacency -> bf16 for the MXU (exact for 0/1).
        a1 = adj1_ref[...].astype(jnp.float32).astype(jnp.bfloat16)
        a2 = adj2_ref[...].astype(jnp.float32).astype(jnp.bfloat16)
        pool_m = pool_ref[...]

        def branch(xT, adjT):
            # embedding (plain linear, no activation)
            h = jnp.dot(w_emb_ref[...], xT,
                        preferred_element_type=jnp.float32) + b_emb_ref[...]
            # GCN layers: linear -> aggregate -> BN(inference) -> ReLU
            for l in range(n_conv):
                hl = jnp.dot(w_gcn_ref[l], h.astype(jnp.bfloat16),
                             preferred_element_type=jnp.float32) + b_gcn_ref[l]
                hl = jnp.dot(hl.astype(jnp.bfloat16), adjT,
                             preferred_element_type=jnp.float32)
                bn_l = bn_ref[l]                            # (2, TBN)
                hl = hl * bn_l[0:1, :] + bn_l[1:2, :]
                h = jnp.maximum(hl, 0.0)
            # readout: pool atoms first, then linear; sum(xW+b) = (sum x)W + N*b
            pooled = jnp.dot(h.astype(jnp.bfloat16), pool_m,
                             preferred_element_type=jnp.float32)   # (Fc, TB)
            g = jnp.dot(w_ro_ref[...], pooled.astype(jnp.bfloat16),
                        preferred_element_type=jnp.float32)
            g = g + float(N) * b_ro_ref[...]
            return jnp.maximum(g, 0.0)                             # (Fr, TB)

        g1 = branch(x1_ref[...], a1)
        g2 = branch(x2_ref[...], a2)

        r = r_ref[0]                                        # (2, TB)
        r1v, r2v = r[0:1, :], r[1:2, :]
        g_mix = r1v * g1 + r2v * g2                         # concat=False mix
        mf_mix = r1v * mf1_ref[0] + r2v * mf2_ref[0]

        # MLP head (dropout is identity in inference)
        x = jnp.dot(w0g_ref[...], g_mix.astype(jnp.bfloat16),
                    preferred_element_type=jnp.float32)
        x = x + jnp.dot(w0mf_ref[...], mf_mix.astype(jnp.bfloat16),
                        preferred_element_type=jnp.float32)
        x = jnp.maximum(x + b0_ref[...], 0.0)
        for l in range(n_rest):
            x = jnp.dot(w_mlp_ref[l], x.astype(jnp.bfloat16),
                        preferred_element_type=jnp.float32) + b_mlp_ref[l]
            x = jnp.maximum(x, 0.0)
        out = jnp.dot(w_fc_ref[...], x.astype(jnp.bfloat16),
                      preferred_element_type=jnp.float32) + b_fc_ref[...]
        o_ref[0] = out                                      # (1, TB)

    inputs = [
        (x1_t, pl.BlockSpec((Din, TBN), lambda i: (0, i))),
        (x2_t, pl.BlockSpec((Din, TBN), lambda i: (0, i))),
        (adj1_b, pl.BlockSpec((TBN, TBN), lambda i: (i, 0))),
        (adj2_b, pl.BlockSpec((TBN, TBN), lambda i: (i, 0))),
        (mf1_t, pl.BlockSpec((1, n_mf, TB), lambda i: (i, 0, 0))),
        (mf2_t, pl.BlockSpec((1, n_mf, TB), lambda i: (i, 0, 0))),
        (r_t, pl.BlockSpec((1, 2, TB), lambda i: (i, 0, 0))),
        (w_emb, _full_spec(w_emb.shape)),
        (b_emb, _full_spec(b_emb.shape)),
        (w_gcn, _full_spec(w_gcn.shape)),
        (b_gcn, _full_spec(b_gcn.shape)),
        (bn, _full_spec(bn.shape)),
        (w_ro, _full_spec(w_ro.shape)),
        (b_ro, _full_spec(b_ro.shape)),
        (pool, _full_spec(pool.shape)),
        (w0g, _full_spec(w0g.shape)),
        (w0mf, _full_spec(w0mf.shape)),
        (b0, _full_spec(b0.shape)),
        (w_mlp, _full_spec(w_mlp.shape)),
        (b_mlp, _full_spec(b_mlp.shape)),
        (w_fc, _full_spec(w_fc.shape)),
        (b_fc, _full_spec(b_fc.shape)),
    ]
    args = [a for a, _ in inputs]
    in_specs = [s for _, s in inputs]

    grid_spec = pl.GridSpec(
        grid=(num_tiles,),
        in_specs=in_specs,
        out_specs=pl.BlockSpec((1, 1, TB), lambda i: (i, 0, 0)),
    )

    out = pl.pallas_call(
        kernel,
        out_shape=jax.ShapeDtypeStruct((num_tiles, 1, TB), f32),
        grid_spec=grid_spec,
        compiler_params=pltpu.CompilerParams(
            dimension_semantics=("parallel",)),
    )(*args)

    # padded graphs (if any) are sliced off here
    return out.reshape(B_pad)[:B][:, None]


def gcn_net_reference(x1, x2, r1, r2, adj1, adj2, mf1, mf2, params, *,
                      use_bn=True):
    """Pure-JAX reference in natural PyTorch op order (bf16 MXU, f32 acc)."""
    f32, bf16 = jnp.float32, jnp.bfloat16

    def lin(x, w, b):
        y = jnp.einsum("...i,oi->...o", x.astype(bf16), w.astype(bf16),
                       preferred_element_type=f32)
        return y + b.astype(f32)

    n_conv = params["w_gcn"].shape[0]

    def branch(x, adj):
        h = lin(x, params["w_emb"], params["b_emb"])
        for l in range(n_conv):
            hl = lin(h, params["w_gcn"][l], params["b_gcn"][l])
            hl = jnp.einsum("bnm,bmf->bnf", adj.astype(bf16), hl.astype(bf16),
                            preferred_element_type=f32)
            if use_bn:
                sc = params["gamma"][l] * jax.lax.rsqrt(
                    params["running_var"][l] + BN_EPS)
                sh = params["beta"][l] - params["running_mean"][l] * sc
                hl = hl * sc[None, :, None] + sh[None, :, None]
            h = jnp.maximum(hl, 0.0)
        g = lin(h, params["w_ro"], params["b_ro"]).sum(axis=1)
        return jnp.maximum(g, 0.0)

    g1 = branch(x1, adj1)
    g2 = branch(x2, adj2)
    x1c = jnp.concatenate([g1, mf1], axis=1)
    x2c = jnp.concatenate([g2, mf2], axis=1)
    x = r1[:, None] * x1c + r2[:, None] * x2c
    x = jnp.maximum(lin(x, params["w_mlp0"], params["b_mlp0"]), 0.0)
    for l in range(params["w_mlp"].shape[0]):
        x = jnp.maximum(lin(x, params["w_mlp"][l], params["b_mlp"][l]), 0.0)
    return lin(x, params["w_fc"], params["b_fc"])


if __name__ == "__main__":
    # GCNNet_Regression config: n_atom=8, n_atom_feature=16, n_conv=3,
    # n_conv_feature=32, n_readout_feature=64, n_mf=16, n_MLP=2,
    # n_feature=n_feature2=64, use_bn=True, use_mf=True, concat=False,
    # dropout in inference mode; batch of 32 graph pairs (2 parallel tiles).
    B, N, Din = 32, 8, 16
    Fc, Fr, Fm, n_mf = 32, 64, 64, 16
    n_conv, n_MLP = 3, 2

    keys = iter(jax.random.split(jax.random.PRNGKey(0), 24))

    def rnd(shape, scale=0.1):
        return scale * jax.random.normal(next(keys), shape, jnp.float32)

    x1 = jax.random.normal(next(keys), (B, N, Din), jnp.float32)
    x2 = jax.random.normal(next(keys), (B, N, Din), jnp.float32)
    adj1 = (jax.random.uniform(next(keys), (B, N, N)) > 0.5).astype(jnp.float32)
    adj2 = (jax.random.uniform(next(keys), (B, N, N)) > 0.5).astype(jnp.float32)
    r1 = jax.random.uniform(next(keys), (B,), jnp.float32)
    r2 = 1.0 - r1
    mf1 = jax.random.normal(next(keys), (B, n_mf), jnp.float32)
    mf2 = jax.random.normal(next(keys), (B, n_mf), jnp.float32)

    # Deterministic synthetic parameters (PyTorch (out, in) weight layout).
    params = {
        "w_emb": rnd((Fc, Din)), "b_emb": rnd((Fc,)),
        "w_gcn": rnd((n_conv, Fc, Fc)), "b_gcn": rnd((n_conv, Fc)),
        "gamma": 1.0 + rnd((n_conv, N)),
        "beta": rnd((n_conv, N)),
        "running_mean": rnd((n_conv, N)),
        "running_var": 1.0 + jnp.abs(rnd((n_conv, N))),
        "w_ro": rnd((Fr, Fc)), "b_ro": rnd((Fr,)),
        "w_mlp0": rnd((Fm, Fr + n_mf)), "b_mlp0": rnd((Fm,)),
        "w_mlp": rnd((n_MLP - 1, Fm, Fm)), "b_mlp": rnd((n_MLP - 1, Fm)),
        "w_fc": rnd((1, Fm)), "b_fc": rnd((1,)),
    }

    out = gcn_net_forward(x1, x2, r1, r2, adj1, adj2, mf1, mf2, params,
                          use_bn=True, batch_tile=16)
    out = jax.block_until_ready(out)

    ref = gcn_net_reference(x1, x2, r1, r2, adj1, adj2, mf1, mf2, params,
                            use_bn=True)

    assert out.shape == (B, 1)
    assert bool(jnp.all(jnp.isfinite(out)))
    max_err = float(jnp.max(jnp.abs(out - ref)))
    assert max_err < 3e-2, f"max abs err vs reference: {max_err}"
    print("KERNEL_OK")
</pallas_src>

<mosaic_0001>
module attributes {stable_mosaic.version = 11 : i64} {
  func.func @kernel(%arg0: i32, %arg1: memref<16x128xbf16, #tpu.memory_space<vmem>>, %arg2: memref<16x128xbf16, #tpu.memory_space<vmem>>, %arg3: memref<128x128xi8, #tpu.memory_space<vmem>>, %arg4: memref<128x128xi8, #tpu.memory_space<vmem>>, %arg5: memref<1x16x16xf32, #tpu.memory_space<vmem>>, %arg6: memref<1x16x16xf32, #tpu.memory_space<vmem>>, %arg7: memref<1x2x16xf32, #tpu.memory_space<vmem>>, %arg8: memref<32x16xbf16, #tpu.memory_space<vmem>>, %arg9: memref<32x1xf32, #tpu.memory_space<vmem>>, %arg10: memref<3x32x32xbf16, #tpu.memory_space<vmem>>, %arg11: memref<3x32x1xf32, #tpu.memory_space<vmem>>, %arg12: memref<3x2x128xf32, #tpu.memory_space<vmem>>, %arg13: memref<64x32xbf16, #tpu.memory_space<vmem>>, %arg14: memref<64x1xf32, #tpu.memory_space<vmem>>, %arg15: memref<128x16xbf16, #tpu.memory_space<vmem>>, %arg16: memref<64x64xbf16, #tpu.memory_space<vmem>>, %arg17: memref<64x16xbf16, #tpu.memory_space<vmem>>, %arg18: memref<64x1xf32, #tpu.memory_space<vmem>>, %arg19: memref<1x64x64xbf16, #tpu.memory_space<vmem>>, %arg20: memref<1x64x1xf32, #tpu.memory_space<vmem>>, %arg21: memref<1x64xbf16, #tpu.memory_space<vmem>>, %arg22: memref<1x1xf32, #tpu.memory_space<vmem>>, %arg23: memref<1x1x16xf32, #tpu.memory_space<vmem>>) attributes {dimension_semantics = [#tpu.dimension_semantics<parallel>], iteration_bounds = array<i64: 2>, scalar_prefetch = 0 : i64, scratch_operands = 0 : i64, tpu.core_type = #tpu.core_type<tc>, window_params = [{transform_indices = @transform_0, window_bounds = array<i64: 16, 128>}, {transform_indices = @transform_1, window_bounds = array<i64: 16, 128>}, {transform_indices = @transform_2, window_bounds = array<i64: 128, 128>}, {transform_indices = @transform_3, window_bounds = array<i64: 128, 128>}, {transform_indices = @transform_4, window_bounds = array<i64: 1, 16, 16>}, {transform_indices = @transform_5, window_bounds = array<i64: 1, 16, 16>}, {transform_indices = @transform_6, window_bounds = array<i64: 1, 2, 16>}, {pipeline_mode = #tpu.pipeline_mode<synchronous>, transform_indices = @transform_7, window_bounds = array<i64: 32, 16>}, {pipeline_mode = #tpu.pipeline_mode<synchronous>, transform_indices = @transform_8, window_bounds = array<i64: 32, 1>}, {pipeline_mode = #tpu.pipeline_mode<synchronous>, transform_indices = @transform_9, window_bounds = array<i64: 3, 32, 32>}, {pipeline_mode = #tpu.pipeline_mode<synchronous>, transform_indices = @transform_10, window_bounds = array<i64: 3, 32, 1>}, {pipeline_mode = #tpu.pipeline_mode<synchronous>, transform_indices = @transform_11, window_bounds = array<i64: 3, 2, 128>}, {pipeline_mode = #tpu.pipeline_mode<synchronous>, transform_indices = @transform_12, window_bounds = array<i64: 64, 32>}, {pipeline_mode = #tpu.pipeline_mode<synchronous>, transform_indices = @transform_13, window_bounds = array<i64: 64, 1>}, {pipeline_mode = #tpu.pipeline_mode<synchronous>, transform_indices = @transform_14, window_bounds = array<i64: 128, 16>}, {pipeline_mode = #tpu.pipeline_mode<synchronous>, transform_indices = @transform_15, window_bounds = array<i64: 64, 64>}, {pipeline_mode = #tpu.pipeline_mode<synchronous>, transform_indices = @transform_16, window_bounds = array<i64: 64, 16>}, {pipeline_mode = #tpu.pipeline_mode<synchronous>, transform_indices = @transform_17, window_bounds = array<i64: 64, 1>}, {pipeline_mode = #tpu.pipeline_mode<synchronous>, transform_indices = @transform_18, window_bounds = array<i64: 1, 64, 64>}, {pipeline_mode = #tpu.pipeline_mode<synchronous>, transform_indices = @transform_19, window_bounds = array<i64: 1, 64, 1>}, {pipeline_mode = #tpu.pipeline_mode<synchronous>, transform_indices = @transform_20, window_bounds = array<i64: 1, 64>}, {pipeline_mode = #tpu.pipeline_mode<synchronous>, transform_indices = @transform_21, window_bounds = array<i64: 1, 1>}, {transform_indices = @transform_22, window_bounds = array<i64: 1, 1, 16>}]} {
    %c0 = arith.constant 0 : index
    %c0_0 = arith.constant 0 : index
    %0 = vector.load %arg3[%c0, %c0_0] : memref<128x128xi8, #tpu.memory_space<vmem>>, vector<128x128xi8>
    %1 = arith.sitofp %0 : vector<128x128xi8> to vector<128x128xf32>
    %2 = arith.truncf %1 : vector<128x128xf32> to vector<128x128xbf16>
    %c0_1 = arith.constant 0 : index
    %c0_2 = arith.constant 0 : index
    %3 = vector.load %arg4[%c0_1, %c0_2] : memref<128x128xi8, #tpu.memory_space<vmem>>, vector<128x128xi8>
    %4 = arith.sitofp %3 : vector<128x128xi8> to vector<128x128xf32>
    %5 = arith.truncf %4 : vector<128x128xf32> to vector<128x128xbf16>
    %c0_3 = arith.constant 0 : index
    %c0_4 = arith.constant 0 : index
    %6 = vector.load %arg15[%c0_3, %c0_4] : memref<128x16xbf16, #tpu.memory_space<vmem>>, vector<128x16xbf16>
    %c0_5 = arith.constant 0 : index
    %c0_6 = arith.constant 0 : index
    %7 = vector.load %arg1[%c0_5, %c0_6] : memref<16x128xbf16, #tpu.memory_space<vmem>>, vector<16x128xbf16>
    %c0_7 = arith.constant 0 : index
    %c0_8 = arith.constant 0 : index
    %8 = vector.load %arg8[%c0_7, %c0_8] : memref<32x16xbf16, #tpu.memory_space<vmem>>, vector<32x16xbf16>
    %cst = arith.constant dense<0.000000e+00> : vector<32x128xf32>
    %9 = tpu.matmul %8, %7, %cst {dimension_numbers = #tpu.dot_dimension_numbers<[1], [0], [0], [1], [0, 0, 1, 1], [], []>} : vector<32x16xbf16>, vector<16x128xbf16>, vector<32x128xf32> -> vector<32x128xf32>
    %c0_9 = arith.constant 0 : index
    %c0_10 = arith.constant 0 : index
    %10 = vector.load %arg9[%c0_9, %c0_10] : memref<32x1xf32, #tpu.memory_space<vmem>>, vector<32x1xf32>
    %11 = vector.broadcast %10 : vector<32x1xf32> to vector<32x128xf32>
    %12 = arith.addf %9, %11 : vector<32x128xf32>
    %c0_11 = arith.constant 0 : index
    %c0_12 = arith.constant 0 : index
    %c0_13 = arith.constant 0 : index
    %13 = vector.load %arg10[%c0_11, %c0_12, %c0_13] : memref<3x32x32xbf16, #tpu.memory_space<vmem>>, vector<1x32x32xbf16>
    %14 = vector.shape_cast %13 : vector<1x32x32xbf16> to vector<32x32xbf16>
    %15 = arith.truncf %12 : vector<32x128xf32> to vector<32x128xbf16>
    %cst_14 = arith.constant dense<0.000000e+00> : vector<32x128xf32>
    %16 = tpu.matmul %14, %15, %cst_14 {dimension_numbers = #tpu.dot_dimension_numbers<[1], [0], [0], [1], [0, 0, 1, 1], [], []>} : vector<32x32xbf16>, vector<32x128xbf16>, vector<32x128xf32> -> vector<32x128xf32>
    %c0_15 = arith.constant 0 : index
    %c0_16 = arith.constant 0 : index
    %c0_17 = arith.constant 0 : index
    %17 = vector.load %arg11[%c0_15, %c0_16, %c0_17] : memref<3x32x1xf32, #tpu.memory_space<vmem>>, vector<1x32x1xf32>
    %18 = vector.shape_cast %17 : vector<1x32x1xf32> to vector<32x1xf32>
    %19 = vector.broadcast %18 : vector<32x1xf32> to vector<32x128xf32>
    %20 = arith.addf %16, %19 : vector<32x128xf32>
    %21 = arith.truncf %20 : vector<32x128xf32> to vector<32x128xbf16>
    %cst_18 = arith.constant dense<0.000000e+00> : vector<32x128xf32>
    %22 = tpu.matmul %21, %2, %cst_18 {dimension_numbers = #tpu.dot_dimension_numbers<[1], [0], [0], [1], [0, 0, 1, 1], [], []>} : vector<32x128xbf16>, vector<128x128xbf16>, vector<32x128xf32> -> vector<32x128xf32>
    %c0_19 = arith.constant 0 : index
    %c0_20 = arith.constant 0 : index
    %c0_21 = arith.constant 0 : index
    %23 = vector.load %arg12[%c0_19, %c0_20, %c0_21] : memref<3x2x128xf32, #tpu.memory_space<vmem>>, vector<1x2x128xf32>
    %24 = vector.shape_cast %23 : vector<1x2x128xf32> to vector<2x128xf32>
    %25 = vector.extract_strided_slice %24 {offsets = [0, 0], sizes = [1, 128], strides = [1, 1]} : vector<2x128xf32> to vector<1x128xf32>
    %26 = vector.broadcast %25 : vector<1x128xf32> to vector<32x128xf32>
    %27 = arith.mulf %22, %26 : vector<32x128xf32>
    %28 = vector.extract_strided_slice %24 {offsets = [1, 0], sizes = [1, 128], strides = [1, 1]} : vector<2x128xf32> to vector<1x128xf32>
    %29 = vector.broadcast %28 : vector<1x128xf32> to vector<32x128xf32>
    %30 = arith.addf %27, %29 : vector<32x128xf32>
    %cst_22 = arith.constant 0.000000e+00 : f32
    %31 = vector.broadcast %cst_22 : f32 to vector<32x128xf32>
    %32 = arith.maximumf %30, %31 : vector<32x128xf32>
    %c1 = arith.constant 1 : index
    %c0_23 = arith.constant 0 : index
    %c0_24 = arith.constant 0 : index
    %33 = vector.load %arg10[%c1, %c0_23, %c0_24] : memref<3x32x32xbf16, #tpu.memory_space<vmem>>, vector<1x32x32xbf16>
    %34 = vector.shape_cast %33 : vector<1x32x32xbf16> to vector<32x32xbf16>
    %35 = arith.truncf %32 : vector<32x128xf32> to vector<32x128xbf16>
    %cst_25 = arith.constant dense<0.000000e+00> : vector<32x128xf32>
    %36 = tpu.matmul %34, %35, %cst_25 {dimension_numbers = #tpu.dot_dimension_numbers<[1], [0], [0], [1], [0, 0, 1, 1], [], []>} : vector<32x32xbf16>, vector<32x128xbf16>, vector<32x128xf32> -> vector<32x128xf32>
    %c1_26 = arith.constant 1 : index
    %c0_27 = arith.constant 0 : index
    %c0_28 = arith.constant 0 : index
    %37 = vector.load %arg11[%c1_26, %c0_27, %c0_28] : memref<3x32x1xf32, #tpu.memory_space<vmem>>, vector<1x32x1xf32>
    %38 = vector.shape_cast %37 : vector<1x32x1xf32> to vector<32x1xf32>
    %39 = vector.broadcast %38 : vector<32x1xf32> to vector<32x128xf32>
    %40 = arith.addf %36, %39 : vector<32x128xf32>
    %41 = arith.truncf %40 : vector<32x128xf32> to vector<32x128xbf16>
    %cst_29 = arith.constant dense<0.000000e+00> : vector<32x128xf32>
    %42 = tpu.matmul %41, %2, %cst_29 {dimension_numbers = #tpu.dot_dimension_numbers<[1], [0], [0], [1], [0, 0, 1, 1], [], []>} : vector<32x128xbf16>, vector<128x128xbf16>, vector<32x128xf32> -> vector<32x128xf32>
    %c1_30 = arith.constant 1 : index
    %c0_31 = arith.constant 0 : index
    %c0_32 = arith.constant 0 : index
    %43 = vector.load %arg12[%c1_30, %c0_31, %c0_32] : memref<3x2x128xf32, #tpu.memory_space<vmem>>, vector<1x2x128xf32>
    %44 = vector.shape_cast %43 : vector<1x2x128xf32> to vector<2x128xf32>
    %45 = vector.extract_strided_slice %44 {offsets = [0, 0], sizes = [1, 128], strides = [1, 1]} : vector<2x128xf32> to vector<1x128xf32>
    %46 = vector.broadcast %45 : vector<1x128xf32> to vector<32x128xf32>
    %47 = arith.mulf %42, %46 : vector<32x128xf32>
    %48 = vector.extract_strided_slice %44 {offsets = [1, 0], sizes = [1, 128], strides = [1, 1]} : vector<2x128xf32> to vector<1x128xf32>
    %49 = vector.broadcast %48 : vector<1x128xf32> to vector<32x128xf32>
    %50 = arith.addf %47, %49 : vector<32x128xf32>
    %cst_33 = arith.constant 0.000000e+00 : f32
    %51 = vector.broadcast %cst_33 : f32 to vector<32x128xf32>
    %52 = arith.maximumf %50, %51 : vector<32x128xf32>
    %c2 = arith.constant 2 : index
    %c0_34 = arith.constant 0 : index
    %c0_35 = arith.constant 0 : index
    %53 = vector.load %arg10[%c2, %c0_34, %c0_35] : memref<3x32x32xbf16, #tpu.memory_space<vmem>>, vector<1x32x32xbf16>
    %54 = vector.shape_cast %53 : vector<1x32x32xbf16> to vector<32x32xbf16>
    %55 = arith.truncf %52 : vector<32x128xf32> to vector<32x128xbf16>
    %cst_36 = arith.constant dense<0.000000e+00> : vector<32x128xf32>
    %56 = tpu.matmul %54, %55, %cst_36 {dimension_numbers = #tpu.dot_dimension_numbers<[1], [0], [0], [1], [0, 0, 1, 1], [], []>} : vector<32x32xbf16>, vector<32x128xbf16>, vector<32x128xf32> -> vector<32x128xf32>
    %c2_37 = arith.constant 2 : index
    %c0_38 = arith.constant 0 : index
    %c0_39 = arith.constant 0 : index
    %57 = vector.load %arg11[%c2_37, %c0_38, %c0_39] : memref<3x32x1xf32, #tpu.memory_space<vmem>>, vector<1x32x1xf32>
    %58 = vector.shape_cast %57 : vector<1x32x1xf32> to vector<32x1xf32>
    %59 = vector.broadcast %58 : vector<32x1xf32> to vector<32x128xf32>
    %60 = arith.addf %56, %59 : vector<32x128xf32>
    %61 = arith.truncf %60 : vector<32x128xf32> to vector<32x128xbf16>
    %cst_40 = arith.constant dense<0.000000e+00> : vector<32x128xf32>
    %62 = tpu.matmul %61, %2, %cst_40 {dimension_numbers = #tpu.dot_dimension_numbers<[1], [0], [0], [1], [0, 0, 1, 1], [], []>} : vector<32x128xbf16>, vector<128x128xbf16>, vector<32x128xf32> -> vector<32x128xf32>
    %c2_41 = arith.constant 2 : index
    %c0_42 = arith.constant 0 : index
    %c0_43 = arith.constant 0 : index
    %63 = vector.load %arg12[%c2_41, %c0_42, %c0_43] : memref<3x2x128xf32, #tpu.memory_space<vmem>>, vector<1x2x128xf32>
    %64 = vector.shape_cast %63 : vector<1x2x128xf32> to vector<2x128xf32>
    %65 = vector.extract_strided_slice %64 {offsets = [0, 0], sizes = [1, 128], strides = [1, 1]} : vector<2x128xf32> to vector<1x128xf32>
    %66 = vector.broadcast %65 : vector<1x128xf32> to vector<32x128xf32>
    %67 = arith.mulf %62, %66 : vector<32x128xf32>
    %68 = vector.extract_strided_slice %64 {offsets = [1, 0], sizes = [1, 128], strides = [1, 1]} : vector<2x128xf32> to vector<1x128xf32>
    %69 = vector.broadcast %68 : vector<1x128xf32> to vector<32x128xf32>
    %70 = arith.addf %67, %69 : vector<32x128xf32>
    %cst_44 = arith.constant 0.000000e+00 : f32
    %71 = vector.broadcast %cst_44 : f32 to vector<32x128xf32>
    %72 = arith.maximumf %70, %71 : vector<32x128xf32>
    %73 = arith.truncf %72 : vector<32x128xf32> to vector<32x128xbf16>
    %cst_45 = arith.constant dense<0.000000e+00> : vector<32x16xf32>
    %74 = tpu.matmul %73, %6, %cst_45 {dimension_numbers = #tpu.dot_dimension_numbers<[1], [0], [0], [1], [0, 0, 1, 1], [], []>} : vector<32x128xbf16>, vector<128x16xbf16>, vector<32x16xf32> -> vector<32x16xf32>
    %c0_46 = arith.constant 0 : index
    %c0_47 = arith.constant 0 : index
    %75 = vector.load %arg13[%c0_46, %c0_47] : memref<64x32xbf16, #tpu.memory_space<vmem>>, vector<64x32xbf16>
    %76 = arith.truncf %74 : vector<32x16xf32> to vector<32x16xbf16>
    %cst_48 = arith.constant dense<0.000000e+00> : vector<64x16xf32>
    %77 = tpu.matmul %75, %76, %cst_48 {dimension_numbers = #tpu.dot_dimension_numbers<[1], [0], [0], [1], [0, 0, 1, 1], [], []>} : vector<64x32xbf16>, vector<32x16xbf16>, vector<64x16xf32> -> vector<64x16xf32>
    %c0_49 = arith.constant 0 : index
    %c0_50 = arith.constant 0 : index
    %78 = vector.load %arg14[%c0_49, %c0_50] : memref<64x1xf32, #tpu.memory_space<vmem>>, vector<64x1xf32>
    %cst_51 = arith.constant 8.000000e+00 : f32
    %79 = vector.broadcast %cst_51 : f32 to vector<64x1xf32>
    %80 = arith.mulf %79, %78 : vector<64x1xf32>
    %81 = vector.broadcast %80 : vector<64x1xf32> to vector<64x16xf32>
    %82 = arith.addf %77, %81 : vector<64x16xf32>
    %cst_52 = arith.constant 0.000000e+00 : f32
    %83 = vector.broadcast %cst_52 : f32 to vector<64x16xf32>
    %84 = arith.maximumf %82, %83 : vector<64x16xf32>
    %c0_53 = arith.constant 0 : index
    %c0_54 = arith.constant 0 : index
    %85 = vector.load %arg2[%c0_53, %c0_54] : memref<16x128xbf16, #tpu.memory_space<vmem>>, vector<16x128xbf16>
    %c0_55 = arith.constant 0 : index
    %c0_56 = arith.constant 0 : index
    %86 = vector.load %arg8[%c0_55, %c0_56] : memref<32x16xbf16, #tpu.memory_space<vmem>>, vector<32x16xbf16>
    %cst_57 = arith.constant dense<0.000000e+00> : vector<32x128xf32>
    %87 = tpu.matmul %86, %85, %cst_57 {dimension_numbers = #tpu.dot_dimension_numbers<[1], [0], [0], [1], [0, 0, 1, 1], [], []>} : vector<32x16xbf16>, vector<16x128xbf16>, vector<32x128xf32> -> vector<32x128xf32>
    %c0_58 = arith.constant 0 : index
    %c0_59 = arith.constant 0 : index
    %88 = vector.load %arg9[%c0_58, %c0_59] : memref<32x1xf32, #tpu.memory_space<vmem>>, vector<32x1xf32>
    %89 = vector.broadcast %88 : vector<32x1xf32> to vector<32x128xf32>
    %90 = arith.addf %87, %89 : vector<32x128xf32>
    %c0_60 = arith.constant 0 : index
    %c0_61 = arith.constant 0 : index
    %c0_62 = arith.constant 0 : index
    %91 = vector.load %arg10[%c0_60, %c0_61, %c0_62] : memref<3x32x32xbf16, #tpu.memory_space<vmem>>, vector<1x32x32xbf16>
    %92 = vector.shape_cast %91 : vector<1x32x32xbf16> to vector<32x32xbf16>
    %93 = arith.truncf %90 : vector<32x128xf32> to vector<32x128xbf16>
    %cst_63 = arith.constant dense<0.000000e+00> : vector<32x128xf32>
    %94 = tpu.matmul %92, %93, %cst_63 {dimension_numbers = #tpu.dot_dimension_numbers<[1], [0], [0], [1], [0, 0, 1, 1], [], []>} : vector<32x32xbf16>, vector<32x128xbf16>, vector<32x128xf32> -> vector<32x128xf32>
    %c0_64 = arith.constant 0 : index
    %c0_65 = arith.constant 0 : index
    %c0_66 = arith.constant 0 : index
    %95 = vector.load %arg11[%c0_64, %c0_65, %c0_66] : memref<3x32x1xf32, #tpu.memory_space<vmem>>, vector<1x32x1xf32>
    %96 = vector.shape_cast %95 : vector<1x32x1xf32> to vector<32x1xf32>
    %97 = vector.broadcast %96 : vector<32x1xf32> to vector<32x128xf32>
    %98 = arith.addf %94, %97 : vector<32x128xf32>
    %99 = arith.truncf %98 : vector<32x128xf32> to vector<32x128xbf16>
    %cst_67 = arith.constant dense<0.000000e+00> : vector<32x128xf32>
    %100 = tpu.matmul %99, %5, %cst_67 {dimension_numbers = #tpu.dot_dimension_numbers<[1], [0], [0], [1], [0, 0, 1, 1], [], []>} : vector<32x128xbf16>, vector<128x128xbf16>, vector<32x128xf32> -> vector<32x128xf32>
    %c0_68 = arith.constant 0 : index
    %c0_69 = arith.constant 0 : index
    %c0_70 = arith.constant 0 : index
    %101 = vector.load %arg12[%c0_68, %c0_69, %c0_70] : memref<3x2x128xf32, #tpu.memory_space<vmem>>, vector<1x2x128xf32>
    %102 = vector.shape_cast %101 : vector<1x2x128xf32> to vector<2x128xf32>
    %103 = vector.extract_strided_slice %102 {offsets = [0, 0], sizes = [1, 128], strides = [1, 1]} : vector<2x128xf32> to vector<1x128xf32>
    %104 = vector.broadcast %103 : vector<1x128xf32> to vector<32x128xf32>
    %105 = arith.mulf %100, %104 : vector<32x128xf32>
    %106 = vector.extract_strided_slice %102 {offsets = [1, 0], sizes = [1, 128], strides = [1, 1]} : vector<2x128xf32> to vector<1x128xf32>
    %107 = vector.broadcast %106 : vector<1x128xf32> to vector<32x128xf32>
    %108 = arith.addf %105, %107 : vector<32x128xf32>
    %cst_71 = arith.constant 0.000000e+00 : f32
    %109 = vector.broadcast %cst_71 : f32 to vector<32x128xf32>
    %110 = arith.maximumf %108, %109 : vector<32x128xf32>
    %c1_72 = arith.constant 1 : index
    %c0_73 = arith.constant 0 : index
    %c0_74 = arith.constant 0 : index
    %111 = vector.load %arg10[%c1_72, %c0_73, %c0_74] : memref<3x32x32xbf16, #tpu.memory_space<vmem>>, vector<1x32x32xbf16>
    %112 = vector.shape_cast %111 : vector<1x32x32xbf16> to vector<32x32xbf16>
    %113 = arith.truncf %110 : vector<32x128xf32> to vector<32x128xbf16>
    %cst_75 = arith.constant dense<0.000000e+00> : vector<32x128xf32>
    %114 = tpu.matmul %112, %113, %cst_75 {dimension_numbers = #tpu.dot_dimension_numbers<[1], [0], [0], [1], [0, 0, 1, 1], [], []>} : vector<32x32xbf16>, vector<32x128xbf16>, vector<32x128xf32> -> vector<32x128xf32>
    %c1_76 = arith.constant 1 : index
    %c0_77 = arith.constant 0 : index
    %c0_78 = arith.constant 0 : index
    %115 = vector.load %arg11[%c1_76, %c0_77, %c0_78] : memref<3x32x1xf32, #tpu.memory_space<vmem>>, vector<1x32x1xf32>
    %116 = vector.shape_cast %115 : vector<1x32x1xf32> to vector<32x1xf32>
    %117 = vector.broadcast %116 : vector<32x1xf32> to vector<32x128xf32>
    %118 = arith.addf %114, %117 : vector<32x128xf32>
    %119 = arith.truncf %118 : vector<32x128xf32> to vector<32x128xbf16>
    %cst_79 = arith.constant dense<0.000000e+00> : vector<32x128xf32>
    %120 = tpu.matmul %119, %5, %cst_79 {dimension_numbers = #tpu.dot_dimension_numbers<[1], [0], [0], [1], [0, 0, 1, 1], [], []>} : vector<32x128xbf16>, vector<128x128xbf16>, vector<32x128xf32> -> vector<32x128xf32>
    %c1_80 = arith.constant 1 : index
    %c0_81 = arith.constant 0 : index
    %c0_82 = arith.constant 0 : index
    %121 = vector.load %arg12[%c1_80, %c0_81, %c0_82] : memref<3x2x128xf32, #tpu.memory_space<vmem>>, vector<1x2x128xf32>
    %122 = vector.shape_cast %121 : vector<1x2x128xf32> to vector<2x128xf32>
    %123 = vector.extract_strided_slice %122 {offsets = [0, 0], sizes = [1, 128], strides = [1, 1]} : vector<2x128xf32> to vector<1x128xf32>
    %124 = vector.broadcast %123 : vector<1x128xf32> to vector<32x128xf32>
    %125 = arith.mulf %120, %124 : vector<32x128xf32>
    %126 = vector.extract_strided_slice %122 {offsets = [1, 0], sizes = [1, 128], strides = [1, 1]} : vector<2x128xf32> to vector<1x128xf32>
    %127 = vector.broadcast %126 : vector<1x128xf32> to vector<32x128xf32>
    %128 = arith.addf %125, %127 : vector<32x128xf32>
    %cst_83 = arith.constant 0.000000e+00 : f32
    %129 = vector.broadcast %cst_83 : f32 to vector<32x128xf32>
    %130 = arith.maximumf %128, %129 : vector<32x128xf32>
    %c2_84 = arith.constant 2 : index
    %c0_85 = arith.constant 0 : index
    %c0_86 = arith.constant 0 : index
    %131 = vector.load %arg10[%c2_84, %c0_85, %c0_86] : memref<3x32x32xbf16, #tpu.memory_space<vmem>>, vector<1x32x32xbf16>
    %132 = vector.shape_cast %131 : vector<1x32x32xbf16> to vector<32x32xbf16>
    %133 = arith.truncf %130 : vector<32x128xf32> to vector<32x128xbf16>
    %cst_87 = arith.constant dense<0.000000e+00> : vector<32x128xf32>
    %134 = tpu.matmul %132, %133, %cst_87 {dimension_numbers = #tpu.dot_dimension_numbers<[1], [0], [0], [1], [0, 0, 1, 1], [], []>} : vector<32x32xbf16>, vector<32x128xbf16>, vector<32x128xf32> -> vector<32x128xf32>
    %c2_88 = arith.constant 2 : index
    %c0_89 = arith.constant 0 : index
    %c0_90 = arith.constant 0 : index
    %135 = vector.load %arg11[%c2_88, %c0_89, %c0_90] : memref<3x32x1xf32, #tpu.memory_space<vmem>>, vector<1x32x1xf32>
    %136 = vector.shape_cast %135 : vector<1x32x1xf32> to vector<32x1xf32>
    %137 = vector.broadcast %136 : vector<32x1xf32> to vector<32x128xf32>
    %138 = arith.addf %134, %137 : vector<32x128xf32>
    %139 = arith.truncf %138 : vector<32x128xf32> to vector<32x128xbf16>
    %cst_91 = arith.constant dense<0.000000e+00> : vector<32x128xf32>
    %140 = tpu.matmul %139, %5, %cst_91 {dimension_numbers = #tpu.dot_dimension_numbers<[1], [0], [0], [1], [0, 0, 1, 1], [], []>} : vector<32x128xbf16>, vector<128x128xbf16>, vector<32x128xf32> -> vector<32x128xf32>
    %c2_92 = arith.constant 2 : index
    %c0_93 = arith.constant 0 : index
    %c0_94 = arith.constant 0 : index
    %141 = vector.load %arg12[%c2_92, %c0_93, %c0_94] : memref<3x2x128xf32, #tpu.memory_space<vmem>>, vector<1x2x128xf32>
    %142 = vector.shape_cast %141 : vector<1x2x128xf32> to vector<2x128xf32>
    %143 = vector.extract_strided_slice %142 {offsets = [0, 0], sizes = [1, 128], strides = [1, 1]} : vector<2x128xf32> to vector<1x128xf32>
    %144 = vector.broadcast %143 : vector<1x128xf32> to vector<32x128xf32>
    %145 = arith.mulf %140, %144 : vector<32x128xf32>
    %146 = vector.extract_strided_slice %142 {offsets = [1, 0], sizes = [1, 128], strides = [1, 1]} : vector<2x128xf32> to vector<1x128xf32>
    %147 = vector.broadcast %146 : vector<1x128xf32> to vector<32x128xf32>
    %148 = arith.addf %145, %147 : vector<32x128xf32>
    %cst_95 = arith.constant 0.000000e+00 : f32
    %149 = vector.broadcast %cst_95 : f32 to vector<32x128xf32>
    %150 = arith.maximumf %148, %149 : vector<32x128xf32>
    %151 = arith.truncf %150 : vector<32x128xf32> to vector<32x128xbf16>
    %cst_96 = arith.constant dense<0.000000e+00> : vector<32x16xf32>
    %152 = tpu.matmul %151, %6, %cst_96 {dimension_numbers = #tpu.dot_dimension_numbers<[1], [0], [0], [1], [0, 0, 1, 1], [], []>} : vector<32x128xbf16>, vector<128x16xbf16>, vector<32x16xf32> -> vector<32x16xf32>
    %c0_97 = arith.constant 0 : index
    %c0_98 = arith.constant 0 : index
    %153 = vector.load %arg13[%c0_97, %c0_98] : memref<64x32xbf16, #tpu.memory_space<vmem>>, vector<64x32xbf16>
    %154 = arith.truncf %152 : vector<32x16xf32> to vector<32x16xbf16>
    %cst_99 = arith.constant dense<0.000000e+00> : vector<64x16xf32>
    %155 = tpu.matmul %153, %154, %cst_99 {dimension_numbers = #tpu.dot_dimension_numbers<[1], [0], [0], [1], [0, 0, 1, 1], [], []>} : vector<64x32xbf16>, vector<32x16xbf16>, vector<64x16xf32> -> vector<64x16xf32>
    %c0_100 = arith.constant 0 : index
    %c0_101 = arith.constant 0 : index
    %156 = vector.load %arg14[%c0_100, %c0_101] : memref<64x1xf32, #tpu.memory_space<vmem>>, vector<64x1xf32>
    %cst_102 = arith.constant 8.000000e+00 : f32
    %157 = vector.broadcast %cst_102 : f32 to vector<64x1xf32>
    %158 = arith.mulf %157, %156 : vector<64x1xf32>
    %159 = vector.broadcast %158 : vector<64x1xf32> to vector<64x16xf32>
    %160 = arith.addf %155, %159 : vector<64x16xf32>
    %cst_103 = arith.constant 0.000000e+00 : f32
    %161 = vector.broadcast %cst_103 : f32 to vector<64x16xf32>
    %162 = arith.maximumf %160, %161 : vector<64x16xf32>
    %c0_104 = arith.constant 0 : index
    %c0_105 = arith.constant 0 : index
    %c0_106 = arith.constant 0 : index
    %163 = vector.load %arg7[%c0_104, %c0_105, %c0_106] : memref<1x2x16xf32, #tpu.memory_space<vmem>>, vector<1x2x16xf32>
    %164 = vector.shape_cast %163 : vector<1x2x16xf32> to vector<2x16xf32>
    %165 = vector.extract_strided_slice %164 {offsets = [0, 0], sizes = [1, 16], strides = [1, 1]} : vector<2x16xf32> to vector<1x16xf32>
    %166 = vector.extract_strided_slice %164 {offsets = [1, 0], sizes = [1, 16], strides = [1, 1]} : vector<2x16xf32> to vector<1x16xf32>
    %167 = vector.broadcast %165 : vector<1x16xf32> to vector<64x16xf32>
    %168 = arith.mulf %167, %84 : vector<64x16xf32>
    %169 = vector.broadcast %166 : vector<1x16xf32> to vector<64x16xf32>
    %170 = arith.mulf %169, %162 : vector<64x16xf32>
    %171 = arith.addf %168, %170 : vector<64x16xf32>
    %c0_107 = arith.constant 0 : index
    %c0_108 = arith.constant 0 : index
    %c0_109 = arith.constant 0 : index
    %172 = vector.load %arg5[%c0_107, %c0_108, %c0_109] : memref<1x16x16xf32, #tpu.memory_space<vmem>>, vector<1x16x16xf32>
    %173 = vector.shape_cast %172 : vector<1x16x16xf32> to vector<16x16xf32>
    %174 = vector.broadcast %165 : vector<1x16xf32> to vector<16x16xf32>
    %175 = arith.mulf %174, %173 : vector<16x16xf32>
    %c0_110 = arith.constant 0 : index
    %c0_111 = arith.constant 0 : index
    %c0_112 = arith.constant 0 : index
    %176 = vector.load %arg6[%c0_110, %c0_111, %c0_112] : memref<1x16x16xf32, #tpu.memory_space<vmem>>, vector<1x16x16xf32>
    %177 = vector.shape_cast %176 : vector<1x16x16xf32> to vector<16x16xf32>
    %178 = vector.broadcast %166 : vector<1x16xf32> to vector<16x16xf32>
    %179 = arith.mulf %178, %177 : vector<16x16xf32>
    %180 = arith.addf %175, %179 : vector<16x16xf32>
    %c0_113 = arith.constant 0 : index
    %c0_114 = arith.constant 0 : index
    %181 = vector.load %arg16[%c0_113, %c0_114] : memref<64x64xbf16, #tpu.memory_space<vmem>>, vector<64x64xbf16>
    %182 = arith.truncf %171 : vector<64x16xf32> to vector<64x16xbf16>
    %cst_115 = arith.constant dense<0.000000e+00> : vector<64x16xf32>
    %183 = tpu.matmul %181, %182, %cst_115 {dimension_numbers = #tpu.dot_dimension_numbers<[1], [0], [0], [1], [0, 0, 1, 1], [], []>} : vector<64x64xbf16>, vector<64x16xbf16>, vector<64x16xf32> -> vector<64x16xf32>
    %c0_116 = arith.constant 0 : index
    %c0_117 = arith.constant 0 : index
    %184 = vector.load %arg17[%c0_116, %c0_117] : memref<64x16xbf16, #tpu.memory_space<vmem>>, vector<64x16xbf16>
    %185 = arith.truncf %180 : vector<16x16xf32> to vector<16x16xbf16>
    %cst_118 = arith.constant dense<0.000000e+00> : vector<64x16xf32>
    %186 = tpu.matmul %184, %185, %cst_118 {dimension_numbers = #tpu.dot_dimension_numbers<[1], [0], [0], [1], [0, 0, 1, 1], [], []>} : vector<64x16xbf16>, vector<16x16xbf16>, vector<64x16xf32> -> vector<64x16xf32>
    %187 = arith.addf %183, %186 : vector<64x16xf32>
    %c0_119 = arith.constant 0 : index
    %c0_120 = arith.constant 0 : index
    %188 = vector.load %arg18[%c0_119, %c0_120] : memref<64x1xf32, #tpu.memory_space<vmem>>, vector<64x1xf32>
    %189 = vector.broadcast %188 : vector<64x1xf32> to vector<64x16xf32>
    %190 = arith.addf %187, %189 : vector<64x16xf32>
    %cst_121 = arith.constant 0.000000e+00 : f32
    %191 = vector.broadcast %cst_121 : f32 to vector<64x16xf32>
    %192 = arith.maximumf %190, %191 : vector<64x16xf32>
    %c0_122 = arith.constant 0 : index
    %c0_123 = arith.constant 0 : index
    %c0_124 = arith.constant 0 : index
    %193 = vector.load %arg19[%c0_122, %c0_123, %c0_124] : memref<1x64x64xbf16, #tpu.memory_space<vmem>>, vector<1x64x64xbf16>
    %194 = vector.shape_cast %193 : vector<1x64x64xbf16> to vector<64x64xbf16>
    %195 = arith.truncf %192 : vector<64x16xf32> to vector<64x16xbf16>
    %cst_125 = arith.constant dense<0.000000e+00> : vector<64x16xf32>
    %196 = tpu.matmul %194, %195, %cst_125 {dimension_numbers = #tpu.dot_dimension_numbers<[1], [0], [0], [1], [0, 0, 1, 1], [], []>} : vector<64x64xbf16>, vector<64x16xbf16>, vector<64x16xf32> -> vector<64x16xf32>
    %c0_126 = arith.constant 0 : index
    %c0_127 = arith.constant 0 : index
    %c0_128 = arith.constant 0 : index
    %197 = vector.load %arg20[%c0_126, %c0_127, %c0_128] : memref<1x64x1xf32, #tpu.memory_space<vmem>>, vector<1x64x1xf32>
    %198 = vector.shape_cast %197 : vector<1x64x1xf32> to vector<64x1xf32>
    %199 = vector.broadcast %198 : vector<64x1xf32> to vector<64x16xf32>
    %200 = arith.addf %196, %199 : vector<64x16xf32>
    %cst_129 = arith.constant 0.000000e+00 : f32
    %201 = vector.broadcast %cst_129 : f32 to vector<64x16xf32>
    %202 = arith.maximumf %200, %201 : vector<64x16xf32>
    %c0_130 = arith.constant 0 : index
    %c0_131 = arith.constant 0 : index
    %203 = vector.load %arg21[%c0_130, %c0_131] : memref<1x64xbf16, #tpu.memory_space<vmem>>, vector<1x64xbf16>
    %204 = arith.truncf %202 : vector<64x16xf32> to vector<64x16xbf16>
    %cst_132 = arith.constant dense<0.000000e+00> : vector<1x16xf32>
    %205 = tpu.matmul %203, %204, %cst_132 {dimension_numbers = #tpu.dot_dimension_numbers<[1], [0], [0], [1], [0, 0, 1, 1], [], []>} : vector<1x64xbf16>, vector<64x16xbf16>, vector<1x16xf32> -> vector<1x16xf32>
    %c0_133 = arith.constant 0 : index
    %c0_134 = arith.constant 0 : index
    %206 = vector.load %arg22[%c0_133, %c0_134] : memref<1x1xf32, #tpu.memory_space<vmem>>, vector<1x1xf32>
    %207 = vector.broadcast %206 : vector<1x1xf32> to vector<1x16xf32>
    %208 = arith.addf %205, %207 : vector<1x16xf32>
    %c0_135 = arith.constant 0 : index
    %c0_136 = arith.constant 0 : index
    %c0_137 = arith.constant 0 : index
    %209 = vector.load %arg23[%c0_135, %c0_136, %c0_137] : memref<1x1x16xf32, #tpu.memory_space<vmem>>, vector<1x1x16xf32>
    %210 = vector.shape_cast %209 : vector<1x1x16xf32> to vector<1x16xf32>
    %211 = vector.shape_cast %208 : vector<1x16xf32> to vector<1x1x16xf32>
    tpu.vector_store %arg23[%c0_135, %c0_136, %c0_137], %211 {strides = array<i32>} : memref<1x1x16xf32, #tpu.memory_space<vmem>>, vector<1x1x16xf32>,
    return
  }
  func.func @transform_0(%arg0: i32) -> (i32, i32) {
    %c0_i32 = arith.constant 0 : i32
    %c0_i32_0 = arith.constant 0 : i32
    return %c0_i32, %arg0 : i32, i32
  }
  func.func @transform_1(%arg0: i32) -> (i32, i32) {
    %c0_i32 = arith.constant 0 : i32
    %c0_i32_0 = arith.constant 0 : i32
    return %c0_i32, %arg0 : i32, i32
  }
  func.func @transform_2(%arg0: i32) -> (i32, i32) {
    %c0_i32 = arith.constant 0 : i32
    %c0_i32_0 = arith.constant 0 : i32
    return %arg0, %c0_i32 : i32, i32
  }
  func.func @transform_3(%arg0: i32) -> (i32, i32) {
    %c0_i32 = arith.constant 0 : i32
    %c0_i32_0 = arith.constant 0 : i32
    return %arg0, %c0_i32 : i32, i32
  }
  func.func @transform_4(%arg0: i32) -> (i32, i32, i32) {
    %c0_i32 = arith.constant 0 : i32
    %c0_i32_0 = arith.constant 0 : i32
    %c0_i32_1 = arith.constant 0 : i32
    return %arg0, %c0_i32, %c0_i32_0 : i32, i32, i32
  }
  func.func @transform_5(%arg0: i32) -> (i32, i32, i32) {
    %c0_i32 = arith.constant 0 : i32
    %c0_i32_0 = arith.constant 0 : i32
    %c0_i32_1 = arith.constant 0 : i32
    return %arg0, %c0_i32, %c0_i32_0 : i32, i32, i32
  }
  func.func @transform_6(%arg0: i32) -> (i32, i32, i32) {
    %c0_i32 = arith.constant 0 : i32
    %c0_i32_0 = arith.constant 0 : i32
    %c0_i32_1 = arith.constant 0 : i32
    return %arg0, %c0_i32, %c0_i32_0 : i32, i32, i32
  }
  func.func @transform_7(%arg0: i32) -> (i32, i32) {
    %c0_i32 = arith.constant 0 : i32
    %c0_i32_0 = arith.constant 0 : i32
    %c0_i32_1 = arith.constant 0 : i32
    return %c0_i32, %c0_i32_0 : i32, i32
  }
  func.func @transform_8(%arg0: i32) -> (i32, i32) {
    %c0_i32 = arith.constant 0 : i32
    %c0_i32_0 = arith.constant 0 : i32
    %c0_i32_1 = arith.constant 0 : i32
    return %c0_i32, %c0_i32_0 : i32, i32
  }
  func.func @transform_9(%arg0: i32) -> (i32, i32, i32) {
    %c0_i32 = arith.constant 0 : i32
    %c0_i32_0 = arith.constant 0 : i32
    %c0_i32_1 = arith.constant 0 : i32
    %c0_i32_2 = arith.constant 0 : i32
    return %c0_i32, %c0_i32_0, %c0_i32_1 : i32, i32, i32
  }
  func.func @transform_10(%arg0: i32) -> (i32, i32, i32) {
    %c0_i32 = arith.constant 0 : i32
    %c0_i32_0 = arith.constant 0 : i32
    %c0_i32_1 = arith.constant 0 : i32
    %c0_i32_2 = arith.constant 0 : i32
    return %c0_i32, %c0_i32_0, %c0_i32_1 : i32, i32, i32
  }
  func.func @transform_11(%arg0: i32) -> (i32, i32, i32) {
    %c0_i32 = arith.constant 0 : i32
    %c0_i32_0 = arith.constant 0 : i32
    %c0_i32_1 = arith.constant 0 : i32
    %c0_i32_2 = arith.constant 0 : i32
    return %c0_i32, %c0_i32_0, %c0_i32_1 : i32, i32, i32
  }
  func.func @transform_12(%arg0: i32) -> (i32, i32) {
    %c0_i32 = arith.constant 0 : i32
    %c0_i32_0 = arith.constant 0 : i32
    %c0_i32_1 = arith.constant 0 : i32
    return %c0_i32, %c0_i32_0 : i32, i32
  }
  func.func @transform_13(%arg0: i32) -> (i32, i32) {
    %c0_i32 = arith.constant 0 : i32
    %c0_i32_0 = arith.constant 0 : i32
    %c0_i32_1 = arith.constant 0 : i32
    return %c0_i32, %c0_i32_0 : i32, i32
  }
  func.func @transform_14(%arg0: i32) -> (i32, i32) {
    %c0_i32 = arith.constant 0 : i32
    %c0_i32_0 = arith.constant 0 : i32
    %c0_i32_1 = arith.constant 0 : i32
    return %c0_i32, %c0_i32_0 : i32, i32
  }
  func.func @transform_15(%arg0: i32) -> (i32, i32) {
    %c0_i32 = arith.constant 0 : i32
    %c0_i32_0 = arith.constant 0 : i32
    %c0_i32_1 = arith.constant 0 : i32
    return %c0_i32, %c0_i32_0 : i32, i32
  }
  func.func @transform_16(%arg0: i32) -> (i32, i32) {
    %c0_i32 = arith.constant 0 : i32
    %c0_i32_0 = arith.constant 0 : i32
    %c0_i32_1 = arith.constant 0 : i32
    return %c0_i32, %c0_i32_0 : i32, i32
  }
  func.func @transform_17(%arg0: i32) -> (i32, i32) {
    %c0_i32 = arith.constant 0 : i32
    %c0_i32_0 = arith.constant 0 : i32
    %c0_i32_1 = arith.constant 0 : i32
    return %c0_i32, %c0_i32_0 : i32, i32
  }
  func.func @transform_18(%arg0: i32) -> (i32, i32, i32) {
    %c0_i32 = arith.constant 0 : i32
    %c0_i32_0 = arith.constant 0 : i32
    %c0_i32_1 = arith.constant 0 : i32
    %c0_i32_2 = arith.constant 0 : i32
    return %c0_i32, %c0_i32_0, %c0_i32_1 : i32, i32, i32
  }
  func.func @transform_19(%arg0: i32) -> (i32, i32, i32) {
    %c0_i32 = arith.constant 0 : i32
    %c0_i32_0 = arith.constant 0 : i32
    %c0_i32_1 = arith.constant 0 : i32
    %c0_i32_2 = arith.constant 0 : i32
    return %c0_i32, %c0_i32_0, %c0_i32_1 : i32, i32, i32
  }
  func.func @transform_20(%arg0: i32) -> (i32, i32) {
    %c0_i32 = arith.constant 0 : i32
    %c0_i32_0 = arith.constant 0 : i32
    %c0_i32_1 = arith.constant 0 : i32
    return %c0_i32, %c0_i32_0 : i32, i32
  }
  func.func @transform_21(%arg0: i32) -> (i32, i32) {
    %c0_i32 = arith.constant 0 : i32
    %c0_i32_0 = arith.constant 0 : i32
    %c0_i32_1 = arith.constant 0 : i32
    return %c0_i32, %c0_i32_0 : i32, i32
  }
  func.func @transform_22(%arg0: i32) -> (i32, i32, i32) {
    %c0_i32 = arith.constant 0 : i32
    %c0_i32_0 = arith.constant 0 : i32
    %c0_i32_1 = arith.constant 0 : i32
    return %arg0, %c0_i32, %c0_i32_0 : i32, i32, i32
  }
}

</mosaic_0001>

<llo_original>
// kernel: gcn_net_forward.1
$region0: #{gcn_net_forward.1}
  #allocation0 [shape = 'u32[]', space=smem, size = 0x4, offset = 0x4, fixed_abs, tag = 'smem constant byte address 0x4 - core index']
  #allocation1 [shape = 'u32[144,128]{1,0:T(1,128)}', space=vmem, size = 0x12000, scoped, tag = 'internal scratch']
  #allocation2 [shape = 'f32[1,1]{1,0:T(1,128)S(1)}', space=vmem, size = 0x200, scoped, tag = 'scoped memory for gcn_net_forward.1']
  %s0 = inlined_call_operand.vmem [shape: bf16[16,256], index: 0, kind: input, shape index: {}]
  %s1 = inlined_call_operand.vmem [shape: bf16[16,256], index: 1, kind: input, shape index: {}]
  %s2 = inlined_call_operand.vmem [shape: s8[256,128], index: 2, kind: input, shape index: {}]
  %s3 = inlined_call_operand.vmem [shape: s8[256,128], index: 3, kind: input, shape index: {}]
  %s4 = inlined_call_operand.vmem [shape: f32[2,16,16], index: 4, kind: input, shape index: {}]
  %s5 = inlined_call_operand.vmem [shape: f32[2,16,16], index: 5, kind: input, shape index: {}]
  %s6 = inlined_call_operand.vmem [shape: f32[2,2,16], index: 6, kind: input, shape index: {}]
  %s7 = inlined_call_operand.vmem [shape: bf16[32,16], index: 7, kind: input, shape index: {}]
  %s8 = inlined_call_operand.vmem [shape: f32[32,1], index: 8, kind: input, shape index: {}]
  %s9 = inlined_call_operand.vmem [shape: bf16[3,32,32], index: 9, kind: input, shape index: {}]
  %s10 = inlined_call_operand.vmem [shape: f32[3,32,1], index: 10, kind: input, shape index: {}]
  %s11 = inlined_call_operand.vmem [shape: f32[3,2,128], index: 11, kind: input, shape index: {}]
  %s12 = inlined_call_operand.vmem [shape: bf16[64,32], index: 12, kind: input, shape index: {}]
  %s13 = inlined_call_operand.vmem [shape: f32[64,1], index: 13, kind: input, shape index: {}]
  %s14 = inlined_call_operand.vmem [shape: bf16[128,16], index: 14, kind: input, shape index: {}]
  %s15 = inlined_call_operand.vmem [shape: bf16[64,64], index: 15, kind: input, shape index: {}]
  %s16 = inlined_call_operand.vmem [shape: bf16[64,16], index: 16, kind: input, shape index: {}]
  %s17 = inlined_call_operand.vmem [shape: f32[64,1], index: 17, kind: input, shape index: {}]
  %s18 = inlined_call_operand.vmem [shape: bf16[1,64,64], index: 18, kind: input, shape index: {}]
  %s19 = inlined_call_operand.vmem [shape: f32[1,64,1], index: 19, kind: input, shape index: {}]
  %s20 = inlined_call_operand.vmem [shape: bf16[1,64], index: 20, kind: input, shape index: {}]
  %s21 = inlined_call_operand.<no memory space> [shape: f32[1,1], index: 21, kind: input, shape index: {}]
  %s22 = inlined_call_operand.vmem [shape: f32[2,1,16], index: 22, kind: output, shape index: {}]
  %s23 = sld [smem:[#allocation0]]
  $region203: #{gcn_net_forward.1} parent=0
    _
  %s25 = ssub.s32 1, %s23
  %s26 = scalar_select 0, %s25, %s23
  %v27 = vstv %s21
  %28 = vst [vmem:[#allocation2] sm:$0x1] %v27
  $region1: #{gcn_net_forward.1} parent=0
    #allocation3 [shape = 'u8[8192]{0}', space=vmem, size = 0x2000, scoped, tag = 'input window, operand 0']
    #allocation4 [shape = 'u8[8192]{0}', space=vmem, size = 0x2000, scoped, tag = 'input window, operand 1']
    loop: start=0, step=1, limit=4
    $region2: #{gcn_net_forward.1} parent=1 // loop_pre_header
      _
    $region3: #{gcn_net_forward.1} parent=1 // loop_header
      %s30 = sphi 0, %s34
      %p31 = scmp.ge.s32.totalorder %s30, 4
      %s40 = sphi 0, %s42
      %s43 = sphi 0, %s40
      %s44 = sphi 0, %s43
      %s60 = sphi 0, %s44
      %s66 = sphi 0, %s68
      %s69 = sphi 0, %s66
      %s70 = sphi 0, %s69
      %s86 = sphi 0, %s70
      %s92 = sphi 0, %s94
      %s95 = sphi 0, %s92
      %s96 = sphi 0, %s95
      %s112 = sphi 0, %s96
      %s118 = sphi 0, %s120
      %s121 = sphi 0, %s118
      %s122 = sphi 0, %s121
      %s138 = sphi 0, %s122
      %s144 = sphi 0, %s146
      %s147 = sphi 0, %s144
      %s148 = sphi 0, %s147
      %s164 = sphi 0, %s148
      %s170 = sphi 0, %s172
      %s173 = sphi 0, %s170
      %s174 = sphi 0, %s173
      %s190 = sphi 0, %s174
      %s196 = sphi 0, %s198
      %s199 = sphi 0, %s196
      %s200 = sphi 0, %s199
      %s216 = sphi 0, %s200
      %s220 = sphi 0, %s220
      %s222 = sphi 0, %s220
      %s223 = sphi 0, %s222
      %s237 = sphi 0, %s223
      %s241 = sphi 0, %s241
      %s243 = sphi 0, %s241
      %s244 = sphi 0, %s243
      %s258 = sphi 0, %s244
      %s262 = sphi 0, %s262
      %s264 = sphi 0, %s262
      %s265 = sphi 0, %s264
      %s279 = sphi 0, %s265
      %s283 = sphi 0, %s283
      %s285 = sphi 0, %s283
      %s286 = sphi 0, %s285
      %s300 = sphi 0, %s286
      %s304 = sphi 0, %s304
      %s306 = sphi 0, %s304
      %s307 = sphi 0, %s306
      %s321 = sphi 0, %s307
      %s325 = sphi 0, %s325
      %s327 = sphi 0, %s325
      %s328 = sphi 0, %s327
      %s342 = sphi 0, %s328
      %s346 = sphi 0, %s346
      %s348 = sphi 0, %s346
      %s349 = sphi 0, %s348
      %s363 = sphi 0, %s349
      %s367 = sphi 0, %s367
      %s369 = sphi 0, %s367
      %s370 = sphi 0, %s369
      %s384 = sphi 0, %s370
      %s388 = sphi 0, %s388
      %s390 = sphi 0, %s388
      %s391 = sphi 0, %s390
      %s405 = sphi 0, %s391
      %s409 = sphi 0, %s409
      %s411 = sphi 0, %s409
      %s412 = sphi 0, %s411
      %s426 = sphi 0, %s412
      %s430 = sphi 0, %s430
      %s432 = sphi 0, %s430
      %s433 = sphi 0, %s432
      %s447 = sphi 0, %s433
      %s451 = sphi 0, %s451
      %s453 = sphi 0, %s451
      %s454 = sphi 0, %s453
      %s468 = sphi 0, %s454
      %s472 = sphi 0, %s472
      %s474 = sphi 0, %s472
      %s475 = sphi 0, %s474
      %s489 = sphi 0, %s475
      %s493 = sphi 0, %s493
      %s495 = sphi 0, %s493
      %s496 = sphi 0, %s495
      %s510 = sphi 0, %s496
      %s514 = sphi 0, %s514
      %s516 = sphi 0, %s514
      %s517 = sphi 0, %s516
      %s531 = sphi 0, %s517
      %s537 = sphi 0, %s539
      %s540 = sphi 0, %s537
      %s541 = sphi 0, %s540
      %s557 = sphi 0, %s541
    $region4: #{gcn_net_forward.1} parent=1 // loop_header_branch
      %33 = sbr.rel (%p31) target = $region8
    $region5: #{gcn_net_forward.1} parent=1 // loop_body
      %s35 = ssub.s32 %s30, 1
      %s36 = ssub.s32 %s30, 2
      %s37 = sadd.s32 %s30, 1
      %s38 = ssub.s32 %s30, %s37
      %p39 = scmp.eq.s32.totalorder %s38, 0
      %s41 = sadd.s32 %s40, 1
      %s42 = scalar_select %p39, %s40, %s41
      %p45 = pneg %p39
      %p46 = scmp.eq.s32.totalorder %s30, 1
      %p47 = por %p45, %p46
      %p48 = scmp.ne.s32.totalorder %s40, %s43
      %p49 = scmp.eq.s32.totalorder %s30, 0
      %p50 = por %p48, %p49
      %p51 = scmp.ne.s32.totalorder %s40, %s43
      %p52 = scmp.eq.s32.totalorder %s35, 1
      %p53 = por %p51, %p52
      %p54 = scmp.ne.s32.totalorder %s43, %s44
      %p55 = scmp.eq.s32.totalorder %s35, 0
      %p56 = por %p54, %p55
      %p57 = scmp.ne.s32.totalorder %s43, %s44
      %p58 = scmp.eq.s32.totalorder %s36, 1
      %p59 = por %p57, %p58
      %p61 = scmp.ne.s32.totalorder %s44, %s60
      %p62 = scmp.eq.s32.totalorder %s36, 0
      %p63 = por %p61, %p62
      %s64 = ssub.s32 %s30, %s37
      %p65 = scmp.eq.s32.totalorder %s64, 0
      %s67 = sadd.s32 %s66, 1
      %s68 = scalar_select %p65, %s66, %s67
      %p71 = pneg %p65
      %p72 = scmp.eq.s32.totalorder %s30, 1
      %p73 = por %p71, %p72
      %p74 = scmp.ne.s32.totalorder %s66, %s69
      %p75 = scmp.eq.s32.totalorder %s30, 0
      %p76 = por %p74, %p75
      %p77 = scmp.ne.s32.totalorder %s66, %s69
      %p78 = scmp.eq.s32.totalorder %s35, 1
      %p79 = por %p77, %p78
      %p80 = scmp.ne.s32.totalorder %s69, %s70
      %p81 = scmp.eq.s32.totalorder %s35, 0
      %p82 = por %p80, %p81
      %p83 = scmp.ne.s32.totalorder %s69, %s70
      %p84 = scmp.eq.s32.totalorder %s36, 1
      %p85 = por %p83, %p84
      %p87 = scmp.ne.s32.totalorder %s70, %s86
      %p88 = scmp.eq.s32.totalorder %s36, 0
      %p89 = por %p87, %p88
      %s90 = ssub.s32 %s30, %s37
      %p91 = scmp.eq.s32.totalorder %s90, 0
      %s93 = sadd.s32 %s92, 1
      %s94 = scalar_select %p91, %s92, %s93
      %p97 = pneg %p91
      %p98 = scmp.eq.s32.totalorder %s30, 1
      %p99 = por %p97, %p98
      %p100 = scmp.ne.s32.totalorder %s92, %s95
      %p101 = scmp.eq.s32.totalorder %s30, 0
      %p102 = por %p100, %p101
      %p103 = scmp.ne.s32.totalorder %s92, %s95
      %p104 = scmp.eq.s32.totalorder %s35, 1
      %p105 = por %p103, %p104
      %p106 = scmp.ne.s32.totalorder %s95, %s96
      %p107 = scmp.eq.s32.totalorder %s35, 0
      %p108 = por %p106, %p107
      %p109 = scmp.ne.s32.totalorder %s95, %s96
      %p110 = scmp.eq.s32.totalorder %s36, 1
      %p111 = por %p109, %p110
      %p113 = scmp.ne.s32.totalorder %s96, %s112
      %p114 = scmp.eq.s32.totalorder %s36, 0
      %p115 = por %p113, %p114
      %s116 = ssub.s32 %s30, %s37
      %p117 = scmp.eq.s32.totalorder %s116, 0
      %s119 = sadd.s32 %s118, 1
      %s120 = scalar_select %p117, %s118, %s119
      %p123 = pneg %p117
      %p124 = scmp.eq.s32.totalorder %s30, 1
      %p125 = por %p123, %p124
      %p126 = scmp.ne.s32.totalorder %s118, %s121
      %p127 = scmp.eq.s32.totalorder %s30, 0
      %p128 = por %p126, %p127
      %p129 = scmp.ne.s32.totalorder %s118, %s121
      %p130 = scmp.eq.s32.totalorder %s35, 1
      %p131 = por %p129, %p130
      %p132 = scmp.ne.s32.totalorder %s121, %s122
      %p133 = scmp.eq.s32.totalorder %s35, 0
      %p134 = por %p132, %p133
      %p135 = scmp.ne.s32.totalorder %s121, %s122
      %p136 = scmp.eq.s32.totalorder %s36, 1
      %p137 = por %p135, %p136
      %p139 = scmp.ne.s32.totalorder %s122, %s138
      %p140 = scmp.eq.s32.totalorder %s36, 0
      %p141 = por %p139, %p140
      %s142 = ssub.s32 %s30, %s37
      %p143 = scmp.eq.s32.totalorder %s142, 0
      %s145 = sadd.s32 %s144, 1
      %s146 = scalar_select %p143, %s144, %s145
      %p149 = pneg %p143
      %p150 = scmp.eq.s32.totalorder %s30, 1
      %p151 = por %p149, %p150
      %p152 = scmp.ne.s32.totalorder %s144, %s147
      %p153 = scmp.eq.s32.totalorder %s30, 0
      %p154 = por %p152, %p153
      %p155 = scmp.ne.s32.totalorder %s144, %s147
      %p156 = scmp.eq.s32.totalorder %s35, 1
      %p157 = por %p155, %p156
      %p158 = scmp.ne.s32.totalorder %s147, %s148
      %p159 = scmp.eq.s32.totalorder %s35, 0
      %p160 = por %p158, %p159
      %p161 = scmp.ne.s32.totalorder %s147, %s148
      %p162 = scmp.eq.s32.totalorder %s36, 1
      %p163 = por %p161, %p162
      %p165 = scmp.ne.s32.totalorder %s148, %s164
      %p166 = scmp.eq.s32.totalorder %s36, 0
      %p167 = por %p165, %p166
      %s168 = ssub.s32 %s30, %s37
      %p169 = scmp.eq.s32.totalorder %s168, 0
      %s171 = sadd.s32 %s170, 1
      %s172 = scalar_select %p169, %s170, %s171
      %p175 = pneg %p169
      %p176 = scmp.eq.s32.totalorder %s30, 1
      %p177 = por %p175, %p176
      %p178 = scmp.ne.s32.totalorder %s170, %s173
      %p179 = scmp.eq.s32.totalorder %s30, 0
      %p180 = por %p178, %p179
      %p181 = scmp.ne.s32.totalorder %s170, %s173
      %p182 = scmp.eq.s32.totalorder %s35, 1
      %p183 = por %p181, %p182
      %p184 = scmp.ne.s32.totalorder %s173, %s174
      %p185 = scmp.eq.s32.totalorder %s35, 0
      %p186 = por %p184, %p185
      %p187 = scmp.ne.s32.totalorder %s173, %s174
      %p188 = scmp.eq.s32.totalorder %s36, 1
      %p189 = por %p187, %p188
      %p191 = scmp.ne.s32.totalorder %s174, %s190
      %p192 = scmp.eq.s32.totalorder %s36, 0
      %p193 = por %p191, %p192
      %s194 = ssub.s32 %s30, %s37
      %p195 = scmp.eq.s32.totalorder %s194, 0
      %s197 = sadd.s32 %s196, 1
      %s198 = scalar_select %p195, %s196, %s197
      %p201 = pneg %p195
      %p202 = scmp.eq.s32.totalorder %s30, 1
      %p203 = por %p201, %p202
      %p204 = scmp.ne.s32.totalorder %s196, %s199
      %p205 = scmp.eq.s32.totalorder %s30, 0
      %p206 = por %p204, %p205
      %p207 = scmp.ne.s32.totalorder %s196, %s199
      %p208 = scmp.eq.s32.totalorder %s35, 1
      %p209 = por %p207, %p208
      %p210 = scmp.ne.s32.totalorder %s199, %s200
      %p211 = scmp.eq.s32.totalorder %s35, 0
      %p212 = por %p210, %p211
      %p213 = scmp.ne.s32.totalorder %s199, %s200
      %p214 = scmp.eq.s32.totalorder %s36, 1
      %p215 = por %p213, %p214
      %p217 = scmp.ne.s32.totalorder %s200, %s216
      %p218 = scmp.eq.s32.totalorder %s36, 0
      %p219 = por %p217, %p218
      %s221 = sadd.s32 %s220, 1
      %p224 = scmp.eq.s32.totalorder %s30, 1
      %p225 = scmp.ne.s32.totalorder %s220, %s222
      %p226 = scmp.eq.s32.totalorder %s30, 0
      %p227 = por %p225, %p226
      %p228 = scmp.ne.s32.totalorder %s220, %s222
      %p229 = scmp.eq.s32.totalorder %s35, 1
      %p230 = por %p228, %p229
      %p231 = scmp.ne.s32.totalorder %s222, %s223
      %p232 = scmp.eq.s32.totalorder %s35, 0
      %p233 = por %p231, %p232
      %p234 = scmp.ne.s32.totalorder %s222, %s223
      %p235 = scmp.eq.s32.totalorder %s36, 1
      %p236 = por %p234, %p235
      %p238 = scmp.ne.s32.totalorder %s223, %s237
      %p239 = scmp.eq.s32.totalorder %s36, 0
      %p240 = por %p238, %p239
      %s242 = sadd.s32 %s241, 1
      %p245 = scmp.eq.s32.totalorder %s30, 1
      %p246 = scmp.ne.s32.totalorder %s241, %s243
      %p247 = scmp.eq.s32.totalorder %s30, 0
      %p248 = por %p246, %p247
      %p249 = scmp.ne.s32.totalorder %s241, %s243
      %p250 = scmp.eq.s32.totalorder %s35, 1
      %p251 = por %p249, %p250
      %p252 = scmp.ne.s32.totalorder %s243, %s244
      %p253 = scmp.eq.s32.totalorder %s35, 0
      %p254 = por %p252, %p253
      %p255 = scmp.ne.s32.totalorder %s243, %s244
      %p256 = scmp.eq.s32.totalorder %s36, 1
      %p257 = por %p255, %p256
      %p259 = scmp.ne.s32.totalorder %s244, %s258
      %p260 = scmp.eq.s32.totalorder %s36, 0
      %p261 = por %p259, %p260
      %s263 = sadd.s32 %s262, 1
      %p266 = scmp.eq.s32.totalorder %s30, 1
      %p267 = scmp.ne.s32.totalorder %s262, %s264
      %p268 = scmp.eq.s32.totalorder %s30, 0
      %p269 = por %p267, %p268
      %p270 = scmp.ne.s32.totalorder %s262, %s264
      %p271 = scmp.eq.s32.totalorder %s35, 1
      %p272 = por %p270, %p271
      %p273 = scmp.ne.s32.totalorder %s264, %s265
      %p274 = scmp.eq.s32.totalorder %s35, 0
      %p275 = por %p273, %p274
      %p276 = scmp.ne.s32.totalorder %s264, %s265
      %p277 = scmp.eq.s32.totalorder %s36, 1
      %p278 = por %p276, %p277
      %p280 = scmp.ne.s32.totalorder %s265, %s279
      %p281 = scmp.eq.s32.totalorder %s36, 0
      %p282 = por %p280, %p281
      %s284 = sadd.s32 %s283, 1
      %p287 = scmp.eq.s32.totalorder %s30, 1
      %p288 = scmp.ne.s32.totalorder %s283, %s285
      %p289 = scmp.eq.s32.totalorder %s30, 0
      %p290 = por %p288, %p289
      %p291 = scmp.ne.s32.totalorder %s283, %s285
      %p292 = scmp.eq.s32.totalorder %s35, 1
      %p293 = por %p291, %p292
      %p294 = scmp.ne.s32.totalorder %s285, %s286
      %p295 = scmp.eq.s32.totalorder %s35, 0
      %p296 = por %p294, %p295
      %p297 = scmp.ne.s32.totalorder %s285, %s286
      %p298 = scmp.eq.s32.totalorder %s36, 1
      %p299 = por %p297, %p298
      %p301 = scmp.ne.s32.totalorder %s286, %s300
      %p302 = scmp.eq.s32.totalorder %s36, 0
      %p303 = por %p301, %p302
      %s305 = sadd.s32 %s304, 1
      %p308 = scmp.eq.s32.totalorder %s30, 1
      %p309 = scmp.ne.s32.totalorder %s304, %s306
      %p310 = scmp.eq.s32.totalorder %s30, 0
      %p311 = por %p309, %p310
      %p312 = scmp.ne.s32.totalorder %s304, %s306
      %p313 = scmp.eq.s32.totalorder %s35, 1
      %p314 = por %p312, %p313
      %p315 = scmp.ne.s32.totalorder %s306, %s307
      %p316 = scmp.eq.s32.totalorder %s35, 0
      %p317 = por %p315, %p316
      %p318 = scmp.ne.s32.totalorder %s306, %s307
      %p319 = scmp.eq.s32.totalorder %s36, 1
      %p320 = por %p318, %p319
      %p322 = scmp.ne.s32.totalorder %s307, %s321
      %p323 = scmp.eq.s32.totalorder %s36, 0
      %p324 = por %p322, %p323
      %s326 = sadd.s32 %s325, 1
      %p329 = scmp.eq.s32.totalorder %s30, 1
      %p330 = scmp.ne.s32.totalorder %s325, %s327
      %p331 = scmp.eq.s32.totalorder %s30, 0
      %p332 = por %p330, %p331
      %p333 = scmp.ne.s32.totalorder %s325, %s327
      %p334 = scmp.eq.s32.totalorder %s35, 1
      %p335 = por %p333, %p334
      %p336 = scmp.ne.s32.totalorder %s327, %s328
      %p337 = scmp.eq.s32.totalorder %s35, 0
      %p338 = por %p336, %p337
      %p339 = scmp.ne.s32.totalorder %s327, %s328
      %p340 = scmp.eq.s32.totalorder %s36, 1
      %p341 = por %p339, %p340
      %p343 = scmp.ne.s32.totalorder %s328, %s342
      %p344 = scmp.eq.s32.totalorder %s36, 0
      %p345 = por %p343, %p344
      %s347 = sadd.s32 %s346, 1
      %p350 = scmp.eq.s32.totalorder %s30, 1
      %p351 = scmp.ne.s32.totalorder %s346, %s348
      %p352 = scmp.eq.s32.totalorder %s30, 0
      %p353 = por %p351, %p352
      %p354 = scmp.ne.s32.totalorder %s346, %s348
      %p355 = scmp.eq.s32.totalorder %s35, 1
      %p356 = por %p354, %p355
      %p357 = scmp.ne.s32.totalorder %s348, %s349
      %p358 = scmp.eq.s32.totalorder %s35, 0
      %p359 = por %p357, %p358
      %p360 = scmp.ne.s32.totalorder %s348, %s349
      %p361 = scmp.eq.s32.totalorder %s36, 1
      %p362 = por %p360, %p361
      %p364 = scmp.ne.s32.totalorder %s349, %s363
      %p365 = scmp.eq.s32.totalorder %s36, 0
      %p366 = por %p364, %p365
      %s368 = sadd.s32 %s367, 1
      %p371 = scmp.eq.s32.totalorder %s30, 1
      %p372 = scmp.ne.s32.totalorder %s367, %s369
      %p373 = scmp.eq.s32.totalorder %s30, 0
      %p374 = por %p372, %p373
      %p375 = scmp.ne.s32.totalorder %s367, %s369
      %p376 = scmp.eq.s32.totalorder %s35, 1
      %p377 = por %p375, %p376
      %p378 = scmp.ne.s32.totalorder %s369, %s370
      %p379 = scmp.eq.s32.totalorder %s35, 0
      %p380 = por %p378, %p379
      %p381 = scmp.ne.s32.totalorder %s369, %s370
      %p382 = scmp.eq.s32.totalorder %s36, 1
      %p383 = por %p381, %p382
      %p385 = scmp.ne.s32.totalorder %s370, %s384
      %p386 = scmp.eq.s32.totalorder %s36, 0
      %p387 = por %p385, %p386
      %s389 = sadd.s32 %s388, 1
      %p392 = scmp.eq.s32.totalorder %s30, 1
      %p393 = scmp.ne.s32.totalorder %s388, %s390
      %p394 = scmp.eq.s32.totalorder %s30, 0
      %p395 = por %p393, %p394
      %p396 = scmp.ne.s32.totalorder %s388, %s390
      %p397 = scmp.eq.s32.totalorder %s35, 1
      %p398 = por %p396, %p397
      %p399 = scmp.ne.s32.totalorder %s390, %s391
      %p400 = scmp.eq.s32.totalorder %s35, 0
      %p401 = por %p399, %p400
      %p402 = scmp.ne.s32.totalorder %s390, %s391
      %p403 = scmp.eq.s32.totalorder %s36, 1
      %p404 = por %p402, %p403
      %p406 = scmp.ne.s32.totalorder %s391, %s405
      %p407 = scmp.eq.s32.totalorder %s36, 0
      %p408 = por %p406, %p407
      %s410 = sadd.s32 %s409, 1
      %p413 = scmp.eq.s32.totalorder %s30, 1
      %p414 = scmp.ne.s32.totalorder %s409, %s411
      %p415 = scmp.eq.s32.totalorder %s30, 0
      %p416 = por %p414, %p415
      %p417 = scmp.ne.s32.totalorder %s409, %s411
      %p418 = scmp.eq.s32.totalorder %s35, 1
      %p419 = por %p417, %p418
      %p420 = scmp.ne.s32.totalorder %s411, %s412
      %p421 = scmp.eq.s32.totalorder %s35, 0
      %p422 = por %p420, %p421
      %p423 = scmp.ne.s32.totalorder %s411, %s412
      %p424 = scmp.eq.s32.totalorder %s36, 1
      %p425 = por %p423, %p424
      %p427 = scmp.ne.s32.totalorder %s412, %s426
      %p428 = scmp.eq.s32.totalorder %s36, 0
      %p429 = por %p427, %p428
      %s431 = sadd.s32 %s430, 1
      %p434 = scmp.eq.s32.totalorder %s30, 1
      %p435 = scmp.ne.s32.totalorder %s430, %s432
      %p436 = scmp.eq.s32.totalorder %s30, 0
      %p437 = por %p435, %p436
      %p438 = scmp.ne.s32.totalorder %s430, %s432
      %p439 = scmp.eq.s32.totalorder %s35, 1
      %p440 = por %p438, %p439
      %p441 = scmp.ne.s32.totalorder %s432, %s433
      %p442 = scmp.eq.s32.totalorder %s35, 0
      %p443 = por %p441, %p442
      %p444 = scmp.ne.s32.totalorder %s432, %s433
      %p445 = scmp.eq.s32.totalorder %s36, 1
      %p446 = por %p444, %p445
      %p448 = scmp.ne.s32.totalorder %s433, %s447
      %p449 = scmp.eq.s32.totalorder %s36, 0
      %p450 = por %p448, %p449
      %s452 = sadd.s32 %s451, 1
      %p455 = scmp.eq.s32.totalorder %s30, 1
      %p456 = scmp.ne.s32.totalorder %s451, %s453
      %p457 = scmp.eq.s32.totalorder %s30, 0
      %p458 = por %p456, %p457
      %p459 = scmp.ne.s32.totalorder %s451, %s453
      %p460 = scmp.eq.s32.totalorder %s35, 1
      %p461 = por %p459, %p460
      %p462 = scmp.ne.s32.totalorder %s453, %s454
      %p463 = scmp.eq.s32.totalorder %s35, 0
      %p464 = por %p462, %p463
      %p465 = scmp.ne.s32.totalorder %s453, %s454
      %p466 = scmp.eq.s32.totalorder %s36, 1
      %p467 = por %p465, %p466
      %p469 = scmp.ne.s32.totalorder %s454, %s468
      %p470 = scmp.eq.s32.totalorder %s36, 0
      %p471 = por %p469, %p470
      %s473 = sadd.s32 %s472, 1
      %p476 = scmp.eq.s32.totalorder %s30, 1
      %p477 = scmp.ne.s32.totalorder %s472, %s474
      %p478 = scmp.eq.s32.totalorder %s30, 0
      %p479 = por %p477, %p478
      %p480 = scmp.ne.s32.totalorder %s472, %s474
      %p481 = scmp.eq.s32.totalorder %s35, 1
      %p482 = por %p480, %p481
      %p483 = scmp.ne.s32.totalorder %s474, %s475
      %p484 = scmp.eq.s32.totalorder %s35, 0
      %p485 = por %p483, %p484
      %p486 = scmp.ne.s32.totalorder %s474, %s475
      %p487 = scmp.eq.s32.totalorder %s36, 1
      %p488 = por %p486, %p487
      %p490 = scmp.ne.s32.totalorder %s475, %s489
      %p491 = scmp.eq.s32.totalorder %s36, 0
      %p492 = por %p490, %p491
      %s494 = sadd.s32 %s493, 1
      %p497 = scmp.eq.s32.totalorder %s30, 1
      %p498 = scmp.ne.s32.totalorder %s493, %s495
      %p499 = scmp.eq.s32.totalorder %s30, 0
      %p500 = por %p498, %p499
      %p501 = scmp.ne.s32.totalorder %s493, %s495
      %p502 = scmp.eq.s32.totalorder %s35, 1
      %p503 = por %p501, %p502
      %p504 = scmp.ne.s32.totalorder %s495, %s496
      %p505 = scmp.eq.s32.totalorder %s35, 0
      %p506 = por %p504, %p505
      %p507 = scmp.ne.s32.totalorder %s495, %s496
      %p508 = scmp.eq.s32.totalorder %s36, 1
      %p509 = por %p507, %p508
      %p511 = scmp.ne.s32.totalorder %s496, %s510
      %p512 = scmp.eq.s32.totalorder %s36, 0
      %p513 = por %p511, %p512
      %s515 = sadd.s32 %s514, 1
      %p518 = scmp.eq.s32.totalorder %s30, 1
      %p519 = scmp.ne.s32.totalorder %s514, %s516
      %p520 = scmp.eq.s32.totalorder %s30, 0
      %p521 = por %p519, %p520
      %p522 = scmp.ne.s32.totalorder %s514, %s516
      %p523 = scmp.eq.s32.totalorder %s35, 1
      %p524 = por %p522, %p523
      %p525 = scmp.ne.s32.totalorder %s516, %s517
      %p526 = scmp.eq.s32.totalorder %s35, 0
      %p527 = por %p525, %p526
      %p528 = scmp.ne.s32.totalorder %s516, %s517
      %p529 = scmp.eq.s32.totalorder %s36, 1
      %p530 = por %p528, %p529
      %p532 = scmp.ne.s32.totalorder %s517, %s531
      %p533 = scmp.eq.s32.totalorder %s36, 0
      %p534 = por %p532, %p533
      %s535 = ssub.s32 %s30, %s37
      %p536 = scmp.eq.s32.totalorder %s535, 0
      %s538 = sadd.s32 %s537, 1
      %s539 = scalar_select %p536, %s537, %s538
      %p542 = pneg %p536
      %p543 = scmp.eq.s32.totalorder %s30, 1
      %p544 = por %p542, %p543
      %p545 = scmp.ne.s32.totalorder %s537, %s540
      %p546 = scmp.eq.s32.totalorder %s30, 0
      %p547 = por %p545, %p546
      %p548 = scmp.ne.s32.totalorder %s537, %s540
      %p549 = scmp.eq.s32.totalorder %s35, 1
      %p550 = por %p548, %p549
      %p551 = scmp.ne.s32.totalorder %s540, %s541
      %p552 = scmp.eq.s32.totalorder %s35, 0
      %p553 = por %p551, %p552
      %p554 = scmp.ne.s32.totalorder %s540, %s541
      %p555 = scmp.eq.s32.totalorder %s36, 1
      %p556 = por %p554, %p555
      %p558 = scmp.ne.s32.totalorder %s541, %s557
      %p559 = scmp.eq.s32.totalorder %s36, 0
      %p560 = por %p558, %p559
      %p561 = scmp.le.s32.totalorder 1, %s30
      %p562 = scmp.lt.s32.totalorder %s30, 3
      %p563 = pnand %p561, %p562
      %p564 = pneg %p563
      // Predicated region
      $region9: #{gcn_net_forward.1} parent=5 // pred_check
        _
      $region10: #{gcn_net_forward.1} parent=5 // pred_check_branch
        %566 = sbr.rel (%p563) target = $region12
      $region11: #{gcn_net_forward.1} parent=5 // pred_region
        %s567 = ssub.s32 %s30, 1
        // Predicated region
        $region13: #{gcn_net_forward.1} parent=11 // pred_check
          %p568 = pneg %p233
        $region14: #{gcn_net_forward.1} parent=11 // pred_check_branch
          %570 = sbr.rel (%p568) target = $region16
        $region15: #{gcn_net_forward.1} parent=11 // pred_region
          _
        $region16: #{gcn_net_forward.1} parent=11 // pred_fallthru
          _
        // Predicated region
        $region17: #{gcn_net_forward.1} parent=11 // pred_check
          %p571 = pneg %p254
        $region18: #{gcn_net_forward.1} parent=11 // pred_check_branch
          %573 = sbr.rel (%p571) target = $region20
        $region19: #{gcn_net_forward.1} parent=11 // pred_region
          _
        $region20: #{gcn_net_forward.1} parent=11 // pred_fallthru
          _
        // Predicated region
        $region21: #{gcn_net_forward.1} parent=11 // pred_check
          %p574 = pneg %p275
        $region22: #{gcn_net_forward.1} parent=11 // pred_check_branch
          %576 = sbr.rel (%p574) target = $region24
        $region23: #{gcn_net_forward.1} parent=11 // pred_region
          _
        $region24: #{gcn_net_forward.1} parent=11 // pred_fallthru
          _
        // Predicated region
        $region25: #{gcn_net_forward.1} parent=11 // pred_check
          %p577 = pneg %p296
        $region26: #{gcn_net_forward.1} parent=11 // pred_check_branch
          %579 = sbr.rel (%p577) target = $region28
        $region27: #{gcn_net_forward.1} parent=11 // pred_region
          _
        $region28: #{gcn_net_forward.1} parent=11 // pred_fallthru
          _
        // Predicated region
        $region29: #{gcn_net_forward.1} parent=11 // pred_check
          %p580 = pneg %p317
        $region30: #{gcn_net_forward.1} parent=11 // pred_check_branch
          %582 = sbr.rel (%p580) target = $region32
        $region31: #{gcn_net_forward.1} parent=11 // pred_region
          _
        $region32: #{gcn_net_forward.1} parent=11 // pred_fallthru
          _
        // Predicated region
        $region33: #{gcn_net_forward.1} parent=11 // pred_check
          %p583 = pneg %p338
        $region34: #{gcn_net_forward.1} parent=11 // pred_check_branch
          %585 = sbr.rel (%p583) target = $region36
        $region35: #{gcn_net_forward.1} parent=11 // pred_region
          _
        $region36: #{gcn_net_forward.1} parent=11 // pred_fallthru
          _
        // Predicated region
        $region37: #{gcn_net_forward.1} parent=11 // pred_check
          %p586 = pneg %p359
        $region38: #{gcn_net_forward.1} parent=11 // pred_check_branch
          %588 = sbr.rel (%p586) target = $region40
        $region39: #{gcn_net_forward.1} parent=11 // pred_region
          _
        $region40: #{gcn_net_forward.1} parent=11 // pred_fallthru
          _
        // Predicated region
        $region41: #{gcn_net_forward.1} parent=11 // pred_check
          %p589 = pneg %p380
        $region42: #{gcn_net_forward.1} parent=11 // pred_check_branch
          %591 = sbr.rel (%p589) target = $region44
        $region43: #{gcn_net_forward.1} parent=11 // pred_region
          _
        $region44: #{gcn_net_forward.1} parent=11 // pred_fallthru
          _
        // Predicated region
        $region45: #{gcn_net_forward.1} parent=11 // pred_check
          %p592 = pneg %p401
        $region46: #{gcn_net_forward.1} parent=11 // pred_check_branch
          %594 = sbr.rel (%p592) target = $region48
        $region47: #{gcn_net_forward.1} parent=11 // pred_region
          _
        $region48: #{gcn_net_forward.1} parent=11 // pred_fallthru
          _
        // Predicated region
        $region49: #{gcn_net_forward.1} parent=11 // pred_check
          %p595 = pneg %p422
        $region50: #{gcn_net_forward.1} parent=11 // pred_check_branch
          %597 = sbr.rel (%p595) target = $region52
        $region51: #{gcn_net_forward.1} parent=11 // pred_region
          _
        $region52: #{gcn_net_forward.1} parent=11 // pred_fallthru
          _
        // Predicated region
        $region53: #{gcn_net_forward.1} parent=11 // pred_check
          %p598 = pneg %p443
        $region54: #{gcn_net_forward.1} parent=11 // pred_check_branch
          %600 = sbr.rel (%p598) target = $region56
        $region55: #{gcn_net_forward.1} parent=11 // pred_region
          _
        $region56: #{gcn_net_forward.1} parent=11 // pred_fallthru
          _
        // Predicated region
        $region57: #{gcn_net_forward.1} parent=11 // pred_check
          %p601 = pneg %p464
        $region58: #{gcn_net_forward.1} parent=11 // pred_check_branch
          %603 = sbr.rel (%p601) target = $region60
        $region59: #{gcn_net_forward.1} parent=11 // pred_region
          _
        $region60: #{gcn_net_forward.1} parent=11 // pred_fallthru
          _
        // Predicated region
        $region61: #{gcn_net_forward.1} parent=11 // pred_check
          %p604 = pneg %p485
        $region62: #{gcn_net_forward.1} parent=11 // pred_check_branch
          %606 = sbr.rel (%p604) target = $region64
        $region63: #{gcn_net_forward.1} parent=11 // pred_region
          _
        $region64: #{gcn_net_forward.1} parent=11 // pred_fallthru
          _
        // Predicated region
        $region65: #{gcn_net_forward.1} parent=11 // pred_check
          %p607 = pneg %p506
        $region66: #{gcn_net_forward.1} parent=11 // pred_check_branch
          %609 = sbr.rel (%p607) target = $region68
        $region67: #{gcn_net_forward.1} parent=11 // pred_region
          _
        $region68: #{gcn_net_forward.1} parent=11 // pred_fallthru
          _
        // Predicated region
        $region69: #{gcn_net_forward.1} parent=11 // pred_check
          %p610 = pneg %p527
        $region70: #{gcn_net_forward.1} parent=11 // pred_check_branch
          %612 = sbr.rel (%p610) target = $region72
        $region71: #{gcn_net_forward.1} parent=11 // pred_region
          _
        $region72: #{gcn_net_forward.1} parent=11 // pred_fallthru
          _
      $region12: #{gcn_net_forward.1} parent=5 // pred_fallthru
        _
      %p613 = scmp.lt.s32.totalorder %s30, 2
      // Predicated region
      $region73: #{gcn_net_forward.1} parent=5 // pred_check
        %p614 = pneg %p613
      $region74: #{gcn_net_forward.1} parent=5 // pred_check_branch
        %616 = sbr.rel (%p614) target = $region76
      $region75: #{gcn_net_forward.1} parent=5 // pred_region
        // Predicated region
        $region77: #{gcn_net_forward.1} parent=75 // pred_check
          %p617 = pneg %p50
        $region78: #{gcn_net_forward.1} parent=75 // pred_check_branch
          %619 = sbr.rel (%p617) target = $region80
        $region79: #{gcn_net_forward.1} parent=75 // pred_region
          %s620 = sand.u32 %s40, 1
          %s621 = sand.u32 %s40, 1
          %s622 = smul.addr %s621, 8
          %s623 = scalar_lea.vmem [#allocation3], %s622
          %s624 = smul.addr %s30, 4
          %s625 = scalar_lea.vmem %s0, %s624
          // Predicated region
          $region81: #{gcn_net_forward.1} parent=79 // pred_check
            _
          $region82: #{gcn_net_forward.1} parent=79 // pred_check_branch
            %627 = sbr.rel (0) target = $region84
          $region83: #{gcn_net_forward.1} parent=79 // pred_region
            // Predicated region
            $region85: #{gcn_net_forward.1} parent=83 // pred_check
              _
            $region86: #{gcn_net_forward.1} parent=83 // pred_check_branch
              %629 = sbr.rel target = $region88
            $region87: #{gcn_net_forward.1} parent=83 // pred_region
              // Predicated region
              $region100: #{gcn_net_forward.1} parent=87 // pred_check
                _
              $region101: #{gcn_net_forward.1} parent=87 // pred_check_branch
                %646 = sbr.rel (0) target = $region103
              $region102: #{gcn_net_forward.1} parent=87 // pred_region
                loop: start=0, step=1, limit=1
                $region104: #{gcn_net_forward.1} parent=102 // loop_pre_header
                  _
                $region105: #{gcn_net_forward.1} parent=102 // loop_header
                  %s648 = sphi 0, %s652
                  %p649 = scmp.ge.s32.totalorder %s648, 1
                  %s653 = sphi %s625, %s625
                  %s654 = sphi %s623, %s623
                $region106: #{gcn_net_forward.1} parent=102 // loop_header_branch
                  %651 = sbr.rel (%p649) target = $region110
                $region107: #{gcn_net_forward.1} parent=102 // loop_body
                  _
                $region108: #{gcn_net_forward.1} parent=102 // loop_footer
                  %s652 = sadd.s32 1, %s648
                $region109: #{gcn_net_forward.1} parent=102 // loop_footer_branch
                  %647 = sbr.rel target = $region105
                $region110: #{gcn_net_forward.1} parent=102 // loop_exit
                  _
                loop: start=0, step=1, limit=1
                $region111: #{gcn_net_forward.1} parent=102 // loop_pre_header
                  _
                $region112: #{gcn_net_forward.1} parent=102 // loop_header
                  %s657 = sphi 0, %s661
                  %p658 = scmp.ge.s32.totalorder %s657, 1
                  %s662 = sphi %s625, %s625
                  %s663 = sphi %s623, %s623
                $region113: #{gcn_net_forward.1} parent=102 // loop_header_branch
                  %660 = sbr.rel (%p658) target = $region117
                $region114: #{gcn_net_forward.1} parent=102 // loop_body
                  %v664 = vld [vmem:[%s662] sm:$0xf]
                  %665 = vst [vmem:[%s663] sm:$0xf] %v664
                  %v666 = vld [vmem:[%s662 + $0x8] sm:$0xf]
                  %667 = vst [vmem:[%s663 + $0x4] sm:$0xf] %v666
                $region115: #{gcn_net_forward.1} parent=102 // loop_footer
                  %s661 = sadd.s32 1, %s657
                $region116: #{gcn_net_forward.1} parent=102 // loop_footer_branch
                  %656 = sbr.rel target = $region112
                $region117: #{gcn_net_forward.1} parent=102 // loop_exit
                  _
              $region103: #{gcn_net_forward.1} parent=87 // pred_fallthru
                _
            $region88: #{gcn_net_forward.1} parent=83 // pred_fallthru
              _
            // Predicated region
            $region89: #{gcn_net_forward.1} parent=83 // pred_check
              _
            $region90: #{gcn_net_forward.1} parent=83 // pred_check_branch
              %631 = sbr.rel (0) target = $region92
            $region91: #{gcn_net_forward.1} parent=83 // pred_region
              loop: start=0, step=1, limit=1
              $region93: #{gcn_net_forward.1} parent=91 // loop_pre_header
                _
              $region94: #{gcn_net_forward.1} parent=91 // loop_header
                %s634 = sphi 0, %s638
                %p635 = scmp.ge.s32.totalorder %s634, 1
                %s639 = sphi %s625, %s625
                %s640 = sphi %s623, %s623
              $region95: #{gcn_net_forward.1} parent=91 // loop_header_branch
                %637 = sbr.rel (%p635) target = $region99
              $region96: #{gcn_net_forward.1} parent=91 // loop_body
                %v641 = vld [vmem:[%s639] sm:$0xf]
                %642 = vst [vmem:[%s640] sm:$0xf] %v641
                %v643 = vld [vmem:[%s639 + $0x8] sm:$0xf]
                %644 = vst [vmem:[%s640 + $0x4] sm:$0xf] %v643
              $region97: #{gcn_net_forward.1} parent=91 // loop_footer
                %s638 = sadd.s32 1, %s634
              $region98: #{gcn_net_forward.1} parent=91 // loop_footer_branch
                %633 = sbr.rel target = $region94
              $region99: #{gcn_net_forward.1} parent=91 // loop_exit
                _
            $region92: #{gcn_net_forward.1} parent=83 // pred_fallthru
              _
          $region84: #{gcn_net_forward.1} parent=79 // pred_fallthru
            _
          %668 = vnop
        $region80: #{gcn_net_forward.1} parent=75 // pred_fallthru
          _
        // Predicated region
        $region118: #{gcn_net_forward.1} parent=75 // pred_check
          %p669 = pneg %p76
        $region119: #{gcn_net_forward.1} parent=75 // pred_check_branch
          %671 = sbr.rel (%p669) target = $region121
        $region120: #{gcn_net_forward.1} parent=75 // pred_region
          %s672 = sand.u32 %s66, 1
          %s673 = sand.u32 %s66, 1
          %s674 = smul.addr %s673, 8
          %s675 = scalar_lea.vmem [#allocation4], %s674
          %s676 = smul.addr %s30, 4
          %s677 = scalar_lea.vmem %s1, %s676
          // Predicated region
          $region122: #{gcn_net_forward.1} parent=120 // pred_check
            _
          $region123: #{gcn_net_forward.1} parent=120 // pred_check_branch
            %679 = sbr.rel (0) target = $region125
          $region124: #{gcn_net_forward.1} parent=120 // pred_region
            // Predicated region
            $region126: #{gcn_net_forward.1} parent=124 // pred_check
              _
            $region127: #{gcn_net_forward.1} parent=124 // pred_check_branch
              %681 = sbr.rel target = $region129
            $region128: #{gcn_net_forward.1} parent=124 // pred_region
              // Predicated region
              $region141: #{gcn_net_forward.1} parent=128 // pred_check
                _
              $region142: #{gcn_net_forward.1} parent=128 // pred_check_branch
                %698 = sbr.rel (0) target = $region144
              $region143: #{gcn_net_forward.1} parent=128 // pred_region
                loop: start=0, step=1, limit=1
                $region145: #{gcn_net_forward.1} parent=143 // loop_pre_header
                  _
                $region146: #{gcn_net_forward.1} parent=143 // loop_header
                  %s700 = sphi 0, %s704
                  %p701 = scmp.ge.s32.totalorder %s700, 1
                  %s705 = sphi %s677, %s677
                  %s706 = sphi %s675, %s675
                $region147: #{gcn_net_forward.1} parent=143 // loop_header_branch
                  %703 = sbr.rel (%p701) target = $region151
                $region148: #{gcn_net_forward.1} parent=143 // loop_body
                  _
                $region149: #{gcn_net_forward.1} parent=143 // loop_footer
                  %s704 = sadd.s32 1, %s700
                $region150: #{gcn_net_forward.1} parent=143 // loop_footer_branch
                  %699 = sbr.rel target = $region146
                $region151: #{gcn_net_forward.1} parent=143 // loop_exit
                  _
                loop: start=0, step=1, limit=1
                $region152: #{gcn_net_forward.1} parent=143 // loop_pre_header
                  _
                $region153: #{gcn_net_forward.1} parent=143 // loop_header
                  %s709 = sphi 0, %s713
                  %p710 = scmp.ge.s32.totalorder %s709, 1
                  %s714 = sphi %s677, %s677
                  %s715 = sphi %s675, %s675
                $region154: #{gcn_net_forward.1} parent=143 // loop_header_branch
                  %712 = sbr.rel (%p710) target = $region158
                $region155: #{gcn_net_forward.1} parent=143 // loop_body
                  %v716 = vld [vmem:[%s714] sm:$0xf]
                  %717 = vst [vmem:[%s715] sm:$0xf] %v716
                  %v718 = vld [vmem:[%s714 + $0x8] sm:$0xf]
                  %719 = vst [vmem:[%s715 + $0x4] sm:$0xf] %v718
                $region156: #{gcn_net_forward.1} parent=143 // loop_footer
                  %s713 = sadd.s32 1, %s709
                $region157: #{gcn_net_forward.1} parent=143 // loop_footer_branch
                  %708 = sbr.rel target = $region153
                $region158: #{gcn_net_forward.1} parent=143 // loop_exit
                  _
              $region144: #{gcn_net_forward.1} parent=128 // pred_fallthru
                _
            $region129: #{gcn_net_forward.1} parent=124 // pred_fallthru
              _
            // Predicated region
            $region130: #{gcn_net_forward.1} parent=124 // pred_check
              _
            $region131: #{gcn_net_forward.1} parent=124 // pred_check_branch
              %683 = sbr.rel (0) target = $region133
            $region132: #{gcn_net_forward.1} parent=124 // pred_region
              loop: start=0, step=1, limit=1
              $region134: #{gcn_net_forward.1} parent=132 // loop_pre_header
                _
              $region135: #{gcn_net_forward.1} parent=132 // loop_header
                %s686 = sphi 0, %s690
                %p687 = scmp.ge.s32.totalorder %s686, 1
                %s691 = sphi %s677, %s677
                %s692 = sphi %s675, %s675
              $region136: #{gcn_net_forward.1} parent=132 // loop_header_branch
                %689 = sbr.rel (%p687) target = $region140
              $region137: #{gcn_net_forward.1} parent=132 // loop_body
                %v693 = vld [vmem:[%s691] sm:$0xf]
                %694 = vst [vmem:[%s692] sm:$0xf] %v693
                %v695 = vld [vmem:[%s691 + $0x8] sm:$0xf]
                %696 = vst [vmem:[%s692 + $0x4] sm:$0xf] %v695
              $region138: #{gcn_net_forward.1} parent=132 // loop_footer
                %s690 = sadd.s32 1, %s686
              $region139: #{gcn_net_forward.1} parent=132 // loop_footer_branch
                %685 = sbr.rel target = $region135
              $region140: #{gcn_net_forward.1} parent=132 // loop_exit
                _
            $region133: #{gcn_net_forward.1} parent=124 // pred_fallthru
              _
          $region125: #{gcn_net_forward.1} parent=120 // pred_fallthru
            _
          %720 = vnop
        $region121: #{gcn_net_forward.1} parent=75 // pred_fallthru
          _
        // Predicated region
        $region159: #{gcn_net_forward.1} parent=75 // pred_check
          %p721 = pneg %p102
        $region160: #{gcn_net_forward.1} parent=75 // pred_check_branch
          %723 = sbr.rel (%p721) target = $region162
        $region161: #{gcn_net_forward.1} parent=75 // pred_region
          %s724 = smul.u32 4, %s30
          %p725 = scmp.lt.s32.totalorder %s724, 7
          %s726 = scalar_select %p725, %s724, 7
          %s727 = smul.addr %s726, 8
          %s728 = scalar_lea.vmem %s2, %s727
          %s729 = smul.u32 4, %s30
        $region162: #{gcn_net_forward.1} parent=75 // pred_fallthru
          _
        // Predicated region
        $region163: #{gcn_net_forward.1} parent=75 // pred_check
          %p730 = pneg %p128
        $region164: #{gcn_net_forward.1} parent=75 // pred_check_branch
          %732 = sbr.rel (%p730) target = $region166
        $region165: #{gcn_net_forward.1} parent=75 // pred_region
          %s733 = smul.u32 4, %s30
          %p734 = scmp.lt.s32.totalorder %s733, 7
          %s735 = scalar_select %p734, %s733, 7
          %s736 = smul.addr %s735, 8
          %s737 = scalar_lea.vmem %s3, %s736
          %s738 = smul.u32 4, %s30
        $region166: #{gcn_net_forward.1} parent=75 // pred_fallthru
          _
        // Predicated region
        $region167: #{gcn_net_forward.1} parent=75 // pred_check
          %p739 = pneg %p154
        $region168: #{gcn_net_forward.1} parent=75 // pred_check_branch
          %741 = sbr.rel (%p739) target = $region170
        $region169: #{gcn_net_forward.1} parent=75 // pred_region
          %p742 = scmp.lt.s32.totalorder %s30, 1
          %s743 = scalar_select %p742, %s30, 1
          %s744 = smul.addr %s743, 2
          %s745 = smul.addr %s744, 8
          %s746 = scalar_lea.vmem %s4, %s745
        $region170: #{gcn_net_forward.1} parent=75 // pred_fallthru
          _
        // Predicated region
        $region171: #{gcn_net_forward.1} parent=75 // pred_check
          %p747 = pneg %p180
        $region172: #{gcn_net_forward.1} parent=75 // pred_check_branch
          %749 = sbr.rel (%p747) target = $region174
        $region173: #{gcn_net_forward.1} parent=75 // pred_region
          %p750 = scmp.lt.s32.totalorder %s30, 1
          %s751 = scalar_select %p750, %s30, 1
          %s752 = smul.addr %s751, 2
          %s753 = smul.addr %s752, 8
          %s754 = scalar_lea.vmem %s5, %s753
        $region174: #{gcn_net_forward.1} parent=75 // pred_fallthru
          _
        // Predicated region
        $region175: #{gcn_net_forward.1} parent=75 // pred_check
          %p755 = pneg %p206
        $region176: #{gcn_net_forward.1} parent=75 // pred_check_branch
          %757 = sbr.rel (%p755) target = $region178
        $region177: #{gcn_net_forward.1} parent=75 // pred_region
          %p758 = scmp.lt.s32.totalorder %s30, 1
          %s759 = scalar_select %p758, %s30, 1
          %s760 = smul.addr %s759, 2
          %s761 = scalar_lea.vmem %s6, %s760
        $region178: #{gcn_net_forward.1} parent=75 // pred_fallthru
          _
      $region76: #{gcn_net_forward.1} parent=5 // pred_fallthru
        _
      %p762 = scmp.le.s32.totalorder 1, %s30
      %p763 = scmp.lt.s32.totalorder %s30, 3
      %p764 = pnand %p762, %p763
      %p765 = pneg %p764
      // Predicated region
      $region179: #{gcn_net_forward.1} parent=5 // pred_check
        _
      $region180: #{gcn_net_forward.1} parent=5 // pred_check_branch
        %767 = sbr.rel (%p764) target = $region182
      $region181: #{gcn_net_forward.1} parent=5 // pred_region
        %s768 = ssub.s32 %s30, 1
        %s769 = sand.u32 %s43, 1
        %s770 = sand.u32 %s43, 1
        %s771 = smul.addr %s770, 8
        %s772 = scalar_lea.vmem [#allocation3], %s771
        // Predicated region
        $region183: #{gcn_net_forward.1} parent=181 // pred_check
          %p773 = pneg %p56
        $region184: #{gcn_net_forward.1} parent=181 // pred_check_branch
          %775 = sbr.rel (%p773) target = $region186
        $region185: #{gcn_net_forward.1} parent=181 // pred_region
          _
        $region186: #{gcn_net_forward.1} parent=181 // pred_fallthru
          _
        %s776 = sand.u32 %s69, 1
        %s777 = sand.u32 %s69, 1
        %s778 = smul.addr %s777, 8
        %s779 = scalar_lea.vmem [#allocation4], %s778
        // Predicated region
        $region187: #{gcn_net_forward.1} parent=181 // pred_check
          %p780 = pneg %p82
        $region188: #{gcn_net_forward.1} parent=181 // pred_check_branch
          %782 = sbr.rel (%p780) target = $region190
        $region189: #{gcn_net_forward.1} parent=181 // pred_region
          _
        $region190: #{gcn_net_forward.1} parent=181 // pred_fallthru
          _
        %s783 = sand.u32 %s43, 1
        %s784 = sand.u32 %s43, 1
        %s785 = smul.addr %s784, 8
        %s786 = scalar_lea.vmem [#allocation3], %s785
        %p787 = pneg %p56
        %p788 = pneg %p53
        %s789 = sand.u32 %s69, 1
        %s790 = sand.u32 %s69, 1
        %s791 = smul.addr %s790, 8
        %s792 = scalar_lea.vmem [#allocation4], %s791
        %p793 = pneg %p82
        %p794 = pneg %p79
        %s795 = smul.u32 4, %s35
        %p796 = scmp.lt.s32.totalorder %s795, 7
        %s797 = scalar_select %p796, %s795, 7
        %s798 = smul.addr %s797, 8
        %s799 = scalar_lea.vmem %s2, %s798
        %p800 = pneg %p108
        %p801 = pneg %p105
        %s802 = smul.u32 4, %s35
        %p803 = scmp.lt.s32.totalorder %s802, 7
        %s804 = scalar_select %p803, %s802, 7
        %s805 = smul.addr %s804, 8
        %s806 = scalar_lea.vmem %s3, %s805
        %p807 = pneg %p134
        %p808 = pneg %p131
        %p809 = scmp.lt.s32.totalorder %s35, 1
        %s810 = scalar_select %p809, %s35, 1
        %s811 = smul.addr %s810, 2
        %s812 = smul.addr %s811, 8
        %s813 = scalar_lea.vmem %s4, %s812
        %p814 = pneg %p160
        %p815 = pneg %p157
        %p816 = scmp.lt.s32.totalorder %s35, 1
        %s817 = scalar_select %p816, %s35, 1
        %s818 = smul.addr %s817, 2
        %s819 = smul.addr %s818, 8
        %s820 = scalar_lea.vmem %s5, %s819
        %p821 = pneg %p186
        %p822 = pneg %p183
        %p823 = scmp.lt.s32.totalorder %s35, 1
        %s824 = scalar_select %p823, %s35, 1
        %s825 = smul.addr %s824, 2
        %s826 = scalar_lea.vmem %s6, %s825
        %p827 = pneg %p212
        %p828 = pneg %p209
        %p829 = pneg %p233
        %p830 = pneg %p230
        %p831 = pneg %p254
        %p832 = pneg %p251
        %p833 = pneg %p275
        %p834 = pneg %p272
        %p835 = pneg %p296
        %p836 = pneg %p293
        %p837 = pneg %p317
        %p838 = pneg %p314
        %p839 = pneg %p338
        %p840 = pneg %p335
        %p841 = pneg %p359
        %p842 = pneg %p356
        %p843 = pneg %p380
        %p844 = pneg %p377
        %p845 = pneg %p401
        %p846 = pneg %p398
        %p847 = pneg %p422
        %p848 = pneg %p419
        %p849 = pneg %p443
        %p850 = pneg %p440
        %p851 = pneg %p464
        %p852 = pneg %p461
        %p853 = pneg %p485
        %p854 = pneg %p482
        %p855 = pneg %p506
        %p856 = pneg %p503
        %p857 = pneg %p527
        %p858 = pneg %p524
        %p859 = pneg %p553
        %p860 = pneg %p550
        %p861 = scmp.lt.s32.totalorder %s35, 1
        %s862 = scalar_select %p861, %s35, 1
        %s863 = scalar_lea.vmem %s22, %s862
        %s864 = smul.u32 4, %s35
        %p865 = scmp.lt.s32.totalorder %s864, 7
        %s866 = scalar_select %p865, %s864, 7
        %s867 = smul.addr %s866, 8
        %s868 = scalar_lea.vmem %s2, %s867
        %s869 = smul.u32 4, %s35
        %s870 = smul.u32 4, %s35
        %p871 = scmp.lt.s32.totalorder %s870, 7
        %s872 = scalar_select %p871, %s870, 7
        %s873 = smul.addr %s872, 8
        %s874 = scalar_lea.vmem %s3, %s873
        %s875 = smul.u32 4, %s35
        %p876 = scmp.lt.s32.totalorder %s35, 1
        %s877 = scalar_select %p876, %s35, 1
        %s878 = smul.addr %s877, 2
        %s879 = smul.addr %s878, 8
        %s880 = scalar_lea.vmem %s4, %s879
        %p881 = scmp.lt.s32.totalorder %s35, 1
        %s882 = scalar_select %p881, %s35, 1
        %s883 = smul.addr %s882, 2
        %s884 = smul.addr %s883, 8
        %s885 = scalar_lea.vmem %s5, %s884
        %p886 = scmp.lt.s32.totalorder %s35, 1
        %s887 = scalar_select %p886, %s35, 1
        %s888 = smul.addr %s887, 2
        %s889 = scalar_lea.vmem %s6, %s888
        %p890 = scmp.lt.s32.totalorder %s35, 1
        %s891 = scalar_select %p890, %s35, 1
        %s892 = scalar_lea.vmem %s22, %s891
        %v894 = vld [vmem:[%s868] sm:$0xff]
        %v895 = vld [vmem:[%s868 + $0x8] sm:$0xff]
        %v896 = vld [vmem:[%s868 + $0x10] sm:$0xff]
        %v897 = vld [vmem:[%s868 + $0x18] sm:$0xff]
        %v898 = vunpack.c.l.s8.bf16 %v894
        %v899 = vunpack.c.h.s8.bf16 %v894
        %v900 = vunpack.c.l.s8.bf16 %v895
        %v901 = vunpack.c.h.s8.bf16 %v895
        %v902 = vunpack.c.l.s8.bf16 %v896
        %v903 = vunpack.c.h.s8.bf16 %v896
        %v904 = vunpack.c.l.s8.bf16 %v897
        %v905 = vunpack.c.h.s8.bf16 %v897
        %v906 = vld [vmem:[%s874] sm:$0xff]
        %v907 = vld [vmem:[%s874 + $0x8] sm:$0xff]
        %v908 = vld [vmem:[%s874 + $0x10] sm:$0xff]
        %v909 = vld [vmem:[%s874 + $0x18] sm:$0xff]
        %v910 = vunpack.c.l.s8.bf16 %v906
        %v911 = vunpack.c.h.s8.bf16 %v906
        %v912 = vunpack.c.l.s8.bf16 %v907
        %v913 = vunpack.c.h.s8.bf16 %v907
        %v914 = vunpack.c.l.s8.bf16 %v908
        %v915 = vunpack.c.h.s8.bf16 %v908
        %v916 = vunpack.c.l.s8.bf16 %v909
        %v917 = vunpack.c.h.s8.bf16 %v909
        %v918 = vld [vmem:[%s14] sm:$0xf]
        %v919 = vld [vmem:[%s14 + $0x4] sm:$0xf]
        %v920 = vld [vmem:[%s14 + $0x8] sm:$0xf]
        %v921 = vld [vmem:[%s14 + $0xc] sm:$0xf]
        %v922 = vld [vmem:[%s14 + $0x10] sm:$0xf]
        %v923 = vld [vmem:[%s14 + $0x14] sm:$0xf]
        %v924 = vld [vmem:[%s14 + $0x18] sm:$0xf]
        %v925 = vld [vmem:[%s14 + $0x1c] sm:$0xf]
        %v926 = vld [vmem:[%s14 + $0x20] sm:$0xf]
        %v927 = vld [vmem:[%s14 + $0x24] sm:$0xf]
        %v928 = vld [vmem:[%s14 + $0x28] sm:$0xf]
        %v929 = vld [vmem:[%s14 + $0x2c] sm:$0xf]
        %v930 = vld [vmem:[%s14 + $0x30] sm:$0xf]
        %v931 = vld [vmem:[%s14 + $0x34] sm:$0xf]
        %v932 = vld [vmem:[%s14 + $0x38] sm:$0xf]
        %v933 = vld [vmem:[%s14 + $0x3c] sm:$0xf]
        %v934 = vld [vmem:[%s772] sm:$0xf]
        %v935 = vld [vmem:[%s772 + $0x4] sm:$0xf]
        %v936 = vld [vmem:[%s7] sm:$0xf]
        %v937 = vld [vmem:[%s7 + $0x4] sm:$0xf]
        %v938 = vld [vmem:[%s7 + $0x8] sm:$0xf]
        %v939 = vld [vmem:[%s7 + $0xc] sm:$0xf]
        %v940 = vld [vmem:[%s8] sm:$0xff]
        %v941 = vld [vmem:[%s8 + $0x8] sm:$0xff]
        %v942 = vld [vmem:[%s8 + $0x10] sm:$0xff]
        %v943 = vld [vmem:[%s8 + $0x18] sm:$0xff]
        %945 = vset.pattern.permute.xlu0 0
        %946 = vperm.xlu0 %945, %v940
        %v947 = vpop.permute.xlu0 %946
        %950 = vset.pattern.permute.xlu0 0
        %951 = vperm.xlu0 %950, %v941
        %v952 = vpop.permute.xlu0 %951
        %955 = vset.pattern.permute.xlu0 0
        %956 = vperm.xlu0 %955, %v942
        %v957 = vpop.permute.xlu0 %956
        %960 = vset.pattern.permute.xlu0 0
        %961 = vperm.xlu0 %960, %v943
        %v962 = vpop.permute.xlu0 %961
        %v968 = vunpack.c.l.b16 %v936
        %v969 = vunpack.c.l.b16 %v937
        %v970 = vunpack.c.l.b16 %v938
        %v971 = vunpack.c.l.b16 %v939
        %v972 = vpack.c.b16 %v969, %v968
        %v973 = vpack.c.b16 %v971, %v970
        %v976 = vunpack.c.l.b16 %v934
        %v977 = vunpack.c.l.b16 %v935
        %v978 = vpack.c.b16 %v977, %v976
        %vm980 = vcmask 130048
        %v982 = vsel %vm980, %v972, 0
        %v985 = vsel %vm980, %v973, 0
        %987 = vmatprep.subr.bf16.mxu0 0
        %988 = vmatpush1.bf16.msra.mxu0 %v978
        %989 = vmatprep.subr.bf16.mxu0 0
        %990 = vmatpush1.bf16.msra.mxu0 0
        %991 = vmatprep.subr.bf16.mxu0 0
        %992 = vmatpush1.bf16.msra.mxu0 0
        %993 = vmatprep.subr.bf16.mxu0 0
        %994 = vmatpush1.bf16.msra.mxu0 0
        %995 = vmatprep.subr.bf16.mxu0 0
        %996 = vmatpush1.bf16.msra.mxu0 0
        %997 = vmatprep.subr.bf16.mxu0 0
        %998 = vmatpush1.bf16.msra.mxu0 0
        %999 = vmatprep.subr.bf16.mxu0 0
        %1000 = vmatpush1.bf16.msra.mxu0 0
        %1001 = vmatprep.subr.bf16.mxu0 0
        %1002 = vmatpush1.bf16.msra.mxu0 0
        %1003 = vmatprep.subr.bf16.mxu0 0
        %1004 = vmatpush1.bf16.msra.mxu0 0
        %1005 = vmatprep.subr.bf16.mxu0 0
        %1006 = vmatpush1.bf16.msra.mxu0 0
        %1007 = vmatprep.subr.bf16.mxu0 0
        %1008 = vmatpush1.bf16.msra.mxu0 0
        %1009 = vmatprep.subr.bf16.mxu0 0
        %1010 = vmatpush1.bf16.msra.mxu0 0
        %1011 = vmatprep.subr.bf16.mxu0 0
        %1012 = vmatpush1.bf16.msra.mxu0 0
        %1013 = vmatprep.subr.bf16.mxu0 0
        %1014 = vmatpush1.bf16.msra.mxu0 0
        %1015 = vmatprep.subr.bf16.mxu0 0
        %1016 = vmatpush1.bf16.msra.mxu0 0
        %1017 = vmatprep.subr.bf16.mxu0 0
        %1018 = vmatpush1.bf16.msra.mxu0 0
        %1019 = vmatprep.mubr.bf16.mxu0 0
        %1020 = vmatmul.mubr.bf16.gmra.mrb[0].mxu0 %v982
        %v1021 = vpop.f32.mrb[0].mxu0
        %v1022 = vadd.f32 %v947, %v1021
        %v1023 = vpop.f32.mrb[0].mxu0
        %v1024 = vpop.f32.mrb[0].mxu0
        %v1025 = vadd.f32 %v952, %v1024
        %v1026 = vpop.f32.mrb[0].mxu0
        %1027 = vmatprep.mubr.bf16.mxu0 0
        %1028 = vmatmul.mubr.bf16.gmra.mrb[0].mxu0 %v985
        %v1029 = vpop.f32.mrb[0].mxu0
        %v1030 = vadd.f32 %v957, %v1029
        %v1031 = vpop.f32.mrb[0].mxu0
        %v1032 = vpop.f32.mrb[0].mxu0
        %v1033 = vadd.f32 %v962, %v1032
        %v1034 = vpop.f32.mrb[0].mxu0
        %1035 = vdwg.mxu0
        %v1036 = vld [vmem:[%s9] sm:$0xf]
        %v1037 = vld [vmem:[%s9 + $0x4] sm:$0xf]
        %v1038 = vld [vmem:[%s9 + $0x8] sm:$0xf]
        %v1039 = vld [vmem:[%s9 + $0xc] sm:$0xf]
        %v1040 = vpack.c.bf16 %v1025, %v1022
        %v1041 = vpack.c.bf16 %v1033, %v1030
        %v1042 = vld [vmem:[%s10] sm:$0xff]
        %v1043 = vld [vmem:[%s10 + $0x8] sm:$0xff]
        %v1044 = vld [vmem:[%s10 + $0x10] sm:$0xff]
        %v1045 = vld [vmem:[%s10 + $0x18] sm:$0xff]
        %1047 = vset.pattern.permute.xlu0 0
        %1048 = vperm.xlu0 %1047, %v1042
        %v1049 = vpop.permute.xlu0 %1048
        %1052 = vset.pattern.permute.xlu0 0
        %1053 = vperm.xlu0 %1052, %v1043
        %v1054 = vpop.permute.xlu0 %1053
        %1057 = vset.pattern.permute.xlu0 0
        %1058 = vperm.xlu0 %1057, %v1044
        %v1059 = vpop.permute.xlu0 %1058
        %1062 = vset.pattern.permute.xlu0 0
        %1063 = vperm.xlu0 %1062, %v1045
        %v1064 = vpop.permute.xlu0 %1063
        %v1070 = vunpack.c.l.b16 %v1036
        %v1071 = vunpack.c.l.b16 %v1037
        %v1072 = vunpack.c.l.b16 %v1038
        %v1073 = vunpack.c.l.b16 %v1039
        %v1074 = vpack.c.b16 %v1071, %v1070
        %v1075 = vpack.c.b16 %v1073, %v1072
        %vm1076 = vcmask 261120
        %v1078 = vsel %vm1076, %v1074, 0
        %v1081 = vsel %vm1076, %v1075, 0
        %1083 = vmatprep.subr.bf16.mxu0 0
        %1084 = vmatpush1.bf16.msra.mxu0 %v1040
        %1085 = vmatprep.subr.bf16.mxu0 0
        %1086 = vmatpush1.bf16.msra.mxu0 %v1041
        %1087 = vmatprep.subr.bf16.mxu0 0
        %1088 = vmatpush1.bf16.msra.mxu0 0
        %1089 = vmatprep.subr.bf16.mxu0 0
        %1090 = vmatpush1.bf16.msra.mxu0 0
        %1091 = vmatprep.subr.bf16.mxu0 0
        %1092 = vmatpush1.bf16.msra.mxu0 0
        %1093 = vmatprep.subr.bf16.mxu0 0
        %1094 = vmatpush1.bf16.msra.mxu0 0
        %1095 = vmatprep.subr.bf16.mxu0 0
        %1096 = vmatpush1.bf16.msra.mxu0 0
        %1097 = vmatprep.subr.bf16.mxu0 0
        %1098 = vmatpush1.bf16.msra.mxu0 0
        %1099 = vmatprep.subr.bf16.mxu0 0
        %1100 = vmatpush1.bf16.msra.mxu0 0
        %1101 = vmatprep.subr.bf16.mxu0 0
        %1102 = vmatpush1.bf16.msra.mxu0 0
        %1103 = vmatprep.subr.bf16.mxu0 0
        %1104 = vmatpush1.bf16.msra.mxu0 0
        %1105 = vmatprep.subr.bf16.mxu0 0
        %1106 = vmatpush1.bf16.msra.mxu0 0
        %1107 = vmatprep.subr.bf16.mxu0 0
        %1108 = vmatpush1.bf16.msra.mxu0 0
        %1109 = vmatprep.subr.bf16.mxu0 0
        %1110 = vmatpush1.bf16.msra.mxu0 0
        %1111 = vmatprep.subr.bf16.mxu0 0
        %1112 = vmatpush1.bf16.msra.mxu0 0
        %1113 = vmatprep.subr.bf16.mxu0 0
        %1114 = vmatpush1.bf16.msra.mxu0 0
        %1115 = vmatprep.mubr.bf16.mxu0 0
        %1116 = vmatmul.mubr.bf16.gmra.mrb[0].mxu0 %v1078
        %v1117 = vpop.f32.mrb[0].mxu0
        %v1118 = vadd.f32 %v1049, %v1117
        %v1119 = vpop.f32.mrb[0].mxu0
        %v1120 = vpop.f32.mrb[0].mxu0
        %v1121 = vadd.f32 %v1054, %v1120
        %v1122 = vpop.f32.mrb[0].mxu0
        %1123 = vmatprep.mubr.bf16.mxu0 0
        %1124 = vmatmul.mubr.bf16.gmra.mrb[0].mxu0 %v1081
        %v1125 = vpop.f32.mrb[0].mxu0
        %v1126 = vadd.f32 %v1059, %v1125
        %v1127 = vpop.f32.mrb[0].mxu0
        %v1128 = vpop.f32.mrb[0].mxu0
        %v1129 = vadd.f32 %v1064, %v1128
        %v1130 = vpop.f32.mrb[0].mxu0
        %1131 = vdwg.mxu0
        %v1132 = vpack.c.bf16 %v1121, %v1118
        %v1133 = vpack.c.bf16 %v1129, %v1126
        %1134 = vmatprep.subr.bf16.mxu0 0
        %1135 = vmatpush1.bf16.msra.mxu0 %v898
        %1136 = vmatprep.subr.bf16.mxu0 0
        %1137 = vmatpush1.bf16.msra.mxu0 %v899
        %1138 = vmatprep.subr.bf16.mxu0 0
        %1139 = vmatpush1.bf16.msra.mxu0 %v900
        %1140 = vmatprep.subr.bf16.mxu0 0
        %1141 = vmatpush1.bf16.msra.mxu0 %v901
        %1142 = vmatprep.subr.bf16.mxu0 0
        %1143 = vmatpush1.bf16.msra.mxu0 %v902
        %1144 = vmatprep.subr.bf16.mxu0 0
        %1145 = vmatpush1.bf16.msra.mxu0 %v903
        %1146 = vmatprep.subr.bf16.mxu0 0
        %1147 = vmatpush1.bf16.msra.mxu0 %v904
        %1148 = vmatprep.subr.bf16.mxu0 0
        %1149 = vmatpush1.bf16.msra.mxu0 %v905
        %1150 = vmatprep.subr.bf16.mxu0 0
        %1151 = vmatpush1.bf16.msra.mxu0 0
        %1152 = vmatprep.subr.bf16.mxu0 0
        %1153 = vmatpush1.bf16.msra.mxu0 0
        %1154 = vmatprep.subr.bf16.mxu0 0
        %1155 = vmatpush1.bf16.msra.mxu0 0
        %1156 = vmatprep.subr.bf16.mxu0 0
        %1157 = vmatpush1.bf16.msra.mxu0 0
        %1158 = vmatprep.subr.bf16.mxu0 0
        %1159 = vmatpush1.bf16.msra.mxu0 0
        %1160 = vmatprep.subr.bf16.mxu0 0
        %1161 = vmatpush1.bf16.msra.mxu0 0
        %1162 = vmatprep.subr.bf16.mxu0 0
        %1163 = vmatpush1.bf16.msra.mxu0 0
        %1164 = vmatprep.subr.bf16.mxu0 0
        %1165 = vmatpush1.bf16.msra.mxu0 0
        %1166 = vmatprep.mubr.bf16.mxu0 0
        %1167 = vmatmul.mubr.bf16.gmra.mrb[0].mxu0 %v1132
        %v1168 = vpop.f32.mrb[0].mxu0
        %v1169 = vadd.f32 0.0, %v1168
        %v1170 = vpop.f32.mrb[0].mxu0
        %v1171 = vpop.f32.mrb[0].mxu0
        %v1172 = vadd.f32 0.0, %v1171
        %v1173 = vpop.f32.mrb[0].mxu0
        %1174 = vmatprep.mubr.bf16.mxu0 0
        %1175 = vmatmul.mubr.bf16.gmra.mrb[0].mxu0 %v1133
        %v1176 = vpop.f32.mrb[0].mxu0
        %v1177 = vadd.f32 0.0, %v1176
        %v1178 = vpop.f32.mrb[0].mxu0
        %v1179 = vpop.f32.mrb[0].mxu0
        %v1180 = vadd.f32 0.0, %v1179
        %v1181 = vpop.f32.mrb[0].mxu0
        %1182 = vdwg.mxu0
        %v1183 = vld [vmem:[%s11] sm:$0x3]
        %v1184 = vlaneseq
        %v1185 = vshrl.u32 %v1184, 7
        %v1186 = vsub.s32 0, %v1185
        %v1187 = vrot.slane %v1183, %v1186
        %v1188 = vmul.f32 %v1169, %v1187
        %v1189 = vmul.f32 %v1172, %v1187
        %v1190 = vmul.f32 %v1177, %v1187
        %v1191 = vmul.f32 %v1180, %v1187
        %v1192 = vlaneseq
        %v1193 = vshrl.u32 %v1192, 7
        %v1194 = vsub.s32 1, %v1193
        %v1195 = vrot.slane %v1183, %v1194
        %v1196 = vadd.f32 %v1188, %v1195
        %v1197 = vadd.f32 %v1189, %v1195
        %v1198 = vadd.f32 %v1190, %v1195
        %v1199 = vadd.f32 %v1191, %v1195
        %v1200 = vmax.f32 %v1196, 0.0
        %v1201 = vmax.f32 %v1197, 0.0
        %v1202 = vmax.f32 %v1198, 0.0
        %v1203 = vmax.f32 %v1199, 0.0
        %s1204 = scalar_lea.vmem %s9, 16
        %v1205 = vld [vmem:[%s1204] sm:$0xf]
        %v1206 = vld [vmem:[%s1204 + $0x4] sm:$0xf]
        %v1207 = vld [vmem:[%s1204 + $0x8] sm:$0xf]
        %v1208 = vld [vmem:[%s1204 + $0xc] sm:$0xf]
        %v1209 = vpack.c.bf16 %v1201, %v1200
        %v1210 = vpack.c.bf16 %v1203, %v1202
        %s1211 = scalar_lea.vmem %s10, 32
        %v1212 = vld [vmem:[%s1211] sm:$0xff]
        %v1213 = vld [vmem:[%s1211 + $0x8] sm:$0xff]
        %v1214 = vld [vmem:[%s1211 + $0x10] sm:$0xff]
        %v1215 = vld [vmem:[%s1211 + $0x18] sm:$0xff]
        %1217 = vset.pattern.permute.xlu0 0
        %1218 = vperm.xlu0 %1217, %v1212
        %v1219 = vpop.permute.xlu0 %1218
        %1222 = vset.pattern.permute.xlu0 0
        %1223 = vperm.xlu0 %1222, %v1213
        %v1224 = vpop.permute.xlu0 %1223
        %1227 = vset.pattern.permute.xlu0 0
        %1228 = vperm.xlu0 %1227, %v1214
        %v1229 = vpop.permute.xlu0 %1228
        %1232 = vset.pattern.permute.xlu0 0
        %1233 = vperm.xlu0 %1232, %v1215
        %v1234 = vpop.permute.xlu0 %1233
        %v1240 = vunpack.c.l.b16 %v1205
        %v1241 = vunpack.c.l.b16 %v1206
        %v1242 = vunpack.c.l.b16 %v1207
        %v1243 = vunpack.c.l.b16 %v1208
        %v1244 = vpack.c.b16 %v1241, %v1240
        %v1245 = vpack.c.b16 %v1243, %v1242
        %v1247 = vsel %vm1076, %v1244, 0
        %v1250 = vsel %vm1076, %v1245, 0
        %1252 = vmatprep.subr.bf16.mxu0 0
        %1253 = vmatpush1.bf16.msra.mxu0 %v1209
        %1254 = vmatprep.subr.bf16.mxu0 0
        %1255 = vmatpush1.bf16.msra.mxu0 %v1210
        %1256 = vmatprep.subr.bf16.mxu0 0
        %1257 = vmatpush1.bf16.msra.mxu0 0
        %1258 = vmatprep.subr.bf16.mxu0 0
        %1259 = vmatpush1.bf16.msra.mxu0 0
        %1260 = vmatprep.subr.bf16.mxu0 0
        %1261 = vmatpush1.bf16.msra.mxu0 0
        %1262 = vmatprep.subr.bf16.mxu0 0
        %1263 = vmatpush1.bf16.msra.mxu0 0
        %1264 = vmatprep.subr.bf16.mxu0 0
        %1265 = vmatpush1.bf16.msra.mxu0 0
        %1266 = vmatprep.subr.bf16.mxu0 0
        %1267 = vmatpush1.bf16.msra.mxu0 0
        %1268 = vmatprep.subr.bf16.mxu0 0
        %1269 = vmatpush1.bf16.msra.mxu0 0
        %1270 = vmatprep.subr.bf16.mxu0 0
        %1271 = vmatpush1.bf16.msra.mxu0 0
        %1272 = vmatprep.subr.bf16.mxu0 0
        %1273 = vmatpush1.bf16.msra.mxu0 0
        %1274 = vmatprep.subr.bf16.mxu0 0
        %1275 = vmatpush1.bf16.msra.mxu0 0
        %1276 = vmatprep.subr.bf16.mxu0 0
        %1277 = vmatpush1.bf16.msra.mxu0 0
        %1278 = vmatprep.subr.bf16.mxu0 0
        %1279 = vmatpush1.bf16.msra.mxu0 0
        %1280 = vmatprep.subr.bf16.mxu0 0
        %1281 = vmatpush1.bf16.msra.mxu0 0
        %1282 = vmatprep.subr.bf16.mxu0 0
        %1283 = vmatpush1.bf16.msra.mxu0 0
        %1284 = vmatprep.mubr.bf16.mxu0 0
        %1285 = vmatmul.mubr.bf16.gmra.mrb[0].mxu0 %v1247
        %v1286 = vpop.f32.mrb[0].mxu0
        %v1287 = vadd.f32 %v1219, %v1286
        %v1288 = vpop.f32.mrb[0].mxu0
        %v1289 = vpop.f32.mrb[0].mxu0
        %v1290 = vadd.f32 %v1224, %v1289
        %v1291 = vpop.f32.mrb[0].mxu0
        %1292 = vmatprep.mubr.bf16.mxu0 0
        %1293 = vmatmul.mubr.bf16.gmra.mrb[0].mxu0 %v1250
        %v1294 = vpop.f32.mrb[0].mxu0
        %v1295 = vadd.f32 %v1229, %v1294
        %v1296 = vpop.f32.mrb[0].mxu0
        %v1297 = vpop.f32.mrb[0].mxu0
        %v1298 = vadd.f32 %v1234, %v1297
        %v1299 = vpop.f32.mrb[0].mxu0
        %1300 = vdwg.mxu0
        %v1301 = vpack.c.bf16 %v1290, %v1287
        %v1302 = vpack.c.bf16 %v1298, %v1295
        %1303 = vmatprep.subr.bf16.mxu0 0
        %1304 = vmatpush1.bf16.msra.mxu0 %v898
        %1305 = vmatprep.subr.bf16.mxu0 0
        %1306 = vmatpush1.bf16.msra.mxu0 %v899
        %1307 = vmatprep.subr.bf16.mxu0 0
        %1308 = vmatpush1.bf16.msra.mxu0 %v900
        %1309 = vmatprep.subr.bf16.mxu0 0
        %1310 = vmatpush1.bf16.msra.mxu0 %v901
        %1311 = vmatprep.subr.bf16.mxu0 0
        %1312 = vmatpush1.bf16.msra.mxu0 %v902
        %1313 = vmatprep.subr.bf16.mxu0 0
        %1314 = vmatpush1.bf16.msra.mxu0 %v903
        %1315 = vmatprep.subr.bf16.mxu0 0
        %1316 = vmatpush1.bf16.msra.mxu0 %v904
        %1317 = vmatprep.subr.bf16.mxu0 0
        %1318 = vmatpush1.bf16.msra.mxu0 %v905
        %1319 = vmatprep.subr.bf16.mxu0 0
        %1320 = vmatpush1.bf16.msra.mxu0 0
        %1321 = vmatprep.subr.bf16.mxu0 0
        %1322 = vmatpush1.bf16.msra.mxu0 0
        %1323 = vmatprep.subr.bf16.mxu0 0
        %1324 = vmatpush1.bf16.msra.mxu0 0
        %1325 = vmatprep.subr.bf16.mxu0 0
        %1326 = vmatpush1.bf16.msra.mxu0 0
        %1327 = vmatprep.subr.bf16.mxu0 0
        %1328 = vmatpush1.bf16.msra.mxu0 0
        %1329 = vmatprep.subr.bf16.mxu0 0
        %1330 = vmatpush1.bf16.msra.mxu0 0
        %1331 = vmatprep.subr.bf16.mxu0 0
        %1332 = vmatpush1.bf16.msra.mxu0 0
        %1333 = vmatprep.subr.bf16.mxu0 0
        %1334 = vmatpush1.bf16.msra.mxu0 0
        %1335 = vmatprep.mubr.bf16.mxu0 0
        %1336 = vmatmul.mubr.bf16.gmra.mrb[0].mxu0 %v1301
        %v1337 = vpop.f32.mrb[0].mxu0
        %v1338 = vadd.f32 0.0, %v1337
        %v1339 = vpop.f32.mrb[0].mxu0
        %v1340 = vpop.f32.mrb[0].mxu0
        %v1341 = vadd.f32 0.0, %v1340
        %v1342 = vpop.f32.mrb[0].mxu0
        %1343 = vmatprep.mubr.bf16.mxu0 0
        %1344 = vmatmul.mubr.bf16.gmra.mrb[0].mxu0 %v1302
        %v1345 = vpop.f32.mrb[0].mxu0
        %v1346 = vadd.f32 0.0, %v1345
        %v1347 = vpop.f32.mrb[0].mxu0
        %v1348 = vpop.f32.mrb[0].mxu0
        %v1349 = vadd.f32 0.0, %v1348
        %v1350 = vpop.f32.mrb[0].mxu0
        %1351 = vdwg.mxu0
        %s1352 = scalar_lea.vmem %s11, 2
        %v1353 = vld [vmem:[%s1352] sm:$0x3]
        %v1354 = vlaneseq
        %v1355 = vshrl.u32 %v1354, 7
        %v1356 = vsub.s32 0, %v1355
        %v1357 = vrot.slane %v1353, %v1356
        %v1358 = vmul.f32 %v1338, %v1357
        %v1359 = vmul.f32 %v1341, %v1357
        %v1360 = vmul.f32 %v1346, %v1357
        %v1361 = vmul.f32 %v1349, %v1357
        %v1362 = vlaneseq
        %v1363 = vshrl.u32 %v1362, 7
        %v1364 = vsub.s32 1, %v1363
        %v1365 = vrot.slane %v1353, %v1364
        %v1366 = vadd.f32 %v1358, %v1365
        %v1367 = vadd.f32 %v1359, %v1365
        %v1368 = vadd.f32 %v1360, %v1365
        %v1369 = vadd.f32 %v1361, %v1365
        %v1370 = vmax.f32 %v1366, 0.0
        %v1371 = vmax.f32 %v1367, 0.0
        %v1372 = vmax.f32 %v1368, 0.0
        %v1373 = vmax.f32 %v1369, 0.0
        %s1374 = scalar_lea.vmem %s9, 32
        %v1375 = vld [vmem:[%s1374] sm:$0xf]
        %v1376 = vld [vmem:[%s1374 + $0x4] sm:$0xf]
        %v1377 = vld [vmem:[%s1374 + $0x8] sm:$0xf]
        %v1378 = vld [vmem:[%s1374 + $0xc] sm:$0xf]
        %v1379 = vpack.c.bf16 %v1371, %v1370
        %v1380 = vpack.c.bf16 %v1373, %v1372
        %s1381 = scalar_lea.vmem %s10, 64
        %v1382 = vld [vmem:[%s1381] sm:$0xff]
        %v1383 = vld [vmem:[%s1381 + $0x8] sm:$0xff]
        %v1384 = vld [vmem:[%s1381 + $0x10] sm:$0xff]
        %v1385 = vld [vmem:[%s1381 + $0x18] sm:$0xff]
        %1387 = vset.pattern.permute.xlu0 0
        %1388 = vperm.xlu0 %1387, %v1382
        %v1389 = vpop.permute.xlu0 %1388
        %1392 = vset.pattern.permute.xlu0 0
        %1393 = vperm.xlu0 %1392, %v1383
        %v1394 = vpop.permute.xlu0 %1393
        %1397 = vset.pattern.permute.xlu0 0
        %1398 = vperm.xlu0 %1397, %v1384
        %v1399 = vpop.permute.xlu0 %1398
        %1402 = vset.pattern.permute.xlu0 0
        %1403 = vperm.xlu0 %1402, %v1385
        %v1404 = vpop.permute.xlu0 %1403
        %v1410 = vunpack.c.l.b16 %v1375
        %v1411 = vunpack.c.l.b16 %v1376
        %v1412 = vunpack.c.l.b16 %v1377
        %v1413 = vunpack.c.l.b16 %v1378
        %v1414 = vpack.c.b16 %v1411, %v1410
        %v1415 = vpack.c.b16 %v1413, %v1412
        %v1417 = vsel %vm1076, %v1414, 0
        %v1420 = vsel %vm1076, %v1415, 0
        %1422 = vmatprep.subr.bf16.mxu0 0
        %1423 = vmatpush1.bf16.msra.mxu0 %v1379
        %1424 = vmatprep.subr.bf16.mxu0 0
        %1425 = vmatpush1.bf16.msra.mxu0 %v1380
        %1426 = vmatprep.subr.bf16.mxu0 0
        %1427 = vmatpush1.bf16.msra.mxu0 0
        %1428 = vmatprep.subr.bf16.mxu0 0
        %1429 = vmatpush1.bf16.msra.mxu0 0
        %1430 = vmatprep.subr.bf16.mxu0 0
        %1431 = vmatpush1.bf16.msra.mxu0 0
        %1432 = vmatprep.subr.bf16.mxu0 0
        %1433 = vmatpush1.bf16.msra.mxu0 0
        %1434 = vmatprep.subr.bf16.mxu0 0
        %1435 = vmatpush1.bf16.msra.mxu0 0
        %1436 = vmatprep.subr.bf16.mxu0 0
        %1437 = vmatpush1.bf16.msra.mxu0 0
        %1438 = vmatprep.subr.bf16.mxu0 0
        %1439 = vmatpush1.bf16.msra.mxu0 0
        %1440 = vmatprep.subr.bf16.mxu0 0
        %1441 = vmatpush1.bf16.msra.mxu0 0
        %1442 = vmatprep.subr.bf16.mxu0 0
        %1443 = vmatpush1.bf16.msra.mxu0 0
        %1444 = vmatprep.subr.bf16.mxu0 0
        %1445 = vmatpush1.bf16.msra.mxu0 0
        %1446 = vmatprep.subr.bf16.mxu0 0
        %1447 = vmatpush1.bf16.msra.mxu0 0
        %1448 = vmatprep.subr.bf16.mxu0 0
        %1449 = vmatpush1.bf16.msra.mxu0 0
        %1450 = vmatprep.subr.bf16.mxu0 0
        %1451 = vmatpush1.bf16.msra.mxu0 0
        %1452 = vmatprep.subr.bf16.mxu0 0
        %1453 = vmatpush1.bf16.msra.mxu0 0
        %1454 = vmatprep.mubr.bf16.mxu0 0
        %1455 = vmatmul.mubr.bf16.gmra.mrb[0].mxu0 %v1417
        %v1456 = vpop.f32.mrb[0].mxu0
        %v1457 = vadd.f32 %v1389, %v1456
        %v1458 = vpop.f32.mrb[0].mxu0
        %v1459 = vpop.f32.mrb[0].mxu0
        %v1460 = vadd.f32 %v1394, %v1459
        %v1461 = vpop.f32.mrb[0].mxu0
        %1462 = vmatprep.mubr.bf16.mxu0 0
        %1463 = vmatmul.mubr.bf16.gmra.mrb[0].mxu0 %v1420
        %v1464 = vpop.f32.mrb[0].mxu0
        %v1465 = vadd.f32 %v1399, %v1464
        %v1466 = vpop.f32.mrb[0].mxu0
        %v1467 = vpop.f32.mrb[0].mxu0
        %v1468 = vadd.f32 %v1404, %v1467
        %v1469 = vpop.f32.mrb[0].mxu0
        %1470 = vdwg.mxu0
        %v1471 = vpack.c.bf16 %v1460, %v1457
        %v1472 = vpack.c.bf16 %v1468, %v1465
        %1473 = vmatprep.subr.bf16.mxu0 0
        %1474 = vmatpush1.bf16.msra.mxu0 %v898
        %1475 = vmatprep.subr.bf16.mxu0 0
        %1476 = vmatpush1.bf16.msra.mxu0 %v899
        %1477 = vmatprep.subr.bf16.mxu0 0
        %1478 = vmatpush1.bf16.msra.mxu0 %v900
        %1479 = vmatprep.subr.bf16.mxu0 0
        %1480 = vmatpush1.bf16.msra.mxu0 %v901
        %1481 = vmatprep.subr.bf16.mxu0 0
        %1482 = vmatpush1.bf16.msra.mxu0 %v902
        %1483 = vmatprep.subr.bf16.mxu0 0
        %1484 = vmatpush1.bf16.msra.mxu0 %v903
        %1485 = vmatprep.subr.bf16.mxu0 0
        %1486 = vmatpush1.bf16.msra.mxu0 %v904
        %1487 = vmatprep.subr.bf16.mxu0 0
        %1488 = vmatpush1.bf16.msra.mxu0 %v905
        %1489 = vmatprep.subr.bf16.mxu0 0
        %1490 = vmatpush1.bf16.msra.mxu0 0
        %1491 = vmatprep.subr.bf16.mxu0 0
        %1492 = vmatpush1.bf16.msra.mxu0 0
        %1493 = vmatprep.subr.bf16.mxu0 0
        %1494 = vmatpush1.bf16.msra.mxu0 0
        %1495 = vmatprep.subr.bf16.mxu0 0
        %1496 = vmatpush1.bf16.msra.mxu0 0
        %1497 = vmatprep.subr.bf16.mxu0 0
        %1498 = vmatpush1.bf16.msra.mxu0 0
        %1499 = vmatprep.subr.bf16.mxu0 0
        %1500 = vmatpush1.bf16.msra.mxu0 0
        %1501 = vmatprep.subr.bf16.mxu0 0
        %1502 = vmatpush1.bf16.msra.mxu0 0
        %1503 = vmatprep.subr.bf16.mxu0 0
        %1504 = vmatpush1.bf16.msra.mxu0 0
        %1505 = vmatprep.mubr.bf16.mxu0 0
        %1506 = vmatmul.mubr.bf16.gmra.mrb[0].mxu0 %v1471
        %v1507 = vpop.f32.mrb[0].mxu0
        %v1508 = vadd.f32 0.0, %v1507
        %v1509 = vpop.f32.mrb[0].mxu0
        %v1510 = vpop.f32.mrb[0].mxu0
        %v1511 = vadd.f32 0.0, %v1510
        %v1512 = vpop.f32.mrb[0].mxu0
        %1513 = vmatprep.mubr.bf16.mxu0 0
        %1514 = vmatmul.mubr.bf16.gmra.mrb[0].mxu0 %v1472
        %v1515 = vpop.f32.mrb[0].mxu0
        %v1516 = vadd.f32 0.0, %v1515
        %v1517 = vpop.f32.mrb[0].mxu0
        %v1518 = vpop.f32.mrb[0].mxu0
        %v1519 = vadd.f32 0.0, %v1518
        %v1520 = vpop.f32.mrb[0].mxu0
        %1521 = vdwg.mxu0
        %s1522 = scalar_lea.vmem %s11, 4
        %v1523 = vld [vmem:[%s1522] sm:$0x3]
        %v1524 = vlaneseq
        %v1525 = vshrl.u32 %v1524, 7
        %v1526 = vsub.s32 0, %v1525
        %v1527 = vrot.slane %v1523, %v1526
        %v1528 = vmul.f32 %v1508, %v1527
        %v1529 = vmul.f32 %v1511, %v1527
        %v1530 = vmul.f32 %v1516, %v1527
        %v1531 = vmul.f32 %v1519, %v1527
        %v1532 = vlaneseq
        %v1533 = vshrl.u32 %v1532, 7
        %v1534 = vsub.s32 1, %v1533
        %v1535 = vrot.slane %v1523, %v1534
        %v1536 = vadd.f32 %v1528, %v1535
        %v1537 = vadd.f32 %v1529, %v1535
        %v1538 = vadd.f32 %v1530, %v1535
        %v1539 = vadd.f32 %v1531, %v1535
        %v1540 = vmax.f32 %v1536, 0.0
        %v1541 = vmax.f32 %v1537, 0.0
        %v1542 = vmax.f32 %v1538, 0.0
        %v1543 = vmax.f32 %v1539, 0.0
        %v1544 = vpack.c.bf16 %v1541, %v1540
        %v1545 = vpack.c.bf16 %v1543, %v1542
        %v1562 = vunpack.c.l.b16 %v918
        %v1563 = vunpack.c.l.b16 %v919
        %v1564 = vunpack.c.l.b16 %v920
        %v1565 = vunpack.c.l.b16 %v921
        %v1566 = vunpack.c.l.b16 %v922
        %v1567 = vunpack.c.l.b16 %v923
        %v1568 = vunpack.c.l.b16 %v924
        %v1569 = vunpack.c.l.b16 %v925
        %v1570 = vunpack.c.l.b16 %v926
        %v1571 = vunpack.c.l.b16 %v927
        %v1572 = vunpack.c.l.b16 %v928
        %v1573 = vunpack.c.l.b16 %v929
        %v1574 = vunpack.c.l.b16 %v930
        %v1575 = vunpack.c.l.b16 %v931
        %v1576 = vunpack.c.l.b16 %v932
        %v1577 = vunpack.c.l.b16 %v933
        %v1578 = vpack.c.b16 %v1563, %v1562
        %v1579 = vpack.c.b16 %v1565, %v1564
        %v1580 = vpack.c.b16 %v1567, %v1566
        %v1581 = vpack.c.b16 %v1569, %v1568
        %v1582 = vpack.c.b16 %v1571, %v1570
        %v1583 = vpack.c.b16 %v1573, %v1572
        %v1584 = vpack.c.b16 %v1575, %v1574
        %v1585 = vpack.c.b16 %v1577, %v1576
        %1594 = vmatprep.subr.bf16.mxu0 0
        %1595 = vmatpush1.bf16.msra.mxu0 %v1578
        %1596 = vmatprep.subr.bf16.mxu0 0
        %1597 = vmatpush1.bf16.msra.mxu0 %v1579
        %1598 = vmatprep.subr.bf16.mxu0 0
        %1599 = vmatpush1.bf16.msra.mxu0 %v1580
        %1600 = vmatprep.subr.bf16.mxu0 0
        %1601 = vmatpush1.bf16.msra.mxu0 %v1581
        %1602 = vmatprep.subr.bf16.mxu0 0
        %1603 = vmatpush1.bf16.msra.mxu0 %v1582
        %1604 = vmatprep.subr.bf16.mxu0 0
        %1605 = vmatpush1.bf16.msra.mxu0 %v1583
        %1606 = vmatprep.subr.bf16.mxu0 0
        %1607 = vmatpush1.bf16.msra.mxu0 %v1584
        %1608 = vmatprep.subr.bf16.mxu0 0
        %1609 = vmatpush1.bf16.msra.mxu0 %v1585
        %1610 = vmatprep.subr.bf16.mxu0 0
        %1611 = vmatpush1.bf16.msra.mxu0 0
        %1612 = vmatprep.subr.bf16.mxu0 0
        %1613 = vmatpush1.bf16.msra.mxu0 0
        %1614 = vmatprep.subr.bf16.mxu0 0
        %1615 = vmatpush1.bf16.msra.mxu0 0
        %1616 = vmatprep.subr.bf16.mxu0 0
        %1617 = vmatpush1.bf16.msra.mxu0 0
        %1618 = vmatprep.subr.bf16.mxu0 0
        %1619 = vmatpush1.bf16.msra.mxu0 0
        %1620 = vmatprep.subr.bf16.mxu0 0
        %1621 = vmatpush1.bf16.msra.mxu0 0
        %1622 = vmatprep.subr.bf16.mxu0 0
        %1623 = vmatpush1.bf16.msra.mxu0 0
        %1624 = vmatprep.subr.bf16.mxu0 0
        %1625 = vmatpush1.bf16.msra.mxu0 0
        %1626 = vmatprep.mubr.bf16.mxu0 0
        %1627 = vmatmul.mubr.bf16.gmra.mrb[0].mxu0 %v1544
        %v1628 = vpop.f32.mrb[0].mxu0
        %v1629 = vadd.f32 0.0, %v1628
        %v1630 = vpop.f32.mrb[0].mxu0
        %v1631 = vpop.f32.mrb[0].mxu0
        %v1632 = vadd.f32 0.0, %v1631
        %v1633 = vpop.f32.mrb[0].mxu0
        %1634 = vmatprep.mubr.bf16.mxu0 0
        %1635 = vmatmul.mubr.bf16.gmra.mrb[0].mxu0 %v1545
        %v1636 = vpop.f32.mrb[0].mxu0
        %v1637 = vadd.f32 0.0, %v1636
        %v1638 = vpop.f32.mrb[0].mxu0
        %v1639 = vpop.f32.mrb[0].mxu0
        %v1640 = vadd.f32 0.0, %v1639
        %v1641 = vpop.f32.mrb[0].mxu0
        %1642 = vdwg.mxu0
        %v1643 = vld [vmem:[%s12] sm:$0xf]
        %v1644 = vld [vmem:[%s12 + $0x4] sm:$0xf]
        %v1645 = vld [vmem:[%s12 + $0x8] sm:$0xf]
        %v1646 = vld [vmem:[%s12 + $0xc] sm:$0xf]
        %v1647 = vld [vmem:[%s12 + $0x10] sm:$0xf]
        %v1648 = vld [vmem:[%s12 + $0x14] sm:$0xf]
        %v1649 = vld [vmem:[%s12 + $0x18] sm:$0xf]
        %v1650 = vld [vmem:[%s12 + $0x1c] sm:$0xf]
        %v1651 = vpack.c.bf16 %v1632, %v1629
        %v1652 = vpack.c.bf16 %v1640, %v1637
        %v1653 = vld [vmem:[%s13] sm:$0xff]
        %v1654 = vld [vmem:[%s13 + $0x8] sm:$0xff]
        %v1655 = vld [vmem:[%s13 + $0x10] sm:$0xff]
        %v1656 = vld [vmem:[%s13 + $0x18] sm:$0xff]
        %v1657 = vld [vmem:[%s13 + $0x20] sm:$0xff]
        %v1658 = vld [vmem:[%s13 + $0x28] sm:$0xff]
        %v1659 = vld [vmem:[%s13 + $0x30] sm:$0xff]
        %v1660 = vld [vmem:[%s13 + $0x38] sm:$0xff]
        %v1661 = vmul.f32 %v1653, 8.0
        %v1662 = vmul.f32 %v1654, 8.0
        %v1663 = vmul.f32 %v1655, 8.0
        %v1664 = vmul.f32 %v1656, 8.0
        %v1665 = vmul.f32 %v1657, 8.0
        %v1666 = vmul.f32 %v1658, 8.0
        %v1667 = vmul.f32 %v1659, 8.0
        %v1668 = vmul.f32 %v1660, 8.0
        %1670 = vset.pattern.permute.xlu0 0
        %1671 = vperm.xlu0 %1670, %v1661
        %v1672 = vpop.permute.xlu0 %1671
        %1675 = vset.pattern.permute.xlu0 0
        %1676 = vperm.xlu0 %1675, %v1662
        %v1677 = vpop.permute.xlu0 %1676
        %1680 = vset.pattern.permute.xlu0 0
        %1681 = vperm.xlu0 %1680, %v1663
        %v1682 = vpop.permute.xlu0 %1681
        %1685 = vset.pattern.permute.xlu0 0
        %1686 = vperm.xlu0 %1685, %v1664
        %v1687 = vpop.permute.xlu0 %1686
        %1690 = vset.pattern.permute.xlu0 0
        %1691 = vperm.xlu0 %1690, %v1665
        %v1692 = vpop.permute.xlu0 %1691
        %1695 = vset.pattern.permute.xlu0 0
        %1696 = vperm.xlu0 %1695, %v1666
        %v1697 = vpop.permute.xlu0 %1696
        %1700 = vset.pattern.permute.xlu0 0
        %1701 = vperm.xlu0 %1700, %v1667
        %v1702 = vpop.permute.xlu0 %1701
        %1705 = vset.pattern.permute.xlu0 0
        %1706 = vperm.xlu0 %1705, %v1668
        %v1707 = vpop.permute.xlu0 %1706
        %v1717 = vunpack.c.l.b16 %v1643
        %v1718 = vunpack.c.l.b16 %v1644
        %v1719 = vunpack.c.l.b16 %v1645
        %v1720 = vunpack.c.l.b16 %v1646
        %v1721 = vunpack.c.l.b16 %v1647
        %v1722 = vunpack.c.l.b16 %v1648
        %v1723 = vunpack.c.l.b16 %v1649
        %v1724 = vunpack.c.l.b16 %v1650
        %v1725 = vpack.c.b16 %v1718, %v1717
        %v1726 = vpack.c.b16 %v1720, %v1719
        %v1727 = vpack.c.b16 %v1722, %v1721
        %v1728 = vpack.c.b16 %v1724, %v1723
        %v1730 = vsel %vm1076, %v1725, 0
        %v1733 = vsel %vm1076, %v1726, 0
        %v1736 = vsel %vm1076, %v1727, 0
        %v1739 = vsel %vm1076, %v1728, 0
        %1741 = vmatprep.subr.bf16.mxu0 0
        %1742 = vmatpush1.bf16.msra.mxu0 %v1651
        %1743 = vmatprep.subr.bf16.mxu0 0
        %1744 = vmatpush1.bf16.msra.mxu0 %v1652
        %1745 = vmatprep.subr.bf16.mxu0 0
        %1746 = vmatpush1.bf16.msra.mxu0 0
        %1747 = vmatprep.subr.bf16.mxu0 0
        %1748 = vmatpush1.bf16.msra.mxu0 0
        %1749 = vmatprep.subr.bf16.mxu0 0
        %1750 = vmatpush1.bf16.msra.mxu0 0
        %1751 = vmatprep.subr.bf16.mxu0 0
        %1752 = vmatpush1.bf16.msra.mxu0 0
        %1753 = vmatprep.subr.bf16.mxu0 0
        %1754 = vmatpush1.bf16.msra.mxu0 0
        %1755 = vmatprep.subr.bf16.mxu0 0
        %1756 = vmatpush1.bf16.msra.mxu0 0
        %1757 = vmatprep.subr.bf16.mxu0 0
        %1758 = vmatpush1.bf16.msra.mxu0 0
        %1759 = vmatprep.subr.bf16.mxu0 0
        %1760 = vmatpush1.bf16.msra.mxu0 0
        %1761 = vmatprep.subr.bf16.mxu0 0
        %1762 = vmatpush1.bf16.msra.mxu0 0
        %1763 = vmatprep.subr.bf16.mxu0 0
        %1764 = vmatpush1.bf16.msra.mxu0 0
        %1765 = vmatprep.subr.bf16.mxu0 0
        %1766 = vmatpush1.bf16.msra.mxu0 0
        %1767 = vmatprep.subr.bf16.mxu0 0
        %1768 = vmatpush1.bf16.msra.mxu0 0
        %1769 = vmatprep.subr.bf16.mxu0 0
        %1770 = vmatpush1.bf16.msra.mxu0 0
        %1771 = vmatprep.subr.bf16.mxu0 0
        %1772 = vmatpush1.bf16.msra.mxu0 0
        %1773 = vmatprep.mubr.bf16.mxu0 0
        %1774 = vmatmul.mubr.bf16.gmra.mrb[0].mxu0 %v1730
        %v1775 = vpop.f32.mrb[0].mxu0
        %v1776 = vadd.f32 %v1672, %v1775
        %v1777 = vpop.f32.mrb[0].mxu0
        %v1778 = vpop.f32.mrb[0].mxu0
        %v1779 = vadd.f32 %v1677, %v1778
        %v1780 = vpop.f32.mrb[0].mxu0
        %1781 = vmatprep.mubr.bf16.mxu0 0
        %1782 = vmatmul.mubr.bf16.gmra.mrb[0].mxu0 %v1733
        %v1783 = vpop.f32.mrb[0].mxu0
        %v1784 = vadd.f32 %v1682, %v1783
        %v1785 = vpop.f32.mrb[0].mxu0
        %v1786 = vpop.f32.mrb[0].mxu0
        %v1787 = vadd.f32 %v1687, %v1786
        %v1788 = vpop.f32.mrb[0].mxu0
        %1789 = vmatprep.mubr.bf16.mxu0 0
        %1790 = vmatmul.mubr.bf16.gmra.mrb[0].mxu0 %v1736
        %v1791 = vpop.f32.mrb[0].mxu0
        %v1792 = vadd.f32 %v1692, %v1791
        %v1793 = vpop.f32.mrb[0].mxu0
        %v1794 = vpop.f32.mrb[0].mxu0
        %v1795 = vadd.f32 %v1697, %v1794
        %v1796 = vpop.f32.mrb[0].mxu0
        %1797 = vmatprep.mubr.bf16.mxu0 0
        %1798 = vmatmul.mubr.bf16.gmra.mrb[0].mxu0 %v1739
        %v1799 = vpop.f32.mrb[0].mxu0
        %v1800 = vadd.f32 %v1702, %v1799
        %v1801 = vpop.f32.mrb[0].mxu0
        %v1802 = vpop.f32.mrb[0].mxu0
        %v1803 = vadd.f32 %v1707, %v1802
        %v1804 = vpop.f32.mrb[0].mxu0
        %1805 = vdwg.mxu0
        %v1806 = vmax.f32 %v1776, 0.0
        %v1807 = vmax.f32 %v1779, 0.0
        %v1808 = vmax.f32 %v1784, 0.0
        %v1809 = vmax.f32 %v1787, 0.0
        %v1810 = vmax.f32 %v1792, 0.0
        %v1811 = vmax.f32 %v1795, 0.0
        %v1812 = vmax.f32 %v1800, 0.0
        %v1813 = vmax.f32 %v1803, 0.0
        %v1814 = vld [vmem:[%s779] sm:$0xf]
        %v1815 = vld [vmem:[%s779 + $0x4] sm:$0xf]
        %v1818 = vunpack.c.l.b16 %v1814
        %v1819 = vunpack.c.l.b16 %v1815
        %v1820 = vpack.c.b16 %v1819, %v1818
        %1822 = vmatprep.subr.bf16.mxu0 0
        %1823 = vmatpush1.bf16.msra.mxu0 %v1820
        %1824 = vmatprep.subr.bf16.mxu0 0
        %1825 = vmatpush1.bf16.msra.mxu0 0
        %1826 = vmatprep.subr.bf16.mxu0 0
        %1827 = vmatpush1.bf16.msra.mxu0 0
        %1828 = vmatprep.subr.bf16.mxu0 0
        %1829 = vmatpush1.bf16.msra.mxu0 0
        %1830 = vmatprep.subr.bf16.mxu0 0
        %1831 = vmatpush1.bf16.msra.mxu0 0
        %1832 = vmatprep.subr.bf16.mxu0 0
        %1833 = vmatpush1.bf16.msra.mxu0 0
        %1834 = vmatprep.subr.bf16.mxu0 0
        %1835 = vmatpush1.bf16.msra.mxu0 0
        %1836 = vmatprep.subr.bf16.mxu0 0
        %1837 = vmatpush1.bf16.msra.mxu0 0
        %1838 = vmatprep.subr.bf16.mxu0 0
        %1839 = vmatpush1.bf16.msra.mxu0 0
        %1840 = vmatprep.subr.bf16.mxu0 0
        %1841 = vmatpush1.bf16.msra.mxu0 0
        %1842 = vmatprep.subr.bf16.mxu0 0
        %1843 = vmatpush1.bf16.msra.mxu0 0
        %1844 = vmatprep.subr.bf16.mxu0 0
        %1845 = vmatpush1.bf16.msra.mxu0 0
        %1846 = vmatprep.subr.bf16.mxu0 0
        %1847 = vmatpush1.bf16.msra.mxu0 0
        %1848 = vmatprep.subr.bf16.mxu0 0
        %1849 = vmatpush1.bf16.msra.mxu0 0
        %1850 = vmatprep.subr.bf16.mxu0 0
        %1851 = vmatpush1.bf16.msra.mxu0 0
        %1852 = vmatprep.subr.bf16.mxu0 0
        %1853 = vmatpush1.bf16.msra.mxu0 0
        %1854 = vmatprep.mubr.bf16.mxu0 0
        %1855 = vmatmul.mubr.bf16.gmra.mrb[0].mxu0 %v982
        %v1856 = vpop.f32.mrb[0].mxu0
        %v1857 = vadd.f32 %v947, %v1856
        %v1858 = vpop.f32.mrb[0].mxu0
        %v1859 = vpop.f32.mrb[0].mxu0
        %v1860 = vadd.f32 %v952, %v1859
        %v1861 = vpop.f32.mrb[0].mxu0
        %1862 = vmatprep.mubr.bf16.mxu0 0
        %1863 = vmatmul.mubr.bf16.gmra.mrb[0].mxu0 %v985
        %v1864 = vpop.f32.mrb[0].mxu0
        %v1865 = vadd.f32 %v957, %v1864
        %v1866 = vpop.f32.mrb[0].mxu0
        %v1867 = vpop.f32.mrb[0].mxu0
        %v1868 = vadd.f32 %v962, %v1867
        %v1869 = vpop.f32.mrb[0].mxu0
        %1870 = vdwg.mxu0
        %v1871 = vpack.c.bf16 %v1860, %v1857
        %v1872 = vpack.c.bf16 %v1868, %v1865
        %1873 = vmatprep.subr.bf16.mxu0 0
        %1874 = vmatpush1.bf16.msra.mxu0 %v1871
        %1875 = vmatprep.subr.bf16.mxu0 0
        %1876 = vmatpush1.bf16.msra.mxu0 %v1872
        %1877 = vmatprep.subr.bf16.mxu0 0
        %1878 = vmatpush1.bf16.msra.mxu0 0
        %1879 = vmatprep.subr.bf16.mxu0 0
        %1880 = vmatpush1.bf16.msra.mxu0 0
        %1881 = vmatprep.subr.bf16.mxu0 0
        %1882 = vmatpush1.bf16.msra.mxu0 0
        %1883 = vmatprep.subr.bf16.mxu0 0
        %1884 = vmatpush1.bf16.msra.mxu0 0
        %1885 = vmatprep.subr.bf16.mxu0 0
        %1886 = vmatpush1.bf16.msra.mxu0 0
        %1887 = vmatprep.subr.bf16.mxu0 0
        %1888 = vmatpush1.bf16.msra.mxu0 0
        %1889 = vmatprep.subr.bf16.mxu0 0
        %1890 = vmatpush1.bf16.msra.mxu0 0
        %1891 = vmatprep.subr.bf16.mxu0 0
        %1892 = vmatpush1.bf16.msra.mxu0 0
        %1893 = vmatprep.subr.bf16.mxu0 0
        %1894 = vmatpush1.bf16.msra.mxu0 0
        %1895 = vmatprep.subr.bf16.mxu0 0
        %1896 = vmatpush1.bf16.msra.mxu0 0
        %1897 = vmatprep.subr.bf16.mxu0 0
        %1898 = vmatpush1.bf16.msra.mxu0 0
        %1899 = vmatprep.subr.bf16.mxu0 0
        %1900 = vmatpush1.bf16.msra.mxu0 0
        %1901 = vmatprep.subr.bf16.mxu0 0
        %1902 = vmatpush1.bf16.msra.mxu0 0
        %1903 = vmatprep.subr.bf16.mxu0 0
        %1904 = vmatpush1.bf16.msra.mxu0 0
        %1905 = vmatprep.mubr.bf16.mxu0 0
        %1906 = vmatmul.mubr.bf16.gmra.mrb[0].mxu0 %v1078
        %v1907 = vpop.f32.mrb[0].mxu0
        %v1908 = vadd.f32 %v1049, %v1907
        %v1909 = vpop.f32.mrb[0].mxu0
        %v1910 = vpop.f32.mrb[0].mxu0
        %v1911 = vadd.f32 %v1054, %v1910
        %v1912 = vpop.f32.mrb[0].mxu0
        %1913 = vmatprep.mubr.bf16.mxu0 0
        %1914 = vmatmul.mubr.bf16.gmra.mrb[0].mxu0 %v1081
        %v1915 = vpop.f32.mrb[0].mxu0
        %v1916 = vadd.f32 %v1059, %v1915
        %v1917 = vpop.f32.mrb[0].mxu0
        %v1918 = vpop.f32.mrb[0].mxu0
        %v1919 = vadd.f32 %v1064, %v1918
        %v1920 = vpop.f32.mrb[0].mxu0
        %1921 = vdwg.mxu0
        %v1922 = vpack.c.bf16 %v1911, %v1908
        %v1923 = vpack.c.bf16 %v1919, %v1916
        %1924 = vmatprep.subr.bf16.mxu0 0
        %1925 = vmatpush1.bf16.msra.mxu0 %v910
        %1926 = vmatprep.subr.bf16.mxu0 0
        %1927 = vmatpush1.bf16.msra.mxu0 %v911
        %1928 = vmatprep.subr.bf16.mxu0 0
        %1929 = vmatpush1.bf16.msra.mxu0 %v912
        %1930 = vmatprep.subr.bf16.mxu0 0
        %1931 = vmatpush1.bf16.msra.mxu0 %v913
        %1932 = vmatprep.subr.bf16.mxu0 0
        %1933 = vmatpush1.bf16.msra.mxu0 %v914
        %1934 = vmatprep.subr.bf16.mxu0 0
        %1935 = vmatpush1.bf16.msra.mxu0 %v915
        %1936 = vmatprep.subr.bf16.mxu0 0
        %1937 = vmatpush1.bf16.msra.mxu0 %v916
        %1938 = vmatprep.subr.bf16.mxu0 0
        %1939 = vmatpush1.bf16.msra.mxu0 %v917
        %1940 = vmatprep.subr.bf16.mxu0 0
        %1941 = vmatpush1.bf16.msra.mxu0 0
        %1942 = vmatprep.subr.bf16.mxu0 0
        %1943 = vmatpush1.bf16.msra.mxu0 0
        %1944 = vmatprep.subr.bf16.mxu0 0
        %1945 = vmatpush1.bf16.msra.mxu0 0
        %1946 = vmatprep.subr.bf16.mxu0 0
        %1947 = vmatpush1.bf16.msra.mxu0 0
        %1948 = vmatprep.subr.bf16.mxu0 0
        %1949 = vmatpush1.bf16.msra.mxu0 0
        %1950 = vmatprep.subr.bf16.mxu0 0
        %1951 = vmatpush1.bf16.msra.mxu0 0
        %1952 = vmatprep.subr.bf16.mxu0 0
        %1953 = vmatpush1.bf16.msra.mxu0 0
        %1954 = vmatprep.subr.bf16.mxu0 0
        %1955 = vmatpush1.bf16.msra.mxu0 0
        %1956 = vmatprep.mubr.bf16.mxu0 0
        %1957 = vmatmul.mubr.bf16.gmra.mrb[0].mxu0 %v1922
        %v1958 = vpop.f32.mrb[0].mxu0
        %v1959 = vadd.f32 0.0, %v1958
        %v1960 = vpop.f32.mrb[0].mxu0
        %v1961 = vpop.f32.mrb[0].mxu0
        %v1962 = vadd.f32 0.0, %v1961
        %v1963 = vpop.f32.mrb[0].mxu0
        %1964 = vmatprep.mubr.bf16.mxu0 0
        %1965 = vmatmul.mubr.bf16.gmra.mrb[0].mxu0 %v1923
        %v1966 = vpop.f32.mrb[0].mxu0
        %v1967 = vadd.f32 0.0, %v1966
        %v1968 = vpop.f32.mrb[0].mxu0
        %v1969 = vpop.f32.mrb[0].mxu0
        %v1970 = vadd.f32 0.0, %v1969
        %v1971 = vpop.f32.mrb[0].mxu0
        %1972 = vdwg.mxu0
        %v1973 = vmul.f32 %v1959, %v1187
        %v1974 = vmul.f32 %v1962, %v1187
        %v1975 = vmul.f32 %v1967, %v1187
        %v1976 = vmul.f32 %v1970, %v1187
        %v1977 = vadd.f32 %v1973, %v1195
        %v1978 = vadd.f32 %v1974, %v1195
        %v1979 = vadd.f32 %v1975, %v1195
        %v1980 = vadd.f32 %v1976, %v1195
        %v1981 = vmax.f32 %v1977, 0.0
        %v1982 = vmax.f32 %v1978, 0.0
        %v1983 = vmax.f32 %v1979, 0.0
        %v1984 = vmax.f32 %v1980, 0.0
        %v1985 = vpack.c.bf16 %v1982, %v1981
        %v1986 = vpack.c.bf16 %v1984, %v1983
        %1987 = vmatprep.subr.bf16.mxu0 0
        %1988 = vmatpush1.bf16.msra.mxu0 %v1985
        %1989 = vmatprep.subr.bf16.mxu0 0
        %1990 = vmatpush1.bf16.msra.mxu0 %v1986
        %1991 = vmatprep.subr.bf16.mxu0 0
        %1992 = vmatpush1.bf16.msra.mxu0 0
        %1993 = vmatprep.subr.bf16.mxu0 0
        %1994 = vmatpush1.bf16.msra.mxu0 0
        %1995 = vmatprep.subr.bf16.mxu0 0
        %1996 = vmatpush1.bf16.msra.mxu0 0
        %1997 = vmatprep.subr.bf16.mxu0 0
        %1998 = vmatpush1.bf16.msra.mxu0 0
        %1999 = vmatprep.subr.bf16.mxu0 0
        %2000 = vmatpush1.bf16.msra.mxu0 0
        %2001 = vmatprep.subr.bf16.mxu0 0
        %2002 = vmatpush1.bf16.msra.mxu0 0
        %2003 = vmatprep.subr.bf16.mxu0 0
        %2004 = vmatpush1.bf16.msra.mxu0 0
        %2005 = vmatprep.subr.bf16.mxu0 0
        %2006 = vmatpush1.bf16.msra.mxu0 0
        %2007 = vmatprep.subr.bf16.mxu0 0
        %2008 = vmatpush1.bf16.msra.mxu0 0
        %2009 = vmatprep.subr.bf16.mxu0 0
        %2010 = vmatpush1.bf16.msra.mxu0 0
        %2011 = vmatprep.subr.bf16.mxu0 0
        %2012 = vmatpush1.bf16.msra.mxu0 0
        %2013 = vmatprep.subr.bf16.mxu0 0
        %2014 = vmatpush1.bf16.msra.mxu0 0
        %2015 = vmatprep.subr.bf16.mxu0 0
        %2016 = vmatpush1.bf16.msra.mxu0 0
        %2017 = vmatprep.subr.bf16.mxu0 0
        %2018 = vmatpush1.bf16.msra.mxu0 0
        %2019 = vmatprep.mubr.bf16.mxu0 0
        %2020 = vmatmul.mubr.bf16.gmra.mrb[0].mxu0 %v1247
        %v2021 = vpop.f32.mrb[0].mxu0
        %v2022 = vadd.f32 %v1219, %v2021
        %v2023 = vpop.f32.mrb[0].mxu0
        %v2024 = vpop.f32.mrb[0].mxu0
        %v2025 = vadd.f32 %v1224, %v2024
        %v2026 = vpop.f32.mrb[0].mxu0
        %2027 = vmatprep.mubr.bf16.mxu0 0
        %2028 = vmatmul.mubr.bf16.gmra.mrb[0].mxu0 %v1250
        %v2029 = vpop.f32.mrb[0].mxu0
        %v2030 = vadd.f32 %v1229, %v2029
        %v2031 = vpop.f32.mrb[0].mxu0
        %v2032 = vpop.f32.mrb[0].mxu0
        %v2033 = vadd.f32 %v1234, %v2032
        %v2034 = vpop.f32.mrb[0].mxu0
        %2035 = vdwg.mxu0
        %v2036 = vpack.c.bf16 %v2025, %v2022
        %v2037 = vpack.c.bf16 %v2033, %v2030
        %2038 = vmatprep.subr.bf16.mxu0 0
        %2039 = vmatpush1.bf16.msra.mxu0 %v910
        %2040 = vmatprep.subr.bf16.mxu0 0
        %2041 = vmatpush1.bf16.msra.mxu0 %v911
        %2042 = vmatprep.subr.bf16.mxu0 0
        %2043 = vmatpush1.bf16.msra.mxu0 %v912
        %2044 = vmatprep.subr.bf16.mxu0 0
        %2045 = vmatpush1.bf16.msra.mxu0 %v913
        %2046 = vmatprep.subr.bf16.mxu0 0
        %2047 = vmatpush1.bf16.msra.mxu0 %v914
        %2048 = vmatprep.subr.bf16.mxu0 0
        %2049 = vmatpush1.bf16.msra.mxu0 %v915
        %2050 = vmatprep.subr.bf16.mxu0 0
        %2051 = vmatpush1.bf16.msra.mxu0 %v916
        %2052 = vmatprep.subr.bf16.mxu0 0
        %2053 = vmatpush1.bf16.msra.mxu0 %v917
        %2054 = vmatprep.subr.bf16.mxu0 0
        %2055 = vmatpush1.bf16.msra.mxu0 0
        %2056 = vmatprep.subr.bf16.mxu0 0
        %2057 = vmatpush1.bf16.msra.mxu0 0
        %2058 = vmatprep.subr.bf16.mxu0 0
        %2059 = vmatpush1.bf16.msra.mxu0 0
        %2060 = vmatprep.subr.bf16.mxu0 0
        %2061 = vmatpush1.bf16.msra.mxu0 0
        %2062 = vmatprep.subr.bf16.mxu0 0
        %2063 = vmatpush1.bf16.msra.mxu0 0
        %2064 = vmatprep.subr.bf16.mxu0 0
        %2065 = vmatpush1.bf16.msra.mxu0 0
        %2066 = vmatprep.subr.bf16.mxu0 0
        %2067 = vmatpush1.bf16.msra.mxu0 0
        %2068 = vmatprep.subr.bf16.mxu0 0
        %2069 = vmatpush1.bf16.msra.mxu0 0
        %2070 = vmatprep.mubr.bf16.mxu0 0
        %2071 = vmatmul.mubr.bf16.gmra.mrb[0].mxu0 %v2036
        %v2072 = vpop.f32.mrb[0].mxu0
        %v2073 = vadd.f32 0.0, %v2072
        %v2074 = vpop.f32.mrb[0].mxu0
        %v2075 = vpop.f32.mrb[0].mxu0
        %v2076 = vadd.f32 0.0, %v2075
        %v2077 = vpop.f32.mrb[0].mxu0
        %2078 = vmatprep.mubr.bf16.mxu0 0
        %2079 = vmatmul.mubr.bf16.gmra.mrb[0].mxu0 %v2037
        %v2080 = vpop.f32.mrb[0].mxu0
        %v2081 = vadd.f32 0.0, %v2080
        %v2082 = vpop.f32.mrb[0].mxu0
        %v2083 = vpop.f32.mrb[0].mxu0
        %v2084 = vadd.f32 0.0, %v2083
        %v2085 = vpop.f32.mrb[0].mxu0
        %2086 = vdwg.mxu0
        %v2087 = vmul.f32 %v2073, %v1357
        %v2088 = vmul.f32 %v2076, %v1357
        %v2089 = vmul.f32 %v2081, %v1357
        %v2090 = vmul.f32 %v2084, %v1357
        %v2091 = vadd.f32 %v2087, %v1365
        %v2092 = vadd.f32 %v2088, %v1365
        %v2093 = vadd.f32 %v2089, %v1365
        %v2094 = vadd.f32 %v2090, %v1365
        %v2095 = vmax.f32 %v2091, 0.0
        %v2096 = vmax.f32 %v2092, 0.0
        %v2097 = vmax.f32 %v2093, 0.0
        %v2098 = vmax.f32 %v2094, 0.0
        %v2099 = vpack.c.bf16 %v2096, %v2095
        %v2100 = vpack.c.bf16 %v2098, %v2097
        %2101 = vmatprep.subr.bf16.mxu0 0
        %2102 = vmatpush1.bf16.msra.mxu0 %v2099
        %2103 = vmatprep.subr.bf16.mxu0 0
        %2104 = vmatpush1.bf16.msra.mxu0 %v2100
        %2105 = vmatprep.subr.bf16.mxu0 0
        %2106 = vmatpush1.bf16.msra.mxu0 0
        %2107 = vmatprep.subr.bf16.mxu0 0
        %2108 = vmatpush1.bf16.msra.mxu0 0
        %2109 = vmatprep.subr.bf16.mxu0 0
        %2110 = vmatpush1.bf16.msra.mxu0 0
        %2111 = vmatprep.subr.bf16.mxu0 0
        %2112 = vmatpush1.bf16.msra.mxu0 0
        %2113 = vmatprep.subr.bf16.mxu0 0
        %2114 = vmatpush1.bf16.msra.mxu0 0
        %2115 = vmatprep.subr.bf16.mxu0 0
        %2116 = vmatpush1.bf16.msra.mxu0 0
        %2117 = vmatprep.subr.bf16.mxu0 0
        %2118 = vmatpush1.bf16.msra.mxu0 0
        %2119 = vmatprep.subr.bf16.mxu0 0
        %2120 = vmatpush1.bf16.msra.mxu0 0
        %2121 = vmatprep.subr.bf16.mxu0 0
        %2122 = vmatpush1.bf16.msra.mxu0 0
        %2123 = vmatprep.subr.bf16.mxu0 0
        %2124 = vmatpush1.bf16.msra.mxu0 0
        %2125 = vmatprep.subr.bf16.mxu0 0
        %2126 = vmatpush1.bf16.msra.mxu0 0
        %2127 = vmatprep.subr.bf16.mxu0 0
        %2128 = vmatpush1.bf16.msra.mxu0 0
        %2129 = vmatprep.subr.bf16.mxu0 0
        %2130 = vmatpush1.bf16.msra.mxu0 0
        %2131 = vmatprep.subr.bf16.mxu0 0
        %2132 = vmatpush1.bf16.msra.mxu0 0
        %2133 = vmatprep.mubr.bf16.mxu0 0
        %2134 = vmatmul.mubr.bf16.gmra.mrb[0].mxu0 %v1417
        %v2135 = vpop.f32.mrb[0].mxu0
        %v2136 = vadd.f32 %v1389, %v2135
        %v2137 = vpop.f32.mrb[0].mxu0
        %v2138 = vpop.f32.mrb[0].mxu0
        %v2139 = vadd.f32 %v1394, %v2138
        %v2140 = vpop.f32.mrb[0].mxu0
        %2141 = vmatprep.mubr.bf16.mxu0 0
        %2142 = vmatmul.mubr.bf16.gmra.mrb[0].mxu0 %v1420
        %v2143 = vpop.f32.mrb[0].mxu0
        %v2144 = vadd.f32 %v1399, %v2143
        %v2145 = vpop.f32.mrb[0].mxu0
        %v2146 = vpop.f32.mrb[0].mxu0
        %v2147 = vadd.f32 %v1404, %v2146
        %v2148 = vpop.f32.mrb[0].mxu0
        %2149 = vdwg.mxu0
        %v2150 = vpack.c.bf16 %v2139, %v2136
        %v2151 = vpack.c.bf16 %v2147, %v2144
        %2152 = vmatprep.subr.bf16.mxu0 0
        %2153 = vmatpush1.bf16.msra.mxu0 %v910
        %2154 = vmatprep.subr.bf16.mxu0 0
        %2155 = vmatpush1.bf16.msra.mxu0 %v911
        %2156 = vmatprep.subr.bf16.mxu0 0
        %2157 = vmatpush1.bf16.msra.mxu0 %v912
        %2158 = vmatprep.subr.bf16.mxu0 0
        %2159 = vmatpush1.bf16.msra.mxu0 %v913
        %2160 = vmatprep.subr.bf16.mxu0 0
        %2161 = vmatpush1.bf16.msra.mxu0 %v914
        %2162 = vmatprep.subr.bf16.mxu0 0
        %2163 = vmatpush1.bf16.msra.mxu0 %v915
        %2164 = vmatprep.subr.bf16.mxu0 0
        %2165 = vmatpush1.bf16.msra.mxu0 %v916
        %2166 = vmatprep.subr.bf16.mxu0 0
        %2167 = vmatpush1.bf16.msra.mxu0 %v917
        %2168 = vmatprep.subr.bf16.mxu0 0
        %2169 = vmatpush1.bf16.msra.mxu0 0
        %2170 = vmatprep.subr.bf16.mxu0 0
        %2171 = vmatpush1.bf16.msra.mxu0 0
        %2172 = vmatprep.subr.bf16.mxu0 0
        %2173 = vmatpush1.bf16.msra.mxu0 0
        %2174 = vmatprep.subr.bf16.mxu0 0
        %2175 = vmatpush1.bf16.msra.mxu0 0
        %2176 = vmatprep.subr.bf16.mxu0 0
        %2177 = vmatpush1.bf16.msra.mxu0 0
        %2178 = vmatprep.subr.bf16.mxu0 0
        %2179 = vmatpush1.bf16.msra.mxu0 0
        %2180 = vmatprep.subr.bf16.mxu0 0
        %2181 = vmatpush1.bf16.msra.mxu0 0
        %2182 = vmatprep.subr.bf16.mxu0 0
        %2183 = vmatpush1.bf16.msra.mxu0 0
        %2184 = vmatprep.mubr.bf16.mxu0 0
        %2185 = vmatmul.mubr.bf16.gmra.mrb[0].mxu0 %v2150
        %v2186 = vpop.f32.mrb[0].mxu0
        %v2187 = vadd.f32 0.0, %v2186
        %v2188 = vpop.f32.mrb[0].mxu0
        %v2189 = vpop.f32.mrb[0].mxu0
        %v2190 = vadd.f32 0.0, %v2189
        %v2191 = vpop.f32.mrb[0].mxu0
        %2192 = vmatprep.mubr.bf16.mxu0 0
        %2193 = vmatmul.mubr.bf16.gmra.mrb[0].mxu0 %v2151
        %v2194 = vpop.f32.mrb[0].mxu0
        %v2195 = vadd.f32 0.0, %v2194
        %v2196 = vpop.f32.mrb[0].mxu0
        %v2197 = vpop.f32.mrb[0].mxu0
        %v2198 = vadd.f32 0.0, %v2197
        %v2199 = vpop.f32.mrb[0].mxu0
        %2200 = vdwg.mxu0
        %v2201 = vmul.f32 %v2187, %v1527
        %v2202 = vmul.f32 %v2190, %v1527
        %v2203 = vmul.f32 %v2195, %v1527
        %v2204 = vmul.f32 %v2198, %v1527
        %v2205 = vadd.f32 %v2201, %v1535
        %v2206 = vadd.f32 %v2202, %v1535
        %v2207 = vadd.f32 %v2203, %v1535
        %v2208 = vadd.f32 %v2204, %v1535
        %v2209 = vmax.f32 %v2205, 0.0
        %v2210 = vmax.f32 %v2206, 0.0
        %v2211 = vmax.f32 %v2207, 0.0
        %v2212 = vmax.f32 %v2208, 0.0
        %v2213 = vpack.c.bf16 %v2210, %v2209
        %v2214 = vpack.c.bf16 %v2212, %v2211
        %2215 = vmatprep.subr.bf16.mxu0 0
        %2216 = vmatpush1.bf16.msra.mxu0 %v1578
        %2217 = vmatprep.subr.bf16.mxu0 0
        %2218 = vmatpush1.bf16.msra.mxu0 %v1579
        %2219 = vmatprep.subr.bf16.mxu0 0
        %2220 = vmatpush1.bf16.msra.mxu0 %v1580
        %2221 = vmatprep.subr.bf16.mxu0 0
        %2222 = vmatpush1.bf16.msra.mxu0 %v1581
        %2223 = vmatprep.subr.bf16.mxu0 0
        %2224 = vmatpush1.bf16.msra.mxu0 %v1582
        %2225 = vmatprep.subr.bf16.mxu0 0
        %2226 = vmatpush1.bf16.msra.mxu0 %v1583
        %2227 = vmatprep.subr.bf16.mxu0 0
        %2228 = vmatpush1.bf16.msra.mxu0 %v1584
        %2229 = vmatprep.subr.bf16.mxu0 0
        %2230 = vmatpush1.bf16.msra.mxu0 %v1585
        %2231 = vmatprep.subr.bf16.mxu0 0
        %2232 = vmatpush1.bf16.msra.mxu0 0
        %2233 = vmatprep.subr.bf16.mxu0 0
        %2234 = vmatpush1.bf16.msra.mxu0 0
        %2235 = vmatprep.subr.bf16.mxu0 0
        %2236 = vmatpush1.bf16.msra.mxu0 0
        %2237 = vmatprep.subr.bf16.mxu0 0
        %2238 = vmatpush1.bf16.msra.mxu0 0
        %2239 = vmatprep.subr.bf16.mxu0 0
        %2240 = vmatpush1.bf16.msra.mxu0 0
        %2241 = vmatprep.subr.bf16.mxu0 0
        %2242 = vmatpush1.bf16.msra.mxu0 0
        %2243 = vmatprep.subr.bf16.mxu0 0
        %2244 = vmatpush1.bf16.msra.mxu0 0
        %2245 = vmatprep.subr.bf16.mxu0 0
        %2246 = vmatpush1.bf16.msra.mxu0 0
        %2247 = vmatprep.mubr.bf16.mxu0 0
        %2248 = vmatmul.mubr.bf16.gmra.mrb[0].mxu0 %v2213
        %v2249 = vpop.f32.mrb[0].mxu0
        %v2250 = vadd.f32 0.0, %v2249
        %v2251 = vpop.f32.mrb[0].mxu0
        %v2252 = vpop.f32.mrb[0].mxu0
        %v2253 = vadd.f32 0.0, %v2252
        %v2254 = vpop.f32.mrb[0].mxu0
        %2255 = vmatprep.mubr.bf16.mxu0 0
        %2256 = vmatmul.mubr.bf16.gmra.mrb[0].mxu0 %v2214
        %v2257 = vpop.f32.mrb[0].mxu0
        %v2258 = vadd.f32 0.0, %v2257
        %v2259 = vpop.f32.mrb[0].mxu0
        %v2260 = vpop.f32.mrb[0].mxu0
        %v2261 = vadd.f32 0.0, %v2260
        %v2262 = vpop.f32.mrb[0].mxu0
        %2263 = vdwg.mxu0
        %v2264 = vpack.c.bf16 %v2253, %v2250
        %v2265 = vpack.c.bf16 %v2261, %v2258
        %2266 = vmatprep.subr.bf16.mxu0 0
        %2267 = vmatpush1.bf16.msra.mxu0 %v2264
        %2268 = vmatprep.subr.bf16.mxu0 0
        %2269 = vmatpush1.bf16.msra.mxu0 %v2265
        %2270 = vmatprep.subr.bf16.mxu0 0
        %2271 = vmatpush1.bf16.msra.mxu0 0
        %2272 = vmatprep.subr.bf16.mxu0 0
        %2273 = vmatpush1.bf16.msra.mxu0 0
        %2274 = vmatprep.subr.bf16.mxu0 0
        %2275 = vmatpush1.bf16.msra.mxu0 0
        %2276 = vmatprep.subr.bf16.mxu0 0
        %2277 = vmatpush1.bf16.msra.mxu0 0
        %2278 = vmatprep.subr.bf16.mxu0 0
        %2279 = vmatpush1.bf16.msra.mxu0 0
        %2280 = vmatprep.subr.bf16.mxu0 0
        %2281 = vmatpush1.bf16.msra.mxu0 0
        %2282 = vmatprep.subr.bf16.mxu0 0
        %2283 = vmatpush1.bf16.msra.mxu0 0
        %2284 = vmatprep.subr.bf16.mxu0 0
        %2285 = vmatpush1.bf16.msra.mxu0 0
        %2286 = vmatprep.subr.bf16.mxu0 0
        %2287 = vmatpush1.bf16.msra.mxu0 0
        %2288 = vmatprep.subr.bf16.mxu0 0
        %2289 = vmatpush1.bf16.msra.mxu0 0
        %2290 = vmatprep.subr.bf16.mxu0 0
        %2291 = vmatpush1.bf16.msra.mxu0 0
        %2292 = vmatprep.subr.bf16.mxu0 0
        %2293 = vmatpush1.bf16.msra.mxu0 0
        %2294 = vmatprep.subr.bf16.mxu0 0
        %2295 = vmatpush1.bf16.msra.mxu0 0
        %2296 = vmatprep.subr.bf16.mxu0 0
        %2297 = vmatpush1.bf16.msra.mxu0 0
        %2298 = vmatprep.mubr.bf16.mxu0 0
        %2299 = vmatmul.mubr.bf16.gmra.mrb[0].mxu0 %v1730
        %v2300 = vpop.f32.mrb[0].mxu0
        %v2301 = vadd.f32 %v1672, %v2300
        %v2302 = vpop.f32.mrb[0].mxu0
        %v2303 = vpop.f32.mrb[0].mxu0
        %v2304 = vadd.f32 %v1677, %v2303
        %v2305 = vpop.f32.mrb[0].mxu0
        %2306 = vmatprep.mubr.bf16.mxu0 0
        %2307 = vmatmul.mubr.bf16.gmra.mrb[0].mxu0 %v1733
        %v2308 = vpop.f32.mrb[0].mxu0
        %v2309 = vadd.f32 %v1682, %v2308
        %v2310 = vpop.f32.mrb[0].mxu0
        %v2311 = vpop.f32.mrb[0].mxu0
        %v2312 = vadd.f32 %v1687, %v2311
        %v2313 = vpop.f32.mrb[0].mxu0
        %2314 = vmatprep.mubr.bf16.mxu0 0
        %2315 = vmatmul.mubr.bf16.gmra.mrb[0].mxu0 %v1736
        %v2316 = vpop.f32.mrb[0].mxu0
        %v2317 = vadd.f32 %v1692, %v2316
        %v2318 = vpop.f32.mrb[0].mxu0
        %v2319 = vpop.f32.mrb[0].mxu0
        %v2320 = vadd.f32 %v1697, %v2319
        %v2321 = vpop.f32.mrb[0].mxu0
        %2322 = vmatprep.mubr.bf16.mxu0 0
        %2323 = vmatmul.mubr.bf16.gmra.mrb[0].mxu0 %v1739
        %v2324 = vpop.f32.mrb[0].mxu0
        %v2325 = vadd.f32 %v1702, %v2324
        %v2326 = vpop.f32.mrb[0].mxu0
        %v2327 = vpop.f32.mrb[0].mxu0
        %v2328 = vadd.f32 %v1707, %v2327
        %v2329 = vpop.f32.mrb[0].mxu0
        %2330 = vdwg.mxu0
        %v2331 = vmax.f32 %v2301, 0.0
        %v2332 = vmax.f32 %v2304, 0.0
        %v2333 = vmax.f32 %v2309, 0.0
        %v2334 = vmax.f32 %v2312, 0.0
        %v2335 = vmax.f32 %v2317, 0.0
        %v2336 = vmax.f32 %v2320, 0.0
        %v2337 = vmax.f32 %v2325, 0.0
        %v2338 = vmax.f32 %v2328, 0.0
        %v2339 = vld [vmem:[%s889] sm:$0x3]
        %v2340 = vlaneseq
        %v2341 = vshrl.u32 %v2340, 7
        %v2342 = vsub.s32 0, %v2341
        %v2343 = vrot.slane %v2339, %v2342
        %v2344 = vmul.f32 %v2343, %v1806
        %v2345 = vmul.f32 %v2343, %v1807
        %v2346 = vmul.f32 %v2343, %v1808
        %v2347 = vmul.f32 %v2343, %v1809
        %v2348 = vmul.f32 %v2343, %v1810
        %v2349 = vmul.f32 %v2343, %v1811
        %v2350 = vmul.f32 %v2343, %v1812
        %v2351 = vmul.f32 %v2343, %v1813
        %v2352 = vlaneseq
        %v2353 = vshrl.u32 %v2352, 7
        %v2354 = vsub.s32 1, %v2353
        %v2355 = vrot.slane %v2339, %v2354
        %v2356 = vmul.f32 %v2355, %v2331
        %v2357 = vmul.f32 %v2355, %v2332
        %v2358 = vmul.f32 %v2355, %v2333
        %v2359 = vmul.f32 %v2355, %v2334
        %v2360 = vmul.f32 %v2355, %v2335
        %v2361 = vmul.f32 %v2355, %v2336
        %v2362 = vmul.f32 %v2355, %v2337
        %v2363 = vmul.f32 %v2355, %v2338
        %v2364 = vadd.f32 %v2344, %v2356
        %v2365 = vadd.f32 %v2345, %v2357
        %v2366 = vadd.f32 %v2346, %v2358
        %v2367 = vadd.f32 %v2347, %v2359
        %v2368 = vadd.f32 %v2348, %v2360
        %v2369 = vadd.f32 %v2349, %v2361
        %v2370 = vadd.f32 %v2350, %v2362
        %v2371 = vadd.f32 %v2351, %v2363
        %v2372 = vld [vmem:[%s880] sm:$0xff]
        %v2373 = vld [vmem:[%s880 + $0x8] sm:$0xff]
        %v2374 = vmul.f32 %v2343, %v2372
        %v2375 = vmul.f32 %v2343, %v2373
        %v2376 = vld [vmem:[%s885] sm:$0xff]
        %v2377 = vld [vmem:[%s885 + $0x8] sm:$0xff]
        %v2378 = vmul.f32 %v2355, %v2376
        %v2379 = vmul.f32 %v2355, %v2377
        %v2380 = vadd.f32 %v2374, %v2378
        %v2381 = vadd.f32 %v2375, %v2379
        %v2382 = vld [vmem:[%s15] sm:$0xf]
        %v2383 = vld [vmem:[%s15 + $0x4] sm:$0xf]
        %v2384 = vld [vmem:[%s15 + $0x8] sm:$0xf]
        %v2385 = vld [vmem:[%s15 + $0xc] sm:$0xf]
        %v2386 = vld [vmem:[%s15 + $0x10] sm:$0xf]
        %v2387 = vld [vmem:[%s15 + $0x14] sm:$0xf]
        %v2388 = vld [vmem:[%s15 + $0x18] sm:$0xf]
        %v2389 = vld [vmem:[%s15 + $0x1c] sm:$0xf]
        %v2390 = vpack.c.bf16 %v2365, %v2364
        %v2391 = vpack.c.bf16 %v2367, %v2366
        %v2392 = vpack.c.bf16 %v2369, %v2368
        %v2393 = vpack.c.bf16 %v2371, %v2370
        %v2394 = vld [vmem:[%s16] sm:$0xf]
        %v2395 = vld [vmem:[%s16 + $0x4] sm:$0xf]
        %v2396 = vld [vmem:[%s16 + $0x8] sm:$0xf]
        %v2397 = vld [vmem:[%s16 + $0xc] sm:$0xf]
        %v2398 = vld [vmem:[%s16 + $0x10] sm:$0xf]
        %v2399 = vld [vmem:[%s16 + $0x14] sm:$0xf]
        %v2400 = vld [vmem:[%s16 + $0x18] sm:$0xf]
        %v2401 = vld [vmem:[%s16 + $0x1c] sm:$0xf]
        %v2402 = vpack.c.bf16 %v2381, %v2380
        %v2411 = vunpack.c.l.b16 %v2394
        %v2412 = vunpack.c.l.b16 %v2395
        %v2413 = vunpack.c.l.b16 %v2396
        %v2414 = vunpack.c.l.b16 %v2397
        %v2415 = vunpack.c.l.b16 %v2398
        %v2416 = vunpack.c.l.b16 %v2399
        %v2417 = vunpack.c.l.b16 %v2400
        %v2418 = vunpack.c.l.b16 %v2401
        %v2419 = vpack.c.b16 %v2412, %v2411
        %v2420 = vpack.c.b16 %v2414, %v2413
        %v2421 = vpack.c.b16 %v2416, %v2415
        %v2422 = vpack.c.b16 %v2418, %v2417
        %v2424 = vsel %vm980, %v2419, 0
        %v2427 = vsel %vm980, %v2420, 0
        %v2430 = vsel %vm980, %v2421, 0
        %v2433 = vsel %vm980, %v2422, 0
        %2435 = vmatprep.subr.bf16.mxu0 0
        %2436 = vmatpush1.bf16.msra.mxu0 %v2402
        %2437 = vmatprep.subr.bf16.mxu0 0
        %2438 = vmatpush1.bf16.msra.mxu0 0
        %2439 = vmatprep.subr.bf16.mxu0 0
        %2440 = vmatpush1.bf16.msra.mxu0 0
        %2441 = vmatprep.subr.bf16.mxu0 0
        %2442 = vmatpush1.bf16.msra.mxu0 0
        %2443 = vmatprep.subr.bf16.mxu0 0
        %2444 = vmatpush1.bf16.msra.mxu0 0
        %2445 = vmatprep.subr.bf16.mxu0 0
        %2446 = vmatpush1.bf16.msra.mxu0 0
        %2447 = vmatprep.subr.bf16.mxu0 0
        %2448 = vmatpush1.bf16.msra.mxu0 0
        %2449 = vmatprep.subr.bf16.mxu0 0
        %2450 = vmatpush1.bf16.msra.mxu0 0
        %2451 = vmatprep.subr.bf16.mxu0 0
        %2452 = vmatpush1.bf16.msra.mxu0 0
        %2453 = vmatprep.subr.bf16.mxu0 0
        %2454 = vmatpush1.bf16.msra.mxu0 0
        %2455 = vmatprep.subr.bf16.mxu0 0
        %2456 = vmatpush1.bf16.msra.mxu0 0
        %2457 = vmatprep.subr.bf16.mxu0 0
        %2458 = vmatpush1.bf16.msra.mxu0 0
        %2459 = vmatprep.subr.bf16.mxu0 0
        %2460 = vmatpush1.bf16.msra.mxu0 0
        %2461 = vmatprep.subr.bf16.mxu0 0
        %2462 = vmatpush1.bf16.msra.mxu0 0
        %2463 = vmatprep.subr.bf16.mxu0 0
        %2464 = vmatpush1.bf16.msra.mxu0 0
        %2465 = vmatprep.subr.bf16.mxu0 0
        %2466 = vmatpush1.bf16.msra.mxu0 0
        %2467 = vmatprep.mubr.bf16.mxu0 0
        %2468 = vmatmul.mubr.bf16.gmra.mrb[0].mxu0 %v2424
        %v2469 = vpop.f32.mrb[0].mxu0
        %v2470 = vadd.f32 0.0, %v2469
        %v2471 = vpop.f32.mrb[0].mxu0
        %v2472 = vpop.f32.mrb[0].mxu0
        %v2473 = vadd.f32 0.0, %v2472
        %v2474 = vpop.f32.mrb[0].mxu0
        %2475 = vmatprep.mubr.bf16.mxu0 0
        %2476 = vmatmul.mubr.bf16.gmra.mrb[0].mxu0 %v2427
        %v2477 = vpop.f32.mrb[0].mxu0
        %v2478 = vadd.f32 0.0, %v2477
        %v2479 = vpop.f32.mrb[0].mxu0
        %v2480 = vpop.f32.mrb[0].mxu0
        %v2481 = vadd.f32 0.0, %v2480
        %v2482 = vpop.f32.mrb[0].mxu0
        %2483 = vmatprep.mubr.bf16.mxu0 0
        %2484 = vmatmul.mubr.bf16.gmra.mrb[0].mxu0 %v2430
        %v2485 = vpop.f32.mrb[0].mxu0
        %v2486 = vadd.f32 0.0, %v2485
        %v2487 = vpop.f32.mrb[0].mxu0
        %v2488 = vpop.f32.mrb[0].mxu0
        %v2489 = vadd.f32 0.0, %v2488
        %v2490 = vpop.f32.mrb[0].mxu0
        %2491 = vmatprep.mubr.bf16.mxu0 0
        %2492 = vmatmul.mubr.bf16.gmra.mrb[0].mxu0 %v2433
        %v2493 = vpop.f32.mrb[0].mxu0
        %v2494 = vadd.f32 0.0, %v2493
        %v2495 = vpop.f32.mrb[0].mxu0
        %v2496 = vpop.f32.mrb[0].mxu0
        %v2497 = vadd.f32 0.0, %v2496
        %v2498 = vpop.f32.mrb[0].mxu0
        %2499 = vdwg.mxu0
        %v2508 = vunpack.c.l.b16 %v2382
        %v2509 = vunpack.c.l.b16 %v2383
        %v2510 = vunpack.c.l.b16 %v2384
        %v2511 = vunpack.c.l.b16 %v2385
        %v2512 = vunpack.c.l.b16 %v2386
        %v2513 = vunpack.c.l.b16 %v2387
        %v2514 = vunpack.c.l.b16 %v2388
        %v2515 = vunpack.c.l.b16 %v2389
        %v2516 = vpack.c.b16 %v2509, %v2508
        %v2517 = vpack.c.b16 %v2511, %v2510
        %v2518 = vpack.c.b16 %v2513, %v2512
        %v2519 = vpack.c.b16 %v2515, %v2514
        %vm2520 = vcmask 523264
        %v2522 = vsel %vm2520, %v2516, 0
        %v2525 = vsel %vm2520, %v2517, 0
        %v2528 = vsel %vm2520, %v2518, 0
        %v2531 = vsel %vm2520, %v2519, 0
        %2533 = vmatprep.subr.bf16.mxu0 0
        %2534 = vmatpush1.bf16.msra.mxu0 %v2390
        %2535 = vmatprep.subr.bf16.mxu0 0
        %2536 = vmatpush1.bf16.msra.mxu0 %v2391
        %2537 = vmatprep.subr.bf16.mxu0 0
        %2538 = vmatpush1.bf16.msra.mxu0 %v2392
        %2539 = vmatprep.subr.bf16.mxu0 0
        %2540 = vmatpush1.bf16.msra.mxu0 %v2393
        %2541 = vmatprep.subr.bf16.mxu0 0
        %2542 = vmatpush1.bf16.msra.mxu0 0
        %2543 = vmatprep.subr.bf16.mxu0 0
        %2544 = vmatpush1.bf16.msra.mxu0 0
        %2545 = vmatprep.subr.bf16.mxu0 0
        %2546 = vmatpush1.bf16.msra.mxu0 0
        %2547 = vmatprep.subr.bf16.mxu0 0
        %2548 = vmatpush1.bf16.msra.mxu0 0
        %2549 = vmatprep.subr.bf16.mxu0 0
        %2550 = vmatpush1.bf16.msra.mxu0 0
        %2551 = vmatprep.subr.bf16.mxu0 0
        %2552 = vmatpush1.bf16.msra.mxu0 0
        %2553 = vmatprep.subr.bf16.mxu0 0
        %2554 = vmatpush1.bf16.msra.mxu0 0
        %2555 = vmatprep.subr.bf16.mxu0 0
        %2556 = vmatpush1.bf16.msra.mxu0 0
        %2557 = vmatprep.subr.bf16.mxu0 0
        %2558 = vmatpush1.bf16.msra.mxu0 0
        %2559 = vmatprep.subr.bf16.mxu0 0
        %2560 = vmatpush1.bf16.msra.mxu0 0
        %2561 = vmatprep.subr.bf16.mxu0 0
        %2562 = vmatpush1.bf16.msra.mxu0 0
        %2563 = vmatprep.subr.bf16.mxu0 0
        %2564 = vmatpush1.bf16.msra.mxu0 0
        %2565 = vmatprep.mubr.bf16.mxu0 0
        %2566 = vmatmul.mubr.bf16.gmra.mrb[0].mxu0 %v2522
        %v2567 = vpop.f32.mrb[0].mxu0
        %v2568 = vadd.f32 %v2470, %v2567
        %v2569 = vpop.f32.mrb[0].mxu0
        %v2570 = vpop.f32.mrb[0].mxu0
        %v2571 = vadd.f32 %v2473, %v2570
        %v2572 = vpop.f32.mrb[0].mxu0
        %2573 = vmatprep.mubr.bf16.mxu0 0
        %2574 = vmatmul.mubr.bf16.gmra.mrb[0].mxu0 %v2525
        %v2575 = vpop.f32.mrb[0].mxu0
        %v2576 = vadd.f32 %v2478, %v2575
        %v2577 = vpop.f32.mrb[0].mxu0
        %v2578 = vpop.f32.mrb[0].mxu0
        %v2579 = vadd.f32 %v2481, %v2578
        %v2580 = vpop.f32.mrb[0].mxu0
        %2581 = vmatprep.mubr.bf16.mxu0 0
        %2582 = vmatmul.mubr.bf16.gmra.mrb[0].mxu0 %v2528
        %v2583 = vpop.f32.mrb[0].mxu0
        %v2584 = vadd.f32 %v2486, %v2583
        %v2585 = vpop.f32.mrb[0].mxu0
        %v2586 = vpop.f32.mrb[0].mxu0
        %v2587 = vadd.f32 %v2489, %v2586
        %v2588 = vpop.f32.mrb[0].mxu0
        %2589 = vmatprep.mubr.bf16.mxu0 0
        %2590 = vmatmul.mubr.bf16.gmra.mrb[0].mxu0 %v2531
        %v2591 = vpop.f32.mrb[0].mxu0
        %v2592 = vadd.f32 %v2494, %v2591
        %v2593 = vpop.f32.mrb[0].mxu0
        %v2594 = vpop.f32.mrb[0].mxu0
        %v2595 = vadd.f32 %v2497, %v2594
        %v2596 = vpop.f32.mrb[0].mxu0
        %2597 = vdwg.mxu0
        %v2598 = vld [vmem:[%s17] sm:$0xff]
        %v2599 = vld [vmem:[%s17 + $0x8] sm:$0xff]
        %v2600 = vld [vmem:[%s17 + $0x10] sm:$0xff]
        %v2601 = vld [vmem:[%s17 + $0x18] sm:$0xff]
        %v2602 = vld [vmem:[%s17 + $0x20] sm:$0xff]
        %v2603 = vld [vmem:[%s17 + $0x28] sm:$0xff]
        %v2604 = vld [vmem:[%s17 + $0x30] sm:$0xff]
        %v2605 = vld [vmem:[%s17 + $0x38] sm:$0xff]
        %2607 = vset.pattern.permute.xlu0 0
        %2608 = vperm.xlu0 %2607, %v2598
        %v2609 = vpop.permute.xlu0 %2608
        %2612 = vset.pattern.permute.xlu0 0
        %2613 = vperm.xlu0 %2612, %v2599
        %v2614 = vpop.permute.xlu0 %2613
        %2617 = vset.pattern.permute.xlu0 0
        %2618 = vperm.xlu0 %2617, %v2600
        %v2619 = vpop.permute.xlu0 %2618
        %2622 = vset.pattern.permute.xlu0 0
        %2623 = vperm.xlu0 %2622, %v2601
        %v2624 = vpop.permute.xlu0 %2623
        %2627 = vset.pattern.permute.xlu0 0
        %2628 = vperm.xlu0 %2627, %v2602
        %v2629 = vpop.permute.xlu0 %2628
        %2632 = vset.pattern.permute.xlu0 0
        %2633 = vperm.xlu0 %2632, %v2603
        %v2634 = vpop.permute.xlu0 %2633
        %2637 = vset.pattern.permute.xlu0 0
        %2638 = vperm.xlu0 %2637, %v2604
        %v2639 = vpop.permute.xlu0 %2638
        %2642 = vset.pattern.permute.xlu0 0
        %2643 = vperm.xlu0 %2642, %v2605
        %v2644 = vpop.permute.xlu0 %2643
        %v2646 = vadd.f32 %v2568, %v2609
        %v2647 = vadd.f32 %v2571, %v2614
        %v2648 = vadd.f32 %v2576, %v2619
        %v2649 = vadd.f32 %v2579, %v2624
        %v2650 = vadd.f32 %v2584, %v2629
        %v2651 = vadd.f32 %v2587, %v2634
        %v2652 = vadd.f32 %v2592, %v2639
        %v2653 = vadd.f32 %v2595, %v2644
        %v2654 = vmax.f32 %v2646, 0.0
        %v2655 = vmax.f32 %v2647, 0.0
        %v2656 = vmax.f32 %v2648, 0.0
        %v2657 = vmax.f32 %v2649, 0.0
        %v2658 = vmax.f32 %v2650, 0.0
        %v2659 = vmax.f32 %v2651, 0.0
        %v2660 = vmax.f32 %v2652, 0.0
        %v2661 = vmax.f32 %v2653, 0.0
        %v2662 = vld [vmem:[%s18] sm:$0xf]
        %v2663 = vld [vmem:[%s18 + $0x4] sm:$0xf]
        %v2664 = vld [vmem:[%s18 + $0x8] sm:$0xf]
        %v2665 = vld [vmem:[%s18 + $0xc] sm:$0xf]
        %v2666 = vld [vmem:[%s18 + $0x10] sm:$0xf]
        %v2667 = vld [vmem:[%s18 + $0x14] sm:$0xf]
        %v2668 = vld [vmem:[%s18 + $0x18] sm:$0xf]
        %v2669 = vld [vmem:[%s18 + $0x1c] sm:$0xf]
        %v2670 = vpack.c.bf16 %v2655, %v2654
        %v2671 = vpack.c.bf16 %v2657, %v2656
        %v2672 = vpack.c.bf16 %v2659, %v2658
        %v2673 = vpack.c.bf16 %v2661, %v2660
        %v2674 = vld [vmem:[%s19] sm:$0xff]
        %v2675 = vld [vmem:[%s19 + $0x8] sm:$0xff]
        %v2676 = vld [vmem:[%s19 + $0x10] sm:$0xff]
        %v2677 = vld [vmem:[%s19 + $0x18] sm:$0xff]
        %v2678 = vld [vmem:[%s19 + $0x20] sm:$0xff]
        %v2679 = vld [vmem:[%s19 + $0x28] sm:$0xff]
        %v2680 = vld [vmem:[%s19 + $0x30] sm:$0xff]
        %v2681 = vld [vmem:[%s19 + $0x38] sm:$0xff]
        %2683 = vset.pattern.permute.xlu0 0
        %2684 = vperm.xlu0 %2683, %v2674
        %v2685 = vpop.permute.xlu0 %2684
        %2688 = vset.pattern.permute.xlu0 0
        %2689 = vperm.xlu0 %2688, %v2675
        %v2690 = vpop.permute.xlu0 %2689
        %2693 = vset.pattern.permute.xlu0 0
        %2694 = vperm.xlu0 %2693, %v2676
        %v2695 = vpop.permute.xlu0 %2694
        %2698 = vset.pattern.permute.xlu0 0
        %2699 = vperm.xlu0 %2698, %v2677
        %v2700 = vpop.permute.xlu0 %2699
        %2703 = vset.pattern.permute.xlu0 0
        %2704 = vperm.xlu0 %2703, %v2678
        %v2705 = vpop.permute.xlu0 %2704
        %2708 = vset.pattern.permute.xlu0 0
        %2709 = vperm.xlu0 %2708, %v2679
        %v2710 = vpop.permute.xlu0 %2709
        %2713 = vset.pattern.permute.xlu0 0
        %2714 = vperm.xlu0 %2713, %v2680
        %v2715 = vpop.permute.xlu0 %2714
        %2718 = vset.pattern.permute.xlu0 0
        %2719 = vperm.xlu0 %2718, %v2681
        %v2720 = vpop.permute.xlu0 %2719
        %v2730 = vunpack.c.l.b16 %v2662
        %v2731 = vunpack.c.l.b16 %v2663
        %v2732 = vunpack.c.l.b16 %v2664
        %v2733 = vunpack.c.l.b16 %v2665
        %v2734 = vunpack.c.l.b16 %v2666
        %v2735 = vunpack.c.l.b16 %v2667
        %v2736 = vunpack.c.l.b16 %v2668
        %v2737 = vunpack.c.l.b16 %v2669
        %v2738 = vpack.c.b16 %v2731, %v2730
        %v2739 = vpack.c.b16 %v2733, %v2732
        %v2740 = vpack.c.b16 %v2735, %v2734
        %v2741 = vpack.c.b16 %v2737, %v2736
        %v2743 = vsel %vm2520, %v2738, 0
        %v2746 = vsel %vm2520, %v2739, 0
        %v2749 = vsel %vm2520, %v2740, 0
        %v2752 = vsel %vm2520, %v2741, 0
        %2754 = vmatprep.subr.bf16.mxu0 0
        %2755 = vmatpush1.bf16.msra.mxu0 %v2670
        %2756 = vmatprep.subr.bf16.mxu0 0
        %2757 = vmatpush1.bf16.msra.mxu0 %v2671
        %2758 = vmatprep.subr.bf16.mxu0 0
        %2759 = vmatpush1.bf16.msra.mxu0 %v2672
        %2760 = vmatprep.subr.bf16.mxu0 0
        %2761 = vmatpush1.bf16.msra.mxu0 %v2673
        %2762 = vmatprep.subr.bf16.mxu0 0
        %2763 = vmatpush1.bf16.msra.mxu0 0
        %2764 = vmatprep.subr.bf16.mxu0 0
        %2765 = vmatpush1.bf16.msra.mxu0 0
        %2766 = vmatprep.subr.bf16.mxu0 0
        %2767 = vmatpush1.bf16.msra.mxu0 0
        %2768 = vmatprep.subr.bf16.mxu0 0
        %2769 = vmatpush1.bf16.msra.mxu0 0
        %2770 = vmatprep.subr.bf16.mxu0 0
        %2771 = vmatpush1.bf16.msra.mxu0 0
        %2772 = vmatprep.subr.bf16.mxu0 0
        %2773 = vmatpush1.bf16.msra.mxu0 0
        %2774 = vmatprep.subr.bf16.mxu0 0
        %2775 = vmatpush1.bf16.msra.mxu0 0
        %2776 = vmatprep.subr.bf16.mxu0 0
        %2777 = vmatpush1.bf16.msra.mxu0 0
        %2778 = vmatprep.subr.bf16.mxu0 0
        %2779 = vmatpush1.bf16.msra.mxu0 0
        %2780 = vmatprep.subr.bf16.mxu0 0
        %2781 = vmatpush1.bf16.msra.mxu0 0
        %2782 = vmatprep.subr.bf16.mxu0 0
        %2783 = vmatpush1.bf16.msra.mxu0 0
        %2784 = vmatprep.subr.bf16.mxu0 0
        %2785 = vmatpush1.bf16.msra.mxu0 0
        %2786 = vmatprep.mubr.bf16.mxu0 0
        %2787 = vmatmul.mubr.bf16.gmra.mrb[0].mxu0 %v2743
        %v2788 = vpop.f32.mrb[0].mxu0
        %v2789 = vadd.f32 %v2685, %v2788
        %v2790 = vpop.f32.mrb[0].mxu0
        %v2791 = vpop.f32.mrb[0].mxu0
        %v2792 = vadd.f32 %v2690, %v2791
        %v2793 = vpop.f32.mrb[0].mxu0
        %2794 = vmatprep.mubr.bf16.mxu0 0
        %2795 = vmatmul.mubr.bf16.gmra.mrb[0].mxu0 %v2746
        %v2796 = vpop.f32.mrb[0].mxu0
        %v2797 = vadd.f32 %v2695, %v2796
        %v2798 = vpop.f32.mrb[0].mxu0
        %v2799 = vpop.f32.mrb[0].mxu0
        %v2800 = vadd.f32 %v2700, %v2799
        %v2801 = vpop.f32.mrb[0].mxu0
        %2802 = vmatprep.mubr.bf16.mxu0 0
        %2803 = vmatmul.mubr.bf16.gmra.mrb[0].mxu0 %v2749
        %v2804 = vpop.f32.mrb[0].mxu0
        %v2805 = vadd.f32 %v2705, %v2804
        %v2806 = vpop.f32.mrb[0].mxu0
        %v2807 = vpop.f32.mrb[0].mxu0
        %v2808 = vadd.f32 %v2710, %v2807
        %v2809 = vpop.f32.mrb[0].mxu0
        %2810 = vmatprep.mubr.bf16.mxu0 0
        %2811 = vmatmul.mubr.bf16.gmra.mrb[0].mxu0 %v2752
        %v2812 = vpop.f32.mrb[0].mxu0
        %v2813 = vadd.f32 %v2715, %v2812
        %v2814 = vpop.f32.mrb[0].mxu0
        %v2815 = vpop.f32.mrb[0].mxu0
        %v2816 = vadd.f32 %v2720, %v2815
        %v2817 = vpop.f32.mrb[0].mxu0
        %2818 = vdwg.mxu0
        %v2819 = vmax.f32 %v2789, 0.0
        %v2820 = vmax.f32 %v2792, 0.0
        %v2821 = vmax.f32 %v2797, 0.0
        %v2822 = vmax.f32 %v2800, 0.0
        %v2823 = vmax.f32 %v2805, 0.0
        %v2824 = vmax.f32 %v2808, 0.0
        %v2825 = vmax.f32 %v2813, 0.0
        %v2826 = vmax.f32 %v2816, 0.0
        %v2827 = vld [vmem:[%s20] sm:$0x1]
        %v2828 = vpack.c.bf16 %v2820, %v2819
        %v2829 = vpack.c.bf16 %v2822, %v2821
        %v2830 = vpack.c.bf16 %v2824, %v2823
        %v2831 = vpack.c.bf16 %v2826, %v2825
        %v2832 = vld [vmem:[#allocation2] sm:$0x1]
        %2834 = vset.pattern.permute.xlu0 0
        %2835 = vperm.xlu0 %2834, %v2832
        %v2836 = vpop.permute.xlu0 %2835
        %v2838 = vlaneseq
        %v2839 = vshrl.u32 %v2838, 7
        %v2840 = vsub.s32 0, %v2839
        %v2841 = vrot.slane %v2836, %v2840
        %v2843 = vsel %vm2520, %v2827, 0
        %2845 = vmatprep.subr.bf16.mxu0 0
        %2846 = vmatpush1.bf16.msra.mxu0 %v2828
        %2847 = vmatprep.subr.bf16.mxu0 0
        %2848 = vmatpush1.bf16.msra.mxu0 %v2829
        %2849 = vmatprep.subr.bf16.mxu0 0
        %2850 = vmatpush1.bf16.msra.mxu0 %v2830
        %2851 = vmatprep.subr.bf16.mxu0 0
        %2852 = vmatpush1.bf16.msra.mxu0 %v2831
        %2853 = vmatprep.subr.bf16.mxu0 0
        %2854 = vmatpush1.bf16.msra.mxu0 0
        %2855 = vmatprep.subr.bf16.mxu0 0
        %2856 = vmatpush1.bf16.msra.mxu0 0
        %2857 = vmatprep.subr.bf16.mxu0 0
        %2858 = vmatpush1.bf16.msra.mxu0 0
        %2859 = vmatprep.subr.bf16.mxu0 0
        %2860 = vmatpush1.bf16.msra.mxu0 0
        %2861 = vmatprep.subr.bf16.mxu0 0
        %2862 = vmatpush1.bf16.msra.mxu0 0
        %2863 = vmatprep.subr.bf16.mxu0 0
        %2864 = vmatpush1.bf16.msra.mxu0 0
        %2865 = vmatprep.subr.bf16.mxu0 0
        %2866 = vmatpush1.bf16.msra.mxu0 0
        %2867 = vmatprep.subr.bf16.mxu0 0
        %2868 = vmatpush1.bf16.msra.mxu0 0
        %2869 = vmatprep.subr.bf16.mxu0 0
        %2870 = vmatpush1.bf16.msra.mxu0 0
        %2871 = vmatprep.subr.bf16.mxu0 0
        %2872 = vmatpush1.bf16.msra.mxu0 0
        %2873 = vmatprep.subr.bf16.mxu0 0
        %2874 = vmatpush1.bf16.msra.mxu0 0
        %2875 = vmatprep.subr.bf16.mxu0 0
        %2876 = vmatpush1.bf16.msra.mxu0 0
        %2877 = vmatprep.mubr.bf16.mxu0 0
        %2878 = vmatmul.mubr.bf16.gmra.mrb[0].mxu0 %v2843
        %v2879 = vpop.f32.mrb[0].mxu0
        %v2880 = vadd.f32 %v2841, %v2879
        %v2881 = vpop.f32.mrb[0].mxu0
        %v2882 = vpop.f32.mrb[0].mxu0
        %v2883 = vpop.f32.mrb[0].mxu0
        %2884 = vdwg.mxu0
        %vm2885 = vcmask 122880
        %2886 = vst.msk [vmem:[%s892] sm:$0x1] %vm2885, %v2880
        %p2887 = scmp.lt.s32.totalorder %s35, 1
        %s2888 = scalar_select %p2887, %s35, 1
        %s2889 = scalar_lea.vmem %s22, %s2888
        // Predicated region
        $region191: #{gcn_net_forward.1} parent=181 // pred_check
          %p2890 = pneg %p550
        $region192: #{gcn_net_forward.1} parent=181 // pred_check_branch
          %2892 = sbr.rel (%p2890) target = $region194
        $region193: #{gcn_net_forward.1} parent=181 // pred_region
          _
        $region194: #{gcn_net_forward.1} parent=181 // pred_fallthru
          _
      $region182: #{gcn_net_forward.1} parent=5 // pred_fallthru
        _
      %p2893 = scmp.le.s32.totalorder 2, %s30
      // Predicated region
      $region195: #{gcn_net_forward.1} parent=5 // pred_check
        %p2894 = pneg %p2893
      $region196: #{gcn_net_forward.1} parent=5 // pred_check_branch
        %2896 = sbr.rel (%p2894) target = $region198
      $region197: #{gcn_net_forward.1} parent=5 // pred_region
        %s2897 = ssub.s32 %s30, 2
        // Predicated region
        $region199: #{gcn_net_forward.1} parent=197 // pred_check
          %p2898 = pneg %p556
        $region200: #{gcn_net_forward.1} parent=197 // pred_check_branch
          %2900 = sbr.rel (%p2898) target = $region202
        $region201: #{gcn_net_forward.1} parent=197 // pred_region
          %p2901 = scmp.lt.s32.totalorder %s36, 1
          %s2902 = scalar_select %p2901, %s36, 1
          %s2903 = scalar_lea.vmem %s22, %s2902
        $region202: #{gcn_net_forward.1} parent=197 // pred_fallthru
          _
      $region198: #{gcn_net_forward.1} parent=5 // pred_fallthru
        _
    $region6: #{gcn_net_forward.1} parent=1 // loop_footer
      %s34 = sadd.s32 1, %s30
    $region7: #{gcn_net_forward.1} parent=1 // loop_footer_branch
      %29 = sbr.rel target = $region3
    $region8: #{gcn_net_forward.1} parent=1 // loop_exit
      _

</llo_original>
